<compile_context>
chip_gen: v7x
topology: tpu7x:2x2x1
jax: 0.10.0
libtpu: 0.0.40
codegen_flags: <defaults>
</compile_context>

<pallas_src>
import numpy as np
import jax
import jax.numpy as jnp
from jax.experimental import pallas as pl
from jax.experimental.pallas import tpu as pltpu

KSIZE = 5            # Conv1d kernel size (padding=2 keeps the sequence length)
PAD = KSIZE // 2
HALO = 8             # halo rounded up to the 8-row sublane tile (aligned stores)
POS_DIM = 3          # hard-coded in the module: Gs_PositionEmbed(3, hid, hid)


def _gs_encoder_kernel(x_ref, pos_ref,
                       w1_ref, b1_ref,
                       w2_ref, b2_ref,
                       w3_ref, b3_ref,
                       w4_ref, b4_ref,
                       pw1_ref, pb1_ref,
                       pw2_ref, pb2_ref,
                       o_ref,
                       xpad_sc, apad_sc):
    """One batch block per grid step.

    x_ref   : (Bb, N, Cin)          raw (unpadded) input block
    pos_ref : (Bb, N, 3)            positions
    w*_ref  : (Cin_l, KSIZE*H) bf16 tap-stacked conv weights
    b*_ref  : (1, H) f32            conv biases
    pw1_ref : (3, H) f32, pw2_ref: (H, H) bf16, pb*_ref: (1, H) f32
    o_ref   : (Bb, N, H)
    xpad_sc : VMEM (Bb, N+2*HALO, Cin) f32 — zero-haloed staging of x
    apad_sc : VMEM (Bb, N+2*HALO, H)   f32 — zero-haloed inter-layer activations
    """
    bb, n, h = o_ref.shape
    cin = x_ref.shape[-1]
    rows = n + 2 * HALO

    # --- stage x into a zero-haloed scratch (in-kernel 'same' padding). The
    # halos are 8 rows -> sublane-aligned zero stores; the body write is
    # aligned at row HALO=8.  Scratch is per-core and re-initialized every
    # grid step, so this is safe with a "parallel" batch axis.
    zx = jnp.zeros((bb, HALO, cin), jnp.float32)
    xpad_sc[:, 0:HALO, :] = zx
    xpad_sc[:, HALO + n:rows, :] = zx
    xpad_sc[:, HALO:HALO + n, :] = x_ref[...].astype(jnp.float32)

    za = jnp.zeros((bb, HALO, h), jnp.float32)
    apad_sc[:, 0:HALO, :] = za
    apad_sc[:, HALO + n:rows, :] = za

    def conv_tapstack(src_ref, w_ref, b_ref):
        # Conv1d(k=5, padding=2) as ONE tap-stacked matmul:
        #   Z = src_padded @ [W_0 | W_1 | ... | W_4]            (MXU, bf16)
        #   out[t] = b + sum_k Z[t + HALO - PAD + k, k*H:(k+1)*H] (VPU adds)
        # The zero halo rows of src make the boundary taps contribute zero.
        cin_l = src_ref.shape[-1]
        src = src_ref[...].astype(jnp.bfloat16).reshape(bb * rows, cin_l)
        z = jnp.dot(src, w_ref[...], preferred_element_type=jnp.float32)
        z = z.reshape(bb, rows, KSIZE * h)
        acc = jnp.zeros((bb, n, h), jnp.float32) + b_ref[...]
        for k in range(KSIZE):
            r0 = HALO - PAD + k
            acc = acc + z[:, r0:r0 + n, k * h:(k + 1) * h]
        return jax.nn.relu(acc)

    # conv1 (Cin=4) folded into the same tap-stacked scheme as one K=4 push.
    act = conv_tapstack(xpad_sc, w1_ref, b1_ref)

    # conv2..conv4: write the activation back into the haloed scratch body
    # (aligned store) and run the next layer off it.
    for w_ref, b_ref in ((w2_ref, b2_ref), (w3_ref, b3_ref), (w4_ref, b4_ref)):
        apad_sc[:, HALO:HALO + n, :] = act
        act = conv_tapstack(apad_sc, w_ref, b_ref)

    # --- position embedding MLP: Linear(3,H) -> ReLU -> Linear(H,H) ---
    # K=3 would be >98% MXU padding, so the first linear is 3 VPU broadcast
    # MACs in f32; the accumulator is materialized as a full (Bb,N,H) array
    # once.  The second (K=H) linear uses the MXU in bf16.
    posv = pos_ref[...].astype(jnp.float32)                  # (Bb, N, 3)
    w1p = pw1_ref[...]                                       # (3, H) f32
    emb = jnp.zeros((bb, n, h), jnp.float32) + pb1_ref[...]
    for k in range(POS_DIM):
        emb = emb + posv[:, :, k:k + 1] * w1p[k].reshape(1, 1, h)
    emb = jax.nn.relu(emb).astype(jnp.bfloat16)
    emb = jnp.dot(emb.reshape(bb * n, h), pw2_ref[...],
                  preferred_element_type=jnp.float32).reshape(bb, n, h)
    emb = emb + pb2_ref[...]

    # Final add in f32, single cast at the store.
    o_ref[...] = (act + emb).astype(o_ref.dtype)


def _grid_steps(batch):
    """1 grid step on single-TC chips; 2 'parallel' steps on 2-TC chips."""
    try:
        kind = jax.devices()[0].device_kind.lower()
    except Exception:
        kind = ""
    two_cores = "7" in kind          # v7x-style: 2 TensorCores per chip
    if two_cores and batch >= 2 and batch % 2 == 0:
        return 2
    return 1


def gs_encoder_forward(x, pos, params):
    """Forward pass of Gs_Encoder.

    x:   [B, N, gs_dim]   pos: [B, N, 3]
    params (PyTorch layout):
        conv{i}_w: [H, Cin_i, 5], conv{i}_b: [H]
        pos_w1: [H, 3], pos_b1: [H], pos_w2: [H, H], pos_b2: [H]
    returns: [B, N, H]
    """
    B, N, Cin = x.shape
    H = params["conv1_w"].shape[0]

    # PyTorch Conv1d weight [Cout, Cin, K] -> tap-stacked [Cin, K*H] bf16:
    #   W_stack[c, k*H + o] = w[o, c, k]
    def stack_w(w):
        return (jnp.transpose(w, (1, 2, 0))
                .reshape(w.shape[1], KSIZE * H)
                .astype(jnp.bfloat16))

    def row(b):
        return b.reshape(1, H).astype(jnp.float32)

    cw = [stack_w(params[f"conv{i}_w"]) for i in range(1, 5)]
    cb = [row(params[f"conv{i}_b"]) for i in range(1, 5)]
    pw1 = params["pos_w1"].T.astype(jnp.float32)    # [3, H]  (VPU path, f32)
    pw2 = params["pos_w2"].T.astype(jnp.bfloat16)   # [H, H]  (MXU path, bf16)
    pb1 = row(params["pos_b1"])
    pb2 = row(params["pos_b2"])

    G = _grid_steps(B)
    Bb = B // G

    rep2 = lambda g: (0, 0)          # batch-invariant weight operands
    blk3 = lambda g: (g, 0, 0)       # batch-blocked operands

    out = pl.pallas_call(
        _gs_encoder_kernel,
        out_shape=jax.ShapeDtypeStruct((B, N, H), x.dtype),
        grid_spec=pltpu.PrefetchScalarGridSpec(
            num_scalar_prefetch=0,
            grid=(G,),
            in_specs=[
                pl.BlockSpec((Bb, N, Cin), blk3),
                pl.BlockSpec((Bb, N, POS_DIM), blk3),
                pl.BlockSpec((Cin, KSIZE * H), rep2), pl.BlockSpec((1, H), rep2),
                pl.BlockSpec((H, KSIZE * H), rep2),   pl.BlockSpec((1, H), rep2),
                pl.BlockSpec((H, KSIZE * H), rep2),   pl.BlockSpec((1, H), rep2),
                pl.BlockSpec((H, KSIZE * H), rep2),   pl.BlockSpec((1, H), rep2),
                pl.BlockSpec((POS_DIM, H), rep2),     pl.BlockSpec((1, H), rep2),
                pl.BlockSpec((H, H), rep2),           pl.BlockSpec((1, H), rep2),
            ],
            out_specs=pl.BlockSpec((Bb, N, H), blk3),
            scratch_shapes=[
                pltpu.VMEM((Bb, N + 2 * HALO, Cin), jnp.float32),
                pltpu.VMEM((Bb, N + 2 * HALO, H), jnp.float32),
            ],
        ),
        compiler_params=pltpu.CompilerParams(
            dimension_semantics=("parallel",)),
    )(x, pos, cw[0], cb[0], cw[1], cb[1], cw[2], cb[2], cw[3], cb[3],
      pw1, pb1, pw2, pb2)
    return out


def _ref_forward(x, pos, params):
    """Pure-JAX (f32) reference with the same semantics as the PyTorch module."""
    def conv1d(h, w, b):
        # h: [B, N, Cin]; w: [Cout, Cin, K]; 'same' padding = K // 2.
        K = w.shape[2]
        N = h.shape[1]
        hp = jnp.pad(h, ((0, 0), (K // 2, K // 2), (0, 0)))
        y = b[None, None, :]
        for k in range(K):
            y = y + jnp.einsum("bni,oi->bno", hp[:, k:k + N, :], w[:, :, k])
        return y

    h = x
    for i in range(1, 5):
        h = jax.nn.relu(conv1d(h, params[f"conv{i}_w"], params[f"conv{i}_b"]))
    emb = jax.nn.relu(pos @ params["pos_w1"].T + params["pos_b1"])
    emb = emb @ params["pos_w2"].T + params["pos_b2"]
    return h + emb


if __name__ == "__main__":
    # Small shapes: batch=2, seq=128, gs_dim (input channels)=4, hidden=32.
    B, N, GS_DIM, HID = 2, 128, 4, 32

    key = jax.random.PRNGKey(0)
    keys = jax.random.split(key, 14)

    params = {
        "conv1_w": 0.15 * jax.random.normal(keys[0], (HID, GS_DIM, KSIZE), jnp.float32),
        "conv1_b": 0.10 * jax.random.normal(keys[1], (HID,), jnp.float32),
        "conv2_w": 0.10 * jax.random.normal(keys[2], (HID, HID, KSIZE), jnp.float32),
        "conv2_b": 0.10 * jax.random.normal(keys[3], (HID,), jnp.float32),
        "conv3_w": 0.10 * jax.random.normal(keys[4], (HID, HID, KSIZE), jnp.float32),
        "conv3_b": 0.10 * jax.random.normal(keys[5], (HID,), jnp.float32),
        "conv4_w": 0.10 * jax.random.normal(keys[6], (HID, HID, KSIZE), jnp.float32),
        "conv4_b": 0.10 * jax.random.normal(keys[7], (HID,), jnp.float32),
        "pos_w1": 0.50 * jax.random.normal(keys[8], (HID, POS_DIM), jnp.float32),
        "pos_b1": 0.10 * jax.random.normal(keys[9], (HID,), jnp.float32),
        "pos_w2": 0.20 * jax.random.normal(keys[10], (HID, HID), jnp.float32),
        "pos_b2": 0.10 * jax.random.normal(keys[11], (HID,), jnp.float32),
    }

    x = jax.random.normal(keys[12], (B, N, GS_DIM), jnp.float32)
    pos = jax.random.uniform(keys[13], (B, N, POS_DIM), jnp.float32)

    out = jax.block_until_ready(gs_encoder_forward(x, pos, params))
    ref = jax.block_until_ready(_ref_forward(x, pos, params))

    # Deliberate bf16-level tolerance: the kernel uses bf16 MXU operands with
    # f32 accumulation (4 conv layers + 1 linear), the reference is f32.
    # Structural bugs would show up as O(0.3+) differences.
    np.testing.assert_allclose(np.asarray(out), np.asarray(ref),
                               rtol=3e-2, atol=3e-2)

    print("KERNEL_OK")
</pallas_src>

<mosaic_0001>
module attributes {stable_mosaic.version = 11 : i64} {
  func.func @_gs_encoder_kernel(%arg0: i32, %arg1: memref<2x128x4xf32, #tpu.memory_space<vmem>>, %arg2: memref<2x128x3xf32, #tpu.memory_space<vmem>>, %arg3: memref<4x160xbf16, #tpu.memory_space<vmem>>, %arg4: memref<1x32xf32, #tpu.memory_space<vmem>>, %arg5: memref<32x160xbf16, #tpu.memory_space<vmem>>, %arg6: memref<1x32xf32, #tpu.memory_space<vmem>>, %arg7: memref<32x160xbf16, #tpu.memory_space<vmem>>, %arg8: memref<1x32xf32, #tpu.memory_space<vmem>>, %arg9: memref<32x160xbf16, #tpu.memory_space<vmem>>, %arg10: memref<1x32xf32, #tpu.memory_space<vmem>>, %arg11: memref<3x32xf32, #tpu.memory_space<vmem>>, %arg12: memref<1x32xf32, #tpu.memory_space<vmem>>, %arg13: memref<32x32xbf16, #tpu.memory_space<vmem>>, %arg14: memref<1x32xf32, #tpu.memory_space<vmem>>, %arg15: memref<2x128x32xf32, #tpu.memory_space<vmem>>, %arg16: memref<2x144x4xf32, #tpu.memory_space<vmem>>, %arg17: memref<2x144x32xf32, #tpu.memory_space<vmem>>) attributes {dimension_semantics = [#tpu.dimension_semantics<parallel>], iteration_bounds = array<i64: 1>, scalar_prefetch = 0 : i64, scratch_operands = 2 : i64, tpu.core_type = #tpu.core_type<tc>, window_params = [{transform_indices = @transform_0, window_bounds = array<i64: 2, 128, 4>}, {transform_indices = @transform_1, window_bounds = array<i64: 2, 128, 3>}, {pipeline_mode = #tpu.pipeline_mode<synchronous>, transform_indices = @transform_2, window_bounds = array<i64: 4, 160>}, {pipeline_mode = #tpu.pipeline_mode<synchronous>, transform_indices = @transform_3, window_bounds = array<i64: 1, 32>}, {pipeline_mode = #tpu.pipeline_mode<synchronous>, transform_indices = @transform_4, window_bounds = array<i64: 32, 160>}, {pipeline_mode = #tpu.pipeline_mode<synchronous>, transform_indices = @transform_5, window_bounds = array<i64: 1, 32>}, {pipeline_mode = #tpu.pipeline_mode<synchronous>, transform_indices = @transform_6, window_bounds = array<i64: 32, 160>}, {pipeline_mode = #tpu.pipeline_mode<synchronous>, transform_indices = @transform_7, window_bounds = array<i64: 1, 32>}, {pipeline_mode = #tpu.pipeline_mode<synchronous>, transform_indices = @transform_8, window_bounds = array<i64: 32, 160>}, {pipeline_mode = #tpu.pipeline_mode<synchronous>, transform_indices = @transform_9, window_bounds = array<i64: 1, 32>}, {pipeline_mode = #tpu.pipeline_mode<synchronous>, transform_indices = @transform_10, window_bounds = array<i64: 3, 32>}, {pipeline_mode = #tpu.pipeline_mode<synchronous>, transform_indices = @transform_11, window_bounds = array<i64: 1, 32>}, {pipeline_mode = #tpu.pipeline_mode<synchronous>, transform_indices = @transform_12, window_bounds = array<i64: 32, 32>}, {pipeline_mode = #tpu.pipeline_mode<synchronous>, transform_indices = @transform_13, window_bounds = array<i64: 1, 32>}, {transform_indices = @transform_14, window_bounds = array<i64: 2, 128, 32>}]} {
    %cst = arith.constant 0.000000e+00 : f32
    %0 = vector.broadcast %cst : f32 to vector<2x8x4xf32>
    %c0 = arith.constant 0 : index
    %c0_0 = arith.constant 0 : index
    %c0_1 = arith.constant 0 : index
    %1 = vector.load %arg16[%c0, %c0_0, %c0_1] : memref<2x144x4xf32, #tpu.memory_space<vmem>>, vector<2x8x4xf32>
    tpu.vector_store %arg16[%c0, %c0_0, %c0_1], %0 {strides = array<i32>} : memref<2x144x4xf32, #tpu.memory_space<vmem>>, vector<2x8x4xf32>,
    %c0_2 = arith.constant 0 : index
    %c136 = arith.constant 136 : index
    %c0_3 = arith.constant 0 : index
    %2 = vector.load %arg16[%c0_2, %c136, %c0_3] : memref<2x144x4xf32, #tpu.memory_space<vmem>>, vector<2x8x4xf32>
    tpu.vector_store %arg16[%c0_2, %c136, %c0_3], %0 {strides = array<i32>} : memref<2x144x4xf32, #tpu.memory_space<vmem>>, vector<2x8x4xf32>,
    %c0_4 = arith.constant 0 : index
    %c0_5 = arith.constant 0 : index
    %c0_6 = arith.constant 0 : index
    %3 = vector.load %arg1[%c0_4, %c0_5, %c0_6] : memref<2x128x4xf32, #tpu.memory_space<vmem>>, vector<2x128x4xf32>
    %c0_7 = arith.constant 0 : index
    %c8 = arith.constant 8 : index
    %c0_8 = arith.constant 0 : index
    %4 = vector.load %arg16[%c0_7, %c8, %c0_8] : memref<2x144x4xf32, #tpu.memory_space<vmem>>, vector<2x128x4xf32>
    tpu.vector_store %arg16[%c0_7, %c8, %c0_8], %3 {strides = array<i32>} : memref<2x144x4xf32, #tpu.memory_space<vmem>>, vector<2x128x4xf32>,
    %cst_9 = arith.constant 0.000000e+00 : f32
    %5 = vector.broadcast %cst_9 : f32 to vector<2x8x32xf32>
    %c0_10 = arith.constant 0 : index
    %c0_11 = arith.constant 0 : index
    %c0_12 = arith.constant 0 : index
    %6 = vector.load %arg17[%c0_10, %c0_11, %c0_12] : memref<2x144x32xf32, #tpu.memory_space<vmem>>, vector<2x8x32xf32>
    tpu.vector_store %arg17[%c0_10, %c0_11, %c0_12], %5 {strides = array<i32>} : memref<2x144x32xf32, #tpu.memory_space<vmem>>, vector<2x8x32xf32>,
    %c0_13 = arith.constant 0 : index
    %c136_14 = arith.constant 136 : index
    %c0_15 = arith.constant 0 : index
    %7 = vector.load %arg17[%c0_13, %c136_14, %c0_15] : memref<2x144x32xf32, #tpu.memory_space<vmem>>, vector<2x8x32xf32>
    tpu.vector_store %arg17[%c0_13, %c136_14, %c0_15], %5 {strides = array<i32>} : memref<2x144x32xf32, #tpu.memory_space<vmem>>, vector<2x8x32xf32>,
    %c0_16 = arith.constant 0 : index
    %c0_17 = arith.constant 0 : index
    %c0_18 = arith.constant 0 : index
    %8 = vector.load %arg16[%c0_16, %c0_17, %c0_18] : memref<2x144x4xf32, #tpu.memory_space<vmem>>, vector<2x144x4xf32>
    %9 = arith.truncf %8 : vector<2x144x4xf32> to vector<2x144x4xbf16>
    %10 = vector.shape_cast %9 : vector<2x144x4xbf16> to vector<288x4xbf16>
    %c0_19 = arith.constant 0 : index
    %c0_20 = arith.constant 0 : index
    %11 = vector.load %arg3[%c0_19, %c0_20] : memref<4x160xbf16, #tpu.memory_space<vmem>>, vector<4x160xbf16>
    %cst_21 = arith.constant dense<0.000000e+00> : vector<288x160xf32>
    %12 = tpu.matmul %10, %11, %cst_21 {dimension_numbers = #tpu.dot_dimension_numbers<[1], [0], [0], [1], [0, 0, 1, 1], [], []>} : vector<288x4xbf16>, vector<4x160xbf16>, vector<288x160xf32> -> vector<288x160xf32>
    %13 = vector.shape_cast %12 : vector<288x160xf32> to vector<2x144x160xf32>
    %cst_22 = arith.constant 0.000000e+00 : f32
    %14 = vector.broadcast %cst_22 : f32 to vector<2x128x32xf32>
    %c0_23 = arith.constant 0 : index
    %c0_24 = arith.constant 0 : index
    %15 = vector.load %arg4[%c0_23, %c0_24] : memref<1x32xf32, #tpu.memory_space<vmem>>, vector<1x32xf32>
    %16 = vector.shape_cast %15 : vector<1x32xf32> to vector<1x1x32xf32>
    %17 = vector.broadcast %16 : vector<1x1x32xf32> to vector<2x128x32xf32>
    %18 = arith.addf %14, %17 : vector<2x128x32xf32>
    %19 = vector.extract_strided_slice %13 {offsets = [0, 6, 0], sizes = [2, 128, 32], strides = [1, 1, 1]} : vector<2x144x160xf32> to vector<2x128x32xf32>
    %20 = arith.addf %18, %19 : vector<2x128x32xf32>
    %21 = vector.extract_strided_slice %13 {offsets = [0, 7, 32], sizes = [2, 128, 32], strides = [1, 1, 1]} : vector<2x144x160xf32> to vector<2x128x32xf32>
    %22 = arith.addf %20, %21 : vector<2x128x32xf32>
    %23 = vector.extract_strided_slice %13 {offsets = [0, 8, 64], sizes = [2, 128, 32], strides = [1, 1, 1]} : vector<2x144x160xf32> to vector<2x128x32xf32>
    %24 = arith.addf %22, %23 : vector<2x128x32xf32>
    %25 = vector.extract_strided_slice %13 {offsets = [0, 9, 96], sizes = [2, 128, 32], strides = [1, 1, 1]} : vector<2x144x160xf32> to vector<2x128x32xf32>
    %26 = arith.addf %24, %25 : vector<2x128x32xf32>
    %27 = vector.extract_strided_slice %13 {offsets = [0, 10, 128], sizes = [2, 128, 32], strides = [1, 1, 1]} : vector<2x144x160xf32> to vector<2x128x32xf32>
    %28 = arith.addf %26, %27 : vector<2x128x32xf32>
    %cst_25 = arith.constant 0.000000e+00 : f32
    %29 = vector.broadcast %cst_25 : f32 to vector<2x128x32xf32>
    %30 = arith.maximumf %28, %29 : vector<2x128x32xf32>
    %c0_26 = arith.constant 0 : index
    %c8_27 = arith.constant 8 : index
    %c0_28 = arith.constant 0 : index
    %31 = vector.load %arg17[%c0_26, %c8_27, %c0_28] : memref<2x144x32xf32, #tpu.memory_space<vmem>>, vector<2x128x32xf32>
    tpu.vector_store %arg17[%c0_26, %c8_27, %c0_28], %30 {strides = array<i32>} : memref<2x144x32xf32, #tpu.memory_space<vmem>>, vector<2x128x32xf32>,
    %c0_29 = arith.constant 0 : index
    %c0_30 = arith.constant 0 : index
    %c0_31 = arith.constant 0 : index
    %32 = vector.load %arg17[%c0_29, %c0_30, %c0_31] : memref<2x144x32xf32, #tpu.memory_space<vmem>>, vector<2x144x32xf32>
    %33 = arith.truncf %32 : vector<2x144x32xf32> to vector<2x144x32xbf16>
    %34 = vector.shape_cast %33 : vector<2x144x32xbf16> to vector<288x32xbf16>
    %c0_32 = arith.constant 0 : index
    %c0_33 = arith.constant 0 : index
    %35 = vector.load %arg5[%c0_32, %c0_33] : memref<32x160xbf16, #tpu.memory_space<vmem>>, vector<32x160xbf16>
    %cst_34 = arith.constant dense<0.000000e+00> : vector<288x160xf32>
    %36 = tpu.matmul %34, %35, %cst_34 {dimension_numbers = #tpu.dot_dimension_numbers<[1], [0], [0], [1], [0, 0, 1, 1], [], []>} : vector<288x32xbf16>, vector<32x160xbf16>, vector<288x160xf32> -> vector<288x160xf32>
    %37 = vector.shape_cast %36 : vector<288x160xf32> to vector<2x144x160xf32>
    %cst_35 = arith.constant 0.000000e+00 : f32
    %38 = vector.broadcast %cst_35 : f32 to vector<2x128x32xf32>
    %c0_36 = arith.constant 0 : index
    %c0_37 = arith.constant 0 : index
    %39 = vector.load %arg6[%c0_36, %c0_37] : memref<1x32xf32, #tpu.memory_space<vmem>>, vector<1x32xf32>
    %40 = vector.shape_cast %39 : vector<1x32xf32> to vector<1x1x32xf32>
    %41 = vector.broadcast %40 : vector<1x1x32xf32> to vector<2x128x32xf32>
    %42 = arith.addf %38, %41 : vector<2x128x32xf32>
    %43 = vector.extract_strided_slice %37 {offsets = [0, 6, 0], sizes = [2, 128, 32], strides = [1, 1, 1]} : vector<2x144x160xf32> to vector<2x128x32xf32>
    %44 = arith.addf %42, %43 : vector<2x128x32xf32>
    %45 = vector.extract_strided_slice %37 {offsets = [0, 7, 32], sizes = [2, 128, 32], strides = [1, 1, 1]} : vector<2x144x160xf32> to vector<2x128x32xf32>
    %46 = arith.addf %44, %45 : vector<2x128x32xf32>
    %47 = vector.extract_strided_slice %37 {offsets = [0, 8, 64], sizes = [2, 128, 32], strides = [1, 1, 1]} : vector<2x144x160xf32> to vector<2x128x32xf32>
    %48 = arith.addf %46, %47 : vector<2x128x32xf32>
    %49 = vector.extract_strided_slice %37 {offsets = [0, 9, 96], sizes = [2, 128, 32], strides = [1, 1, 1]} : vector<2x144x160xf32> to vector<2x128x32xf32>
    %50 = arith.addf %48, %49 : vector<2x128x32xf32>
    %51 = vector.extract_strided_slice %37 {offsets = [0, 10, 128], sizes = [2, 128, 32], strides = [1, 1, 1]} : vector<2x144x160xf32> to vector<2x128x32xf32>
    %52 = arith.addf %50, %51 : vector<2x128x32xf32>
    %cst_38 = arith.constant 0.000000e+00 : f32
    %53 = vector.broadcast %cst_38 : f32 to vector<2x128x32xf32>
    %54 = arith.maximumf %52, %53 : vector<2x128x32xf32>
    %c0_39 = arith.constant 0 : index
    %c8_40 = arith.constant 8 : index
    %c0_41 = arith.constant 0 : index
    %55 = vector.load %arg17[%c0_39, %c8_40, %c0_41] : memref<2x144x32xf32, #tpu.memory_space<vmem>>, vector<2x128x32xf32>
    tpu.vector_store %arg17[%c0_39, %c8_40, %c0_41], %54 {strides = array<i32>} : memref<2x144x32xf32, #tpu.memory_space<vmem>>, vector<2x128x32xf32>,
    %c0_42 = arith.constant 0 : index
    %c0_43 = arith.constant 0 : index
    %c0_44 = arith.constant 0 : index
    %56 = vector.load %arg17[%c0_42, %c0_43, %c0_44] : memref<2x144x32xf32, #tpu.memory_space<vmem>>, vector<2x144x32xf32>
    %57 = arith.truncf %56 : vector<2x144x32xf32> to vector<2x144x32xbf16>
    %58 = vector.shape_cast %57 : vector<2x144x32xbf16> to vector<288x32xbf16>
    %c0_45 = arith.constant 0 : index
    %c0_46 = arith.constant 0 : index
    %59 = vector.load %arg7[%c0_45, %c0_46] : memref<32x160xbf16, #tpu.memory_space<vmem>>, vector<32x160xbf16>
    %cst_47 = arith.constant dense<0.000000e+00> : vector<288x160xf32>
    %60 = tpu.matmul %58, %59, %cst_47 {dimension_numbers = #tpu.dot_dimension_numbers<[1], [0], [0], [1], [0, 0, 1, 1], [], []>} : vector<288x32xbf16>, vector<32x160xbf16>, vector<288x160xf32> -> vector<288x160xf32>
    %61 = vector.shape_cast %60 : vector<288x160xf32> to vector<2x144x160xf32>
    %cst_48 = arith.constant 0.000000e+00 : f32
    %62 = vector.broadcast %cst_48 : f32 to vector<2x128x32xf32>
    %c0_49 = arith.constant 0 : index
    %c0_50 = arith.constant 0 : index
    %63 = vector.load %arg8[%c0_49, %c0_50] : memref<1x32xf32, #tpu.memory_space<vmem>>, vector<1x32xf32>
    %64 = vector.shape_cast %63 : vector<1x32xf32> to vector<1x1x32xf32>
    %65 = vector.broadcast %64 : vector<1x1x32xf32> to vector<2x128x32xf32>
    %66 = arith.addf %62, %65 : vector<2x128x32xf32>
    %67 = vector.extract_strided_slice %61 {offsets = [0, 6, 0], sizes = [2, 128, 32], strides = [1, 1, 1]} : vector<2x144x160xf32> to vector<2x128x32xf32>
    %68 = arith.addf %66, %67 : vector<2x128x32xf32>
    %69 = vector.extract_strided_slice %61 {offsets = [0, 7, 32], sizes = [2, 128, 32], strides = [1, 1, 1]} : vector<2x144x160xf32> to vector<2x128x32xf32>
    %70 = arith.addf %68, %69 : vector<2x128x32xf32>
    %71 = vector.extract_strided_slice %61 {offsets = [0, 8, 64], sizes = [2, 128, 32], strides = [1, 1, 1]} : vector<2x144x160xf32> to vector<2x128x32xf32>
    %72 = arith.addf %70, %71 : vector<2x128x32xf32>
    %73 = vector.extract_strided_slice %61 {offsets = [0, 9, 96], sizes = [2, 128, 32], strides = [1, 1, 1]} : vector<2x144x160xf32> to vector<2x128x32xf32>
    %74 = arith.addf %72, %73 : vector<2x128x32xf32>
    %75 = vector.extract_strided_slice %61 {offsets = [0, 10, 128], sizes = [2, 128, 32], strides = [1, 1, 1]} : vector<2x144x160xf32> to vector<2x128x32xf32>
    %76 = arith.addf %74, %75 : vector<2x128x32xf32>
    %cst_51 = arith.constant 0.000000e+00 : f32
    %77 = vector.broadcast %cst_51 : f32 to vector<2x128x32xf32>
    %78 = arith.maximumf %76, %77 : vector<2x128x32xf32>
    %c0_52 = arith.constant 0 : index
    %c8_53 = arith.constant 8 : index
    %c0_54 = arith.constant 0 : index
    %79 = vector.load %arg17[%c0_52, %c8_53, %c0_54] : memref<2x144x32xf32, #tpu.memory_space<vmem>>, vector<2x128x32xf32>
    tpu.vector_store %arg17[%c0_52, %c8_53, %c0_54], %78 {strides = array<i32>} : memref<2x144x32xf32, #tpu.memory_space<vmem>>, vector<2x128x32xf32>,
    %c0_55 = arith.constant 0 : index
    %c0_56 = arith.constant 0 : index
    %c0_57 = arith.constant 0 : index
    %80 = vector.load %arg17[%c0_55, %c0_56, %c0_57] : memref<2x144x32xf32, #tpu.memory_space<vmem>>, vector<2x144x32xf32>
    %81 = arith.truncf %80 : vector<2x144x32xf32> to vector<2x144x32xbf16>
    %82 = vector.shape_cast %81 : vector<2x144x32xbf16> to vector<288x32xbf16>
    %c0_58 = arith.constant 0 : index
    %c0_59 = arith.constant 0 : index
    %83 = vector.load %arg9[%c0_58, %c0_59] : memref<32x160xbf16, #tpu.memory_space<vmem>>, vector<32x160xbf16>
    %cst_60 = arith.constant dense<0.000000e+00> : vector<288x160xf32>
    %84 = tpu.matmul %82, %83, %cst_60 {dimension_numbers = #tpu.dot_dimension_numbers<[1], [0], [0], [1], [0, 0, 1, 1], [], []>} : vector<288x32xbf16>, vector<32x160xbf16>, vector<288x160xf32> -> vector<288x160xf32>
    %85 = vector.shape_cast %84 : vector<288x160xf32> to vector<2x144x160xf32>
    %cst_61 = arith.constant 0.000000e+00 : f32
    %86 = vector.broadcast %cst_61 : f32 to vector<2x128x32xf32>
    %c0_62 = arith.constant 0 : index
    %c0_63 = arith.constant 0 : index
    %87 = vector.load %arg10[%c0_62, %c0_63] : memref<1x32xf32, #tpu.memory_space<vmem>>, vector<1x32xf32>
    %88 = vector.shape_cast %87 : vector<1x32xf32> to vector<1x1x32xf32>
    %89 = vector.broadcast %88 : vector<1x1x32xf32> to vector<2x128x32xf32>
    %90 = arith.addf %86, %89 : vector<2x128x32xf32>
    %91 = vector.extract_strided_slice %85 {offsets = [0, 6, 0], sizes = [2, 128, 32], strides = [1, 1, 1]} : vector<2x144x160xf32> to vector<2x128x32xf32>
    %92 = arith.addf %90, %91 : vector<2x128x32xf32>
    %93 = vector.extract_strided_slice %85 {offsets = [0, 7, 32], sizes = [2, 128, 32], strides = [1, 1, 1]} : vector<2x144x160xf32> to vector<2x128x32xf32>
    %94 = arith.addf %92, %93 : vector<2x128x32xf32>
    %95 = vector.extract_strided_slice %85 {offsets = [0, 8, 64], sizes = [2, 128, 32], strides = [1, 1, 1]} : vector<2x144x160xf32> to vector<2x128x32xf32>
    %96 = arith.addf %94, %95 : vector<2x128x32xf32>
    %97 = vector.extract_strided_slice %85 {offsets = [0, 9, 96], sizes = [2, 128, 32], strides = [1, 1, 1]} : vector<2x144x160xf32> to vector<2x128x32xf32>
    %98 = arith.addf %96, %97 : vector<2x128x32xf32>
    %99 = vector.extract_strided_slice %85 {offsets = [0, 10, 128], sizes = [2, 128, 32], strides = [1, 1, 1]} : vector<2x144x160xf32> to vector<2x128x32xf32>
    %100 = arith.addf %98, %99 : vector<2x128x32xf32>
    %cst_64 = arith.constant 0.000000e+00 : f32
    %101 = vector.broadcast %cst_64 : f32 to vector<2x128x32xf32>
    %102 = arith.maximumf %100, %101 : vector<2x128x32xf32>
    %c0_65 = arith.constant 0 : index
    %c0_66 = arith.constant 0 : index
    %c0_67 = arith.constant 0 : index
    %103 = vector.load %arg2[%c0_65, %c0_66, %c0_67] : memref<2x128x3xf32, #tpu.memory_space<vmem>>, vector<2x128x3xf32>
    %c0_68 = arith.constant 0 : index
    %c0_69 = arith.constant 0 : index
    %104 = vector.load %arg11[%c0_68, %c0_69] : memref<3x32xf32, #tpu.memory_space<vmem>>, vector<3x32xf32>
    %cst_70 = arith.constant 0.000000e+00 : f32
    %105 = vector.broadcast %cst_70 : f32 to vector<2x128x32xf32>
    %c0_71 = arith.constant 0 : index
    %c0_72 = arith.constant 0 : index
    %106 = vector.load %arg12[%c0_71, %c0_72] : memref<1x32xf32, #tpu.memory_space<vmem>>, vector<1x32xf32>
    %107 = vector.shape_cast %106 : vector<1x32xf32> to vector<1x1x32xf32>
    %108 = vector.broadcast %107 : vector<1x1x32xf32> to vector<2x128x32xf32>
    %109 = arith.addf %105, %108 : vector<2x128x32xf32>
    %110 = vector.extract_strided_slice %103 {offsets = [0, 0, 0], sizes = [2, 128, 1], strides = [1, 1, 1]} : vector<2x128x3xf32> to vector<2x128x1xf32>
    %111 = vector.extract_strided_slice %104 {offsets = [0, 0], sizes = [1, 32], strides = [1, 1]} : vector<3x32xf32> to vector<1x32xf32>
    %112 = vector.shape_cast %111 : vector<1x32xf32> to vector<32xf32>
    %113 = vector.shape_cast %112 : vector<32xf32> to vector<1x1x32xf32>
    %114 = vector.broadcast %110 : vector<2x128x1xf32> to vector<2x128x32xf32>
    %115 = vector.broadcast %113 : vector<1x1x32xf32> to vector<2x128x32xf32>
    %116 = arith.mulf %114, %115 : vector<2x128x32xf32>
    %117 = arith.addf %109, %116 : vector<2x128x32xf32>
    %118 = vector.extract_strided_slice %103 {offsets = [0, 0, 1], sizes = [2, 128, 1], strides = [1, 1, 1]} : vector<2x128x3xf32> to vector<2x128x1xf32>
    %119 = vector.extract_strided_slice %104 {offsets = [1, 0], sizes = [1, 32], strides = [1, 1]} : vector<3x32xf32> to vector<1x32xf32>
    %120 = vector.shape_cast %119 : vector<1x32xf32> to vector<32xf32>
    %121 = vector.shape_cast %120 : vector<32xf32> to vector<1x1x32xf32>
    %122 = vector.broadcast %118 : vector<2x128x1xf32> to vector<2x128x32xf32>
    %123 = vector.broadcast %121 : vector<1x1x32xf32> to vector<2x128x32xf32>
    %124 = arith.mulf %122, %123 : vector<2x128x32xf32>
    %125 = arith.addf %117, %124 : vector<2x128x32xf32>
    %126 = vector.extract_strided_slice %103 {offsets = [0, 0, 2], sizes = [2, 128, 1], strides = [1, 1, 1]} : vector<2x128x3xf32> to vector<2x128x1xf32>
    %127 = vector.extract_strided_slice %104 {offsets = [2, 0], sizes = [1, 32], strides = [1, 1]} : vector<3x32xf32> to vector<1x32xf32>
    %128 = vector.shape_cast %127 : vector<1x32xf32> to vector<32xf32>
    %129 = vector.shape_cast %128 : vector<32xf32> to vector<1x1x32xf32>
    %130 = vector.broadcast %126 : vector<2x128x1xf32> to vector<2x128x32xf32>
    %131 = vector.broadcast %129 : vector<1x1x32xf32> to vector<2x128x32xf32>
    %132 = arith.mulf %130, %131 : vector<2x128x32xf32>
    %133 = arith.addf %125, %132 : vector<2x128x32xf32>
    %cst_73 = arith.constant 0.000000e+00 : f32
    %134 = vector.broadcast %cst_73 : f32 to vector<2x128x32xf32>
    %135 = arith.maximumf %133, %134 : vector<2x128x32xf32>
    %136 = arith.truncf %135 : vector<2x128x32xf32> to vector<2x128x32xbf16>
    %137 = vector.shape_cast %136 : vector<2x128x32xbf16> to vector<256x32xbf16>
    %c0_74 = arith.constant 0 : index
    %c0_75 = arith.constant 0 : index
    %138 = vector.load %arg13[%c0_74, %c0_75] : memref<32x32xbf16, #tpu.memory_space<vmem>>, vector<32x32xbf16>
    %cst_76 = arith.constant dense<0.000000e+00> : vector<256x32xf32>
    %139 = tpu.matmul %137, %138, %cst_76 {dimension_numbers = #tpu.dot_dimension_numbers<[1], [0], [0], [1], [0, 0, 1, 1], [], []>} : vector<256x32xbf16>, vector<32x32xbf16>, vector<256x32xf32> -> vector<256x32xf32>
    %140 = vector.shape_cast %139 : vector<256x32xf32> to vector<2x128x32xf32>
    %c0_77 = arith.constant 0 : index
    %c0_78 = arith.constant 0 : index
    %141 = vector.load %arg14[%c0_77, %c0_78] : memref<1x32xf32, #tpu.memory_space<vmem>>, vector<1x32xf32>
    %142 = vector.shape_cast %141 : vector<1x32xf32> to vector<1x1x32xf32>
    %143 = vector.broadcast %142 : vector<1x1x32xf32> to vector<2x128x32xf32>
    %144 = arith.addf %140, %143 : vector<2x128x32xf32>
    %145 = arith.addf %102, %144 : vector<2x128x32xf32>
    %c0_79 = arith.constant 0 : index
    %c0_80 = arith.constant 0 : index
    %c0_81 = arith.constant 0 : index
    %146 = vector.load %arg15[%c0_79, %c0_80, %c0_81] : memref<2x128x32xf32, #tpu.memory_space<vmem>>, vector<2x128x32xf32>
    tpu.vector_store %arg15[%c0_79, %c0_80, %c0_81], %145 {strides = array<i32>} : memref<2x128x32xf32, #tpu.memory_space<vmem>>, vector<2x128x32xf32>,
    return
  }
  func.func @transform_0(%arg0: i32) -> (i32, i32, i32) {
    %c0_i32 = arith.constant 0 : i32
    %c0_i32_0 = arith.constant 0 : i32
    %c0_i32_1 = arith.constant 0 : i32
    return %arg0, %c0_i32, %c0_i32_0 : i32, i32, i32
  }
  func.func @transform_1(%arg0: i32) -> (i32, i32, i32) {
    %c0_i32 = arith.constant 0 : i32
    %c0_i32_0 = arith.constant 0 : i32
    %c0_i32_1 = arith.constant 0 : i32
    return %arg0, %c0_i32, %c0_i32_0 : i32, i32, i32
  }
  func.func @transform_2(%arg0: i32) -> (i32, i32) {
    %c0_i32 = arith.constant 0 : i32
    %c0_i32_0 = arith.constant 0 : i32
    %c0_i32_1 = arith.constant 0 : i32
    return %c0_i32, %c0_i32_0 : i32, i32
  }
  func.func @transform_3(%arg0: i32) -> (i32, i32) {
    %c0_i32 = arith.constant 0 : i32
    %c0_i32_0 = arith.constant 0 : i32
    %c0_i32_1 = arith.constant 0 : i32
    return %c0_i32, %c0_i32_0 : i32, i32
  }
  func.func @transform_4(%arg0: i32) -> (i32, i32) {
    %c0_i32 = arith.constant 0 : i32
    %c0_i32_0 = arith.constant 0 : i32
    %c0_i32_1 = arith.constant 0 : i32
    return %c0_i32, %c0_i32_0 : i32, i32
  }
  func.func @transform_5(%arg0: i32) -> (i32, i32) {
    %c0_i32 = arith.constant 0 : i32
    %c0_i32_0 = arith.constant 0 : i32
    %c0_i32_1 = arith.constant 0 : i32
    return %c0_i32, %c0_i32_0 : i32, i32
  }
  func.func @transform_6(%arg0: i32) -> (i32, i32) {
    %c0_i32 = arith.constant 0 : i32
    %c0_i32_0 = arith.constant 0 : i32
    %c0_i32_1 = arith.constant 0 : i32
    return %c0_i32, %c0_i32_0 : i32, i32
  }
  func.func @transform_7(%arg0: i32) -> (i32, i32) {
    %c0_i32 = arith.constant 0 : i32
    %c0_i32_0 = arith.constant 0 : i32
    %c0_i32_1 = arith.constant 0 : i32
    return %c0_i32, %c0_i32_0 : i32, i32
  }
  func.func @transform_8(%arg0: i32) -> (i32, i32) {
    %c0_i32 = arith.constant 0 : i32
    %c0_i32_0 = arith.constant 0 : i32
    %c0_i32_1 = arith.constant 0 : i32
    return %c0_i32, %c0_i32_0 : i32, i32
  }
  func.func @transform_9(%arg0: i32) -> (i32, i32) {
    %c0_i32 = arith.constant 0 : i32
    %c0_i32_0 = arith.constant 0 : i32
    %c0_i32_1 = arith.constant 0 : i32
    return %c0_i32, %c0_i32_0 : i32, i32
  }
  func.func @transform_10(%arg0: i32) -> (i32, i32) {
    %c0_i32 = arith.constant 0 : i32
    %c0_i32_0 = arith.constant 0 : i32
    %c0_i32_1 = arith.constant 0 : i32
    return %c0_i32, %c0_i32_0 : i32, i32
  }
  func.func @transform_11(%arg0: i32) -> (i32, i32) {
    %c0_i32 = arith.constant 0 : i32
    %c0_i32_0 = arith.constant 0 : i32
    %c0_i32_1 = arith.constant 0 : i32
    return %c0_i32, %c0_i32_0 : i32, i32
  }
  func.func @transform_12(%arg0: i32) -> (i32, i32) {
    %c0_i32 = arith.constant 0 : i32
    %c0_i32_0 = arith.constant 0 : i32
    %c0_i32_1 = arith.constant 0 : i32
    return %c0_i32, %c0_i32_0 : i32, i32
  }
  func.func @transform_13(%arg0: i32) -> (i32, i32) {
    %c0_i32 = arith.constant 0 : i32
    %c0_i32_0 = arith.constant 0 : i32
    %c0_i32_1 = arith.constant 0 : i32
    return %c0_i32, %c0_i32_0 : i32, i32
  }
  func.func @transform_14(%arg0: i32) -> (i32, i32, i32) {
    %c0_i32 = arith.constant 0 : i32
    %c0_i32_0 = arith.constant 0 : i32
    %c0_i32_1 = arith.constant 0 : i32
    return %arg0, %c0_i32, %c0_i32_0 : i32, i32, i32
  }
}

</mosaic_0001>

<llo_original>
// kernel: tpu_custom_call.1
$region0: #{tpu_custom_call.1}
  #allocation0 [shape = 'u32[]', space=smem, size = 0x4, offset = 0x4, fixed_abs, tag = 'smem constant byte address 0x4 - core index']
  #allocation1 [shape = 'u32[144,128]{1,0:T(1,128)}', space=vmem, size = 0x12000, scoped, tag = 'internal scratch']
  #allocation2 [shape = 'f32[2,144,4]{2,1,0:T(8,128)}', space=vmem, size = 0x24000, scoped, tag = 'scratch operand']
  #allocation3 [shape = 'f32[2,144,32]{2,1,0:T(8,128)}', space=vmem, size = 0x24000, scoped, tag = 'scratch operand']
  %s0 = inlined_call_operand.vmem [shape: f32[2,128,4], index: 0, kind: input, shape index: {}]
  %s1 = inlined_call_operand.vmem [shape: f32[2,128,3], index: 1, kind: input, shape index: {}]
  %s2 = inlined_call_operand.vmem [shape: bf16[4,160], index: 2, kind: input, shape index: {}]
  %s3 = inlined_call_operand.vmem [shape: f32[1,32], index: 3, kind: input, shape index: {}]
  %s4 = inlined_call_operand.vmem [shape: bf16[32,160], index: 4, kind: input, shape index: {}]
  %s5 = inlined_call_operand.vmem [shape: f32[1,32], index: 5, kind: input, shape index: {}]
  %s6 = inlined_call_operand.vmem [shape: bf16[32,160], index: 6, kind: input, shape index: {}]
  %s7 = inlined_call_operand.vmem [shape: f32[1,32], index: 7, kind: input, shape index: {}]
  %s8 = inlined_call_operand.vmem [shape: bf16[32,160], index: 8, kind: input, shape index: {}]
  %s9 = inlined_call_operand.vmem [shape: f32[1,32], index: 9, kind: input, shape index: {}]
  %s10 = inlined_call_operand.vmem [shape: f32[3,32], index: 10, kind: input, shape index: {}]
  %s11 = inlined_call_operand.vmem [shape: f32[1,32], index: 11, kind: input, shape index: {}]
  %s12 = inlined_call_operand.vmem [shape: bf16[32,32], index: 12, kind: input, shape index: {}]
  %s13 = inlined_call_operand.vmem [shape: f32[1,32], index: 13, kind: input, shape index: {}]
  %s14 = inlined_call_operand.vmem [shape: f32[2,128,32], index: 14, kind: output, shape index: {}]
  %s15 = sld [smem:[#allocation0]]
  $region66: #{tpu_custom_call.1} parent=0
    _
  %s17 = ssub.s32 1, %s15
  %s18 = scalar_select 0, %s17, %s15
  // Predicated region
  $region2: #{tpu_custom_call.1} parent=0 // pred_check
    _
  $region3: #{tpu_custom_call.1} parent=0 // pred_check_branch
    %20 = sbr.rel (0) target = $region5
  $region4: #{tpu_custom_call.1} parent=0 // pred_region
    _
  $region5: #{tpu_custom_call.1} parent=0 // pred_fallthru
    _
  // Predicated region
  $region6: #{tpu_custom_call.1} parent=0 // pred_check
    _
  $region7: #{tpu_custom_call.1} parent=0 // pred_check_branch
    %22 = sbr.rel (0) target = $region9
  $region8: #{tpu_custom_call.1} parent=0 // pred_region
    _
  $region9: #{tpu_custom_call.1} parent=0 // pred_fallthru
    _
  // Predicated region
  $region10: #{tpu_custom_call.1} parent=0 // pred_check
    _
  $region11: #{tpu_custom_call.1} parent=0 // pred_check_branch
    %24 = sbr.rel (0) target = $region13
  $region12: #{tpu_custom_call.1} parent=0 // pred_region
    _
  $region13: #{tpu_custom_call.1} parent=0 // pred_fallthru
    _
  // Predicated region
  $region14: #{tpu_custom_call.1} parent=0 // pred_check
    _
  $region15: #{tpu_custom_call.1} parent=0 // pred_check_branch
    %26 = sbr.rel (0) target = $region17
  $region16: #{tpu_custom_call.1} parent=0 // pred_region
    _
  $region17: #{tpu_custom_call.1} parent=0 // pred_fallthru
    _
  // Predicated region
  $region18: #{tpu_custom_call.1} parent=0 // pred_check
    _
  $region19: #{tpu_custom_call.1} parent=0 // pred_check_branch
    %28 = sbr.rel (0) target = $region21
  $region20: #{tpu_custom_call.1} parent=0 // pred_region
    _
  $region21: #{tpu_custom_call.1} parent=0 // pred_fallthru
    _
  // Predicated region
  $region22: #{tpu_custom_call.1} parent=0 // pred_check
    _
  $region23: #{tpu_custom_call.1} parent=0 // pred_check_branch
    %30 = sbr.rel (0) target = $region25
  $region24: #{tpu_custom_call.1} parent=0 // pred_region
    _
  $region25: #{tpu_custom_call.1} parent=0 // pred_fallthru
    _
  // Predicated region
  $region26: #{tpu_custom_call.1} parent=0 // pred_check
    _
  $region27: #{tpu_custom_call.1} parent=0 // pred_check_branch
    %32 = sbr.rel (0) target = $region29
  $region28: #{tpu_custom_call.1} parent=0 // pred_region
    _
  $region29: #{tpu_custom_call.1} parent=0 // pred_fallthru
    _
  // Predicated region
  $region30: #{tpu_custom_call.1} parent=0 // pred_check
    _
  $region31: #{tpu_custom_call.1} parent=0 // pred_check_branch
    %34 = sbr.rel (0) target = $region33
  $region32: #{tpu_custom_call.1} parent=0 // pred_region
    _
  $region33: #{tpu_custom_call.1} parent=0 // pred_fallthru
    _
  // Predicated region
  $region34: #{tpu_custom_call.1} parent=0 // pred_check
    _
  $region35: #{tpu_custom_call.1} parent=0 // pred_check_branch
    %36 = sbr.rel (0) target = $region37
  $region36: #{tpu_custom_call.1} parent=0 // pred_region
    _
  $region37: #{tpu_custom_call.1} parent=0 // pred_fallthru
    _
  // Predicated region
  $region38: #{tpu_custom_call.1} parent=0 // pred_check
    _
  $region39: #{tpu_custom_call.1} parent=0 // pred_check_branch
    %38 = sbr.rel (0) target = $region41
  $region40: #{tpu_custom_call.1} parent=0 // pred_region
    _
  $region41: #{tpu_custom_call.1} parent=0 // pred_fallthru
    _
  // Predicated region
  $region42: #{tpu_custom_call.1} parent=0 // pred_check
    _
  $region43: #{tpu_custom_call.1} parent=0 // pred_check_branch
    %40 = sbr.rel (0) target = $region45
  $region44: #{tpu_custom_call.1} parent=0 // pred_region
    _
  $region45: #{tpu_custom_call.1} parent=0 // pred_fallthru
    _
  // Predicated region
  $region46: #{tpu_custom_call.1} parent=0 // pred_check
    _
  $region47: #{tpu_custom_call.1} parent=0 // pred_check_branch
    %42 = sbr.rel (0) target = $region49
  $region48: #{tpu_custom_call.1} parent=0 // pred_region
    _
  $region49: #{tpu_custom_call.1} parent=0 // pred_fallthru
    _
  // Predicated region
  $region50: #{tpu_custom_call.1} parent=0 // pred_check
    _
  $region51: #{tpu_custom_call.1} parent=0 // pred_check_branch
    %44 = sbr.rel (0) target = $region53
  $region52: #{tpu_custom_call.1} parent=0 // pred_region
    _
  $region53: #{tpu_custom_call.1} parent=0 // pred_fallthru
    _
  // Predicated region
  $region54: #{tpu_custom_call.1} parent=0 // pred_check
    _
  $region55: #{tpu_custom_call.1} parent=0 // pred_check_branch
    %46 = sbr.rel (0) target = $region57
  $region56: #{tpu_custom_call.1} parent=0 // pred_region
    _
  $region57: #{tpu_custom_call.1} parent=0 // pred_fallthru
    _
  %vm48 = vcmask 31744
  %49 = vst.msk [vmem:[#allocation2] sm:$0xff] %vm48, 0.0
  %50 = vst.msk [vmem:[#allocation2 + $0x90] sm:$0xff] %vm48, 0.0
  %51 = vst.msk [vmem:[#allocation2 + $0x88] sm:$0xff] %vm48, 0.0
  %52 = vst.msk [vmem:[#allocation2 + $0x118] sm:$0xff] %vm48, 0.0
  %v53 = vld [vmem:[%s0] sm:$0xff]
  %v54 = vld [vmem:[%s0 + $0x8] sm:$0xff]
  %v55 = vld [vmem:[%s0 + $0x10] sm:$0xff]
  %v56 = vld [vmem:[%s0 + $0x18] sm:$0xff]
  %v57 = vld [vmem:[%s0 + $0x20] sm:$0xff]
  %v58 = vld [vmem:[%s0 + $0x28] sm:$0xff]
  %v59 = vld [vmem:[%s0 + $0x30] sm:$0xff]
  %v60 = vld [vmem:[%s0 + $0x38] sm:$0xff]
  %v61 = vld [vmem:[%s0 + $0x40] sm:$0xff]
  %v62 = vld [vmem:[%s0 + $0x48] sm:$0xff]
  %v63 = vld [vmem:[%s0 + $0x50] sm:$0xff]
  %v64 = vld [vmem:[%s0 + $0x58] sm:$0xff]
  %v65 = vld [vmem:[%s0 + $0x60] sm:$0xff]
  %v66 = vld [vmem:[%s0 + $0x68] sm:$0xff]
  %v67 = vld [vmem:[%s0 + $0x70] sm:$0xff]
  %v68 = vld [vmem:[%s0 + $0x78] sm:$0xff]
  %v69 = vld [vmem:[%s0 + $0x80] sm:$0xff]
  %v70 = vld [vmem:[%s0 + $0x88] sm:$0xff]
  %v71 = vld [vmem:[%s0 + $0x90] sm:$0xff]
  %v72 = vld [vmem:[%s0 + $0x98] sm:$0xff]
  %v73 = vld [vmem:[%s0 + $0xa0] sm:$0xff]
  %v74 = vld [vmem:[%s0 + $0xa8] sm:$0xff]
  %v75 = vld [vmem:[%s0 + $0xb0] sm:$0xff]
  %v76 = vld [vmem:[%s0 + $0xb8] sm:$0xff]
  %v77 = vld [vmem:[%s0 + $0xc0] sm:$0xff]
  %v78 = vld [vmem:[%s0 + $0xc8] sm:$0xff]
  %v79 = vld [vmem:[%s0 + $0xd0] sm:$0xff]
  %v80 = vld [vmem:[%s0 + $0xd8] sm:$0xff]
  %v81 = vld [vmem:[%s0 + $0xe0] sm:$0xff]
  %v82 = vld [vmem:[%s0 + $0xe8] sm:$0xff]
  %v83 = vld [vmem:[%s0 + $0xf0] sm:$0xff]
  %v84 = vld [vmem:[%s0 + $0xf8] sm:$0xff]
  %85 = vst.msk [vmem:[#allocation2 + $0x8] sm:$0xff] %vm48, %v53
  %86 = vst.msk [vmem:[#allocation2 + $0x10] sm:$0xff] %vm48, %v54
  %87 = vst.msk [vmem:[#allocation2 + $0x18] sm:$0xff] %vm48, %v55
  %88 = vst.msk [vmem:[#allocation2 + $0x20] sm:$0xff] %vm48, %v56
  %89 = vst.msk [vmem:[#allocation2 + $0x28] sm:$0xff] %vm48, %v57
  %90 = vst.msk [vmem:[#allocation2 + $0x30] sm:$0xff] %vm48, %v58
  %91 = vst.msk [vmem:[#allocation2 + $0x38] sm:$0xff] %vm48, %v59
  %92 = vst.msk [vmem:[#allocation2 + $0x40] sm:$0xff] %vm48, %v60
  %93 = vst.msk [vmem:[#allocation2 + $0x48] sm:$0xff] %vm48, %v61
  %94 = vst.msk [vmem:[#allocation2 + $0x50] sm:$0xff] %vm48, %v62
  %95 = vst.msk [vmem:[#allocation2 + $0x58] sm:$0xff] %vm48, %v63
  %96 = vst.msk [vmem:[#allocation2 + $0x60] sm:$0xff] %vm48, %v64
  %97 = vst.msk [vmem:[#allocation2 + $0x68] sm:$0xff] %vm48, %v65
  %98 = vst.msk [vmem:[#allocation2 + $0x70] sm:$0xff] %vm48, %v66
  %99 = vst.msk [vmem:[#allocation2 + $0x78] sm:$0xff] %vm48, %v67
  %100 = vst.msk [vmem:[#allocation2 + $0x80] sm:$0xff] %vm48, %v68
  %101 = vst.msk [vmem:[#allocation2 + $0x98] sm:$0xff] %vm48, %v69
  %102 = vst.msk [vmem:[#allocation2 + $0xa0] sm:$0xff] %vm48, %v70
  %103 = vst.msk [vmem:[#allocation2 + $0xa8] sm:$0xff] %vm48, %v71
  %104 = vst.msk [vmem:[#allocation2 + $0xb0] sm:$0xff] %vm48, %v72
  %105 = vst.msk [vmem:[#allocation2 + $0xb8] sm:$0xff] %vm48, %v73
  %106 = vst.msk [vmem:[#allocation2 + $0xc0] sm:$0xff] %vm48, %v74
  %107 = vst.msk [vmem:[#allocation2 + $0xc8] sm:$0xff] %vm48, %v75
  %108 = vst.msk [vmem:[#allocation2 + $0xd0] sm:$0xff] %vm48, %v76
  %109 = vst.msk [vmem:[#allocation2 + $0xd8] sm:$0xff] %vm48, %v77
  %110 = vst.msk [vmem:[#allocation2 + $0xe0] sm:$0xff] %vm48, %v78
  %111 = vst.msk [vmem:[#allocation2 + $0xe8] sm:$0xff] %vm48, %v79
  %112 = vst.msk [vmem:[#allocation2 + $0xf0] sm:$0xff] %vm48, %v80
  %113 = vst.msk [vmem:[#allocation2 + $0xf8] sm:$0xff] %vm48, %v81
  %114 = vst.msk [vmem:[#allocation2 + $0x100] sm:$0xff] %vm48, %v82
  %115 = vst.msk [vmem:[#allocation2 + $0x108] sm:$0xff] %vm48, %v83
  %116 = vst.msk [vmem:[#allocation2 + $0x110] sm:$0xff] %vm48, %v84
  %vm117 = vcmask 261120
  %118 = vst.msk [vmem:[#allocation3] sm:$0xff] %vm117, 0.0
  %119 = vst.msk [vmem:[#allocation3 + $0x90] sm:$0xff] %vm117, 0.0
  %120 = vst.msk [vmem:[#allocation3 + $0x88] sm:$0xff] %vm117, 0.0
  %121 = vst.msk [vmem:[#allocation3 + $0x118] sm:$0xff] %vm117, 0.0
  %v122 = vld [vmem:[#allocation2] sm:$0xff]
  %v123 = vld [vmem:[#allocation2 + $0x8] sm:$0xff]
  %v124 = vld [vmem:[#allocation2 + $0x10] sm:$0xff]
  %v125 = vld [vmem:[#allocation2 + $0x18] sm:$0xff]
  %v126 = vld [vmem:[#allocation2 + $0x20] sm:$0xff]
  %v127 = vld [vmem:[#allocation2 + $0x28] sm:$0xff]
  %v128 = vld [vmem:[#allocation2 + $0x30] sm:$0xff]
  %v129 = vld [vmem:[#allocation2 + $0x38] sm:$0xff]
  %v130 = vld [vmem:[#allocation2 + $0x40] sm:$0xff]
  %v131 = vld [vmem:[#allocation2 + $0x48] sm:$0xff]
  %v132 = vld [vmem:[#allocation2 + $0x50] sm:$0xff]
  %v133 = vld [vmem:[#allocation2 + $0x58] sm:$0xff]
  %v134 = vld [vmem:[#allocation2 + $0x60] sm:$0xff]
  %v135 = vld [vmem:[#allocation2 + $0x68] sm:$0xff]
  %v136 = vld [vmem:[#allocation2 + $0x70] sm:$0xff]
  %v137 = vld [vmem:[#allocation2 + $0x78] sm:$0xff]
  %v138 = vld [vmem:[#allocation2 + $0x80] sm:$0xff]
  %v139 = vld [vmem:[#allocation2 + $0x88] sm:$0xff]
  %v140 = vld [vmem:[#allocation2 + $0x90] sm:$0xff]
  %v141 = vld [vmem:[#allocation2 + $0x98] sm:$0xff]
  %v142 = vld [vmem:[#allocation2 + $0xa0] sm:$0xff]
  %v143 = vld [vmem:[#allocation2 + $0xa8] sm:$0xff]
  %v144 = vld [vmem:[#allocation2 + $0xb0] sm:$0xff]
  %v145 = vld [vmem:[#allocation2 + $0xb8] sm:$0xff]
  %v146 = vld [vmem:[#allocation2 + $0xc0] sm:$0xff]
  %v147 = vld [vmem:[#allocation2 + $0xc8] sm:$0xff]
  %v148 = vld [vmem:[#allocation2 + $0xd0] sm:$0xff]
  %v149 = vld [vmem:[#allocation2 + $0xd8] sm:$0xff]
  %v150 = vld [vmem:[#allocation2 + $0xe0] sm:$0xff]
  %v151 = vld [vmem:[#allocation2 + $0xe8] sm:$0xff]
  %v152 = vld [vmem:[#allocation2 + $0xf0] sm:$0xff]
  %v153 = vld [vmem:[#allocation2 + $0xf8] sm:$0xff]
  %v154 = vld [vmem:[#allocation2 + $0x100] sm:$0xff]
  %v155 = vld [vmem:[#allocation2 + $0x108] sm:$0xff]
  %v156 = vld [vmem:[#allocation2 + $0x110] sm:$0xff]
  %v157 = vld [vmem:[#allocation2 + $0x118] sm:$0xff]
  %v158 = vpack.c.bf16 %v123, %v122
  %v159 = vpack.c.bf16 %v125, %v124
  %v160 = vpack.c.bf16 %v127, %v126
  %v161 = vpack.c.bf16 %v129, %v128
  %v162 = vpack.c.bf16 %v131, %v130
  %v163 = vpack.c.bf16 %v133, %v132
  %v164 = vpack.c.bf16 %v135, %v134
  %v165 = vpack.c.bf16 %v137, %v136
  %v166 = vpack.c.bf16 %v139, %v138
  %v167 = vpack.c.bf16 %v141, %v140
  %v168 = vpack.c.bf16 %v143, %v142
  %v169 = vpack.c.bf16 %v145, %v144
  %v170 = vpack.c.bf16 %v147, %v146
  %v171 = vpack.c.bf16 %v149, %v148
  %v172 = vpack.c.bf16 %v151, %v150
  %v173 = vpack.c.bf16 %v153, %v152
  %v174 = vpack.c.bf16 %v155, %v154
  %v175 = vpack.c.bf16 %v157, %v156
  %v176 = vld [vmem:[%s2] sm:$0xf]
  %v179 = vunpack.c.l.s4 1983009808
  %v180 = vunpack.c.0.s8 %v179
  %v181 = vlaneseq
  %v182 = vshrl.u32 %v181, 7
  %v183 = vsub.s32 %v180, %v182
  %v184 = vrot.slane %v176, %v183
  %v185 = vcombine.high %v184, %v184
  %v187 = vsel %vm48, %v158, 0
  %v190 = vsel %vm48, %v159, 0
  %v193 = vsel %vm48, %v160, 0
  %v196 = vsel %vm48, %v161, 0
  %v199 = vsel %vm48, %v162, 0
  %v202 = vsel %vm48, %v163, 0
  %v205 = vsel %vm48, %v164, 0
  %v208 = vsel %vm48, %v165, 0
  %v211 = vsel %vm48, %v166, 0
  %v214 = vsel %vm48, %v167, 0
  %v217 = vsel %vm48, %v168, 0
  %v220 = vsel %vm48, %v169, 0
  %v223 = vsel %vm48, %v170, 0
  %v226 = vsel %vm48, %v171, 0
  %v229 = vsel %vm48, %v172, 0
  %v232 = vsel %vm48, %v173, 0
  %v235 = vsel %vm48, %v174, 0
  %v238 = vsel %vm48, %v175, 0
  %vm240 = vcmask 1041408
  %v242 = vsel %vm240, %v184, 0
  %v245 = vsel %vm240, %v185, 0
  %247 = vmatprep.subr.bf16.mxu0 %v245
  %248 = vmatpush1.bf16.msra.mxu0 %v242
  %249 = vmatprep.subr.bf16.mxu0 0
  %250 = vmatpush1.bf16.msra.mxu0 0
  %251 = vmatprep.subr.bf16.mxu0 0
  %252 = vmatpush1.bf16.msra.mxu0 0
  %253 = vmatprep.subr.bf16.mxu0 0
  %254 = vmatpush1.bf16.msra.mxu0 0
  %255 = vmatprep.subr.bf16.mxu0 0
  %256 = vmatpush1.bf16.msra.mxu0 0
  %257 = vmatprep.subr.bf16.mxu0 0
  %258 = vmatpush1.bf16.msra.mxu0 0
  %259 = vmatprep.subr.bf16.mxu0 0
  %260 = vmatpush1.bf16.msra.mxu0 0
  %261 = vmatprep.subr.bf16.mxu0 0
  %262 = vmatpush1.bf16.msra.mxu0 0
  %263 = vmatprep.subr.bf16.mxu0 0
  %264 = vmatpush1.bf16.msra.mxu0 0
  %265 = vmatprep.subr.bf16.mxu0 0
  %266 = vmatpush1.bf16.msra.mxu0 0
  %267 = vmatprep.subr.bf16.mxu0 0
  %268 = vmatpush1.bf16.msra.mxu0 0
  %269 = vmatprep.subr.bf16.mxu0 0
  %270 = vmatpush1.bf16.msra.mxu0 0
  %271 = vmatprep.subr.bf16.mxu0 0
  %272 = vmatpush1.bf16.msra.mxu0 0
  %273 = vmatprep.subr.bf16.mxu0 0
  %274 = vmatpush1.bf16.msra.mxu0 0
  %275 = vmatprep.subr.bf16.mxu0 0
  %276 = vmatpush1.bf16.msra.mxu0 0
  %277 = vmatprep.subr.bf16.mxu0 0
  %278 = vmatpush1.bf16.msra.mxu0 0
  %279 = vmatprep.mubr.bf16.mxu0 0
  %280 = vmatmul.mubr.bf16.gmra.mrb[0].mxu0 %v187
  %v281 = vpop.f32.mrb[0].mxu0
  %v282 = vadd.f32 0.0, %v281
  %v283 = vpop.f32.mrb[0].mxu0
  %v284 = vpop.f32.mrb[0].mxu0
  %v285 = vadd.f32 0.0, %v284
  %v286 = vpop.f32.mrb[0].mxu0
  %v287 = vadd.f32 0.0, %v286
  %288 = vmatprep.mubr.bf16.mxu0 0
  %289 = vmatmul.mubr.bf16.gmra.mrb[0].mxu0 %v190
  %v290 = vpop.f32.mrb[0].mxu0
  %v291 = vadd.f32 0.0, %v290
  %v292 = vpop.f32.mrb[0].mxu0
  %v293 = vadd.f32 0.0, %v292
  %v294 = vpop.f32.mrb[0].mxu0
  %v295 = vadd.f32 0.0, %v294
  %v296 = vpop.f32.mrb[0].mxu0
  %v297 = vadd.f32 0.0, %v296
  %298 = vmatprep.mubr.bf16.mxu0 0
  %299 = vmatmul.mubr.bf16.gmra.mrb[0].mxu0 %v193
  %v300 = vpop.f32.mrb[0].mxu0
  %v301 = vadd.f32 0.0, %v300
  %v302 = vpop.f32.mrb[0].mxu0
  %v303 = vadd.f32 0.0, %v302
  %v304 = vpop.f32.mrb[0].mxu0
  %v305 = vadd.f32 0.0, %v304
  %v306 = vpop.f32.mrb[0].mxu0
  %v307 = vadd.f32 0.0, %v306
  %308 = vmatprep.mubr.bf16.mxu0 0
  %309 = vmatmul.mubr.bf16.gmra.mrb[0].mxu0 %v196
  %v310 = vpop.f32.mrb[0].mxu0
  %v311 = vadd.f32 0.0, %v310
  %v312 = vpop.f32.mrb[0].mxu0
  %v313 = vadd.f32 0.0, %v312
  %v314 = vpop.f32.mrb[0].mxu0
  %v315 = vadd.f32 0.0, %v314
  %v316 = vpop.f32.mrb[0].mxu0
  %v317 = vadd.f32 0.0, %v316
  %318 = vmatprep.mubr.bf16.mxu0 0
  %319 = vmatmul.mubr.bf16.gmra.mrb[0].mxu0 %v199
  %v320 = vpop.f32.mrb[0].mxu0
  %v321 = vadd.f32 0.0, %v320
  %v322 = vpop.f32.mrb[0].mxu0
  %v323 = vadd.f32 0.0, %v322
  %v324 = vpop.f32.mrb[0].mxu0
  %v325 = vadd.f32 0.0, %v324
  %v326 = vpop.f32.mrb[0].mxu0
  %v327 = vadd.f32 0.0, %v326
  %328 = vmatprep.mubr.bf16.mxu0 0
  %329 = vmatmul.mubr.bf16.gmra.mrb[0].mxu0 %v202
  %v330 = vpop.f32.mrb[0].mxu0
  %v331 = vadd.f32 0.0, %v330
  %v332 = vpop.f32.mrb[0].mxu0
  %v333 = vadd.f32 0.0, %v332
  %v334 = vpop.f32.mrb[0].mxu0
  %v335 = vadd.f32 0.0, %v334
  %v336 = vpop.f32.mrb[0].mxu0
  %v337 = vadd.f32 0.0, %v336
  %338 = vmatprep.mubr.bf16.mxu0 0
  %339 = vmatmul.mubr.bf16.gmra.mrb[0].mxu0 %v205
  %v340 = vpop.f32.mrb[0].mxu0
  %v341 = vadd.f32 0.0, %v340
  %v342 = vpop.f32.mrb[0].mxu0
  %v343 = vadd.f32 0.0, %v342
  %v344 = vpop.f32.mrb[0].mxu0
  %v345 = vadd.f32 0.0, %v344
  %v346 = vpop.f32.mrb[0].mxu0
  %v347 = vadd.f32 0.0, %v346
  %348 = vmatprep.mubr.bf16.mxu0 0
  %349 = vmatmul.mubr.bf16.gmra.mrb[0].mxu0 %v208
  %v350 = vpop.f32.mrb[0].mxu0
  %v351 = vadd.f32 0.0, %v350
  %v352 = vpop.f32.mrb[0].mxu0
  %v353 = vadd.f32 0.0, %v352
  %v354 = vpop.f32.mrb[0].mxu0
  %v355 = vadd.f32 0.0, %v354
  %v356 = vpop.f32.mrb[0].mxu0
  %v357 = vadd.f32 0.0, %v356
  %358 = vmatprep.mubr.bf16.mxu0 0
  %359 = vmatmul.mubr.bf16.gmra.mrb[0].mxu0 %v211
  %v360 = vpop.f32.mrb[0].mxu0
  %v361 = vadd.f32 0.0, %v360
  %v362 = vpop.f32.mrb[0].mxu0
  %v363 = vadd.f32 0.0, %v362
  %v364 = vpop.f32.mrb[0].mxu0
  %v365 = vadd.f32 0.0, %v364
  %v366 = vpop.f32.mrb[0].mxu0
  %v367 = vadd.f32 0.0, %v366
  %368 = vmatprep.mubr.bf16.mxu0 0
  %369 = vmatmul.mubr.bf16.gmra.mrb[0].mxu0 %v214
  %v370 = vpop.f32.mrb[0].mxu0
  %v371 = vadd.f32 0.0, %v370
  %v372 = vpop.f32.mrb[0].mxu0
  %v373 = vpop.f32.mrb[0].mxu0
  %v374 = vadd.f32 0.0, %v373
  %v375 = vpop.f32.mrb[0].mxu0
  %v376 = vadd.f32 0.0, %v375
  %377 = vmatprep.mubr.bf16.mxu0 0
  %378 = vmatmul.mubr.bf16.gmra.mrb[0].mxu0 %v217
  %v379 = vpop.f32.mrb[0].mxu0
  %v380 = vadd.f32 0.0, %v379
  %v381 = vpop.f32.mrb[0].mxu0
  %v382 = vadd.f32 0.0, %v381
  %v383 = vpop.f32.mrb[0].mxu0
  %v384 = vadd.f32 0.0, %v383
  %v385 = vpop.f32.mrb[0].mxu0
  %v386 = vadd.f32 0.0, %v385
  %387 = vmatprep.mubr.bf16.mxu0 0
  %388 = vmatmul.mubr.bf16.gmra.mrb[0].mxu0 %v220
  %v389 = vpop.f32.mrb[0].mxu0
  %v390 = vadd.f32 0.0, %v389
  %v391 = vpop.f32.mrb[0].mxu0
  %v392 = vadd.f32 0.0, %v391
  %v393 = vpop.f32.mrb[0].mxu0
  %v394 = vadd.f32 0.0, %v393
  %v395 = vpop.f32.mrb[0].mxu0
  %v396 = vadd.f32 0.0, %v395
  %397 = vmatprep.mubr.bf16.mxu0 0
  %398 = vmatmul.mubr.bf16.gmra.mrb[0].mxu0 %v223
  %v399 = vpop.f32.mrb[0].mxu0
  %v400 = vadd.f32 0.0, %v399
  %v401 = vpop.f32.mrb[0].mxu0
  %v402 = vadd.f32 0.0, %v401
  %v403 = vpop.f32.mrb[0].mxu0
  %v404 = vadd.f32 0.0, %v403
  %v405 = vpop.f32.mrb[0].mxu0
  %v406 = vadd.f32 0.0, %v405
  %407 = vmatprep.mubr.bf16.mxu0 0
  %408 = vmatmul.mubr.bf16.gmra.mrb[0].mxu0 %v226
  %v409 = vpop.f32.mrb[0].mxu0
  %v410 = vadd.f32 0.0, %v409
  %v411 = vpop.f32.mrb[0].mxu0
  %v412 = vadd.f32 0.0, %v411
  %v413 = vpop.f32.mrb[0].mxu0
  %v414 = vadd.f32 0.0, %v413
  %v415 = vpop.f32.mrb[0].mxu0
  %v416 = vadd.f32 0.0, %v415
  %417 = vmatprep.mubr.bf16.mxu0 0
  %418 = vmatmul.mubr.bf16.gmra.mrb[0].mxu0 %v229
  %v419 = vpop.f32.mrb[0].mxu0
  %v420 = vadd.f32 0.0, %v419
  %v421 = vpop.f32.mrb[0].mxu0
  %v422 = vadd.f32 0.0, %v421
  %v423 = vpop.f32.mrb[0].mxu0
  %v424 = vadd.f32 0.0, %v423
  %v425 = vpop.f32.mrb[0].mxu0
  %v426 = vadd.f32 0.0, %v425
  %427 = vmatprep.mubr.bf16.mxu0 0
  %428 = vmatmul.mubr.bf16.gmra.mrb[0].mxu0 %v232
  %v429 = vpop.f32.mrb[0].mxu0
  %v430 = vadd.f32 0.0, %v429
  %v431 = vpop.f32.mrb[0].mxu0
  %v432 = vadd.f32 0.0, %v431
  %v433 = vpop.f32.mrb[0].mxu0
  %v434 = vadd.f32 0.0, %v433
  %v435 = vpop.f32.mrb[0].mxu0
  %v436 = vadd.f32 0.0, %v435
  %437 = vmatprep.mubr.bf16.mxu0 0
  %438 = vmatmul.mubr.bf16.gmra.mrb[0].mxu0 %v235
  %v439 = vpop.f32.mrb[0].mxu0
  %v440 = vadd.f32 0.0, %v439
  %v441 = vpop.f32.mrb[0].mxu0
  %v442 = vadd.f32 0.0, %v441
  %v443 = vpop.f32.mrb[0].mxu0
  %v444 = vadd.f32 0.0, %v443
  %v445 = vpop.f32.mrb[0].mxu0
  %v446 = vadd.f32 0.0, %v445
  %447 = vmatprep.mubr.bf16.mxu0 0
  %448 = vmatmul.mubr.bf16.gmra.mrb[0].mxu0 %v238
  %v449 = vpop.f32.mrb[0].mxu0
  %v450 = vadd.f32 0.0, %v449
  %v451 = vpop.f32.mrb[0].mxu0
  %v452 = vadd.f32 0.0, %v451
  %v453 = vpop.f32.mrb[0].mxu0
  %v454 = vadd.f32 0.0, %v453
  %v455 = vpop.f32.mrb[0].mxu0
  %v456 = vadd.f32 0.0, %v455
  %457 = vdwg.mxu0
  %v458 = vld [vmem:[%s3] sm:$0x1]
  %v460 = vlaneseq
  %v461 = vshrl.u32 %v460, 7
  %v462 = vsub.s32 0, %v461
  %v463 = vrot.slane %v458, %v462
  %v465 = vadd.f32 %v463, 0.0
  %v466 = vadd.f32 %v465, %v282
  %v467 = vadd.f32 %v465, %v285
  %v468 = vadd.f32 %v465, %v291
  %v469 = vadd.f32 %v465, %v295
  %v470 = vadd.f32 %v465, %v301
  %v471 = vadd.f32 %v465, %v305
  %v472 = vadd.f32 %v465, %v311
  %v473 = vadd.f32 %v465, %v315
  %v474 = vadd.f32 %v465, %v321
  %v475 = vadd.f32 %v465, %v325
  %v476 = vadd.f32 %v465, %v331
  %v477 = vadd.f32 %v465, %v335
  %v478 = vadd.f32 %v465, %v341
  %v479 = vadd.f32 %v465, %v345
  %v480 = vadd.f32 %v465, %v351
  %v481 = vadd.f32 %v465, %v355
  %v482 = vadd.f32 %v465, %v361
  %v483 = vadd.f32 %v465, %v371
  %v484 = vadd.f32 %v465, %v374
  %v485 = vadd.f32 %v465, %v380
  %v486 = vadd.f32 %v465, %v384
  %v487 = vadd.f32 %v465, %v390
  %v488 = vadd.f32 %v465, %v394
  %v489 = vadd.f32 %v465, %v400
  %v490 = vadd.f32 %v465, %v404
  %v491 = vadd.f32 %v465, %v410
  %v492 = vadd.f32 %v465, %v414
  %v493 = vadd.f32 %v465, %v420
  %v494 = vadd.f32 %v465, %v424
  %v495 = vadd.f32 %v465, %v430
  %v496 = vadd.f32 %v465, %v434
  %v497 = vadd.f32 %v465, %v440
  %v498 = vadd.f32 %v465, %v444
  %v499 = vadd.f32 %v465, %v450
  %vm534 = vcmask 1046528
  %v535 = vrot.slane %v282, 1
  %v536 = vrot.slane %v285, 1
  %v537 = vsel %vm534, %v535, %v536
  %v538 = vrot.slane %v291, 1
  %v539 = vsel %vm534, %v536, %v538
  %v540 = vrot.slane %v295, 1
  %v541 = vsel %vm534, %v538, %v540
  %v542 = vrot.slane %v301, 1
  %v543 = vsel %vm534, %v540, %v542
  %v544 = vrot.slane %v305, 1
  %v545 = vsel %vm534, %v542, %v544
  %v546 = vrot.slane %v311, 1
  %v547 = vsel %vm534, %v544, %v546
  %v548 = vrot.slane %v315, 1
  %v549 = vsel %vm534, %v546, %v548
  %v550 = vrot.slane %v321, 1
  %v551 = vsel %vm534, %v548, %v550
  %v552 = vrot.slane %v325, 1
  %v553 = vsel %vm534, %v550, %v552
  %v554 = vrot.slane %v331, 1
  %v555 = vsel %vm534, %v552, %v554
  %v556 = vrot.slane %v335, 1
  %v557 = vsel %vm534, %v554, %v556
  %v558 = vrot.slane %v341, 1
  %v559 = vsel %vm534, %v556, %v558
  %v560 = vrot.slane %v345, 1
  %v561 = vsel %vm534, %v558, %v560
  %v562 = vrot.slane %v351, 1
  %v563 = vsel %vm534, %v560, %v562
  %v564 = vrot.slane %v355, 1
  %v565 = vsel %vm534, %v562, %v564
  %v566 = vrot.slane %v361, 1
  %v567 = vsel %vm534, %v564, %v566
  %v568 = vrot.slane %v371, 1
  %v569 = vrot.slane %v374, 1
  %v570 = vsel %vm534, %v568, %v569
  %v571 = vrot.slane %v380, 1
  %v572 = vsel %vm534, %v569, %v571
  %v573 = vrot.slane %v384, 1
  %v574 = vsel %vm534, %v571, %v573
  %v575 = vrot.slane %v390, 1
  %v576 = vsel %vm534, %v573, %v575
  %v577 = vrot.slane %v394, 1
  %v578 = vsel %vm534, %v575, %v577
  %v579 = vrot.slane %v400, 1
  %v580 = vsel %vm534, %v577, %v579
  %v581 = vrot.slane %v404, 1
  %v582 = vsel %vm534, %v579, %v581
  %v583 = vrot.slane %v410, 1
  %v584 = vsel %vm534, %v581, %v583
  %v585 = vrot.slane %v414, 1
  %v586 = vsel %vm534, %v583, %v585
  %v587 = vrot.slane %v420, 1
  %v588 = vsel %vm534, %v585, %v587
  %v589 = vrot.slane %v424, 1
  %v590 = vsel %vm534, %v587, %v589
  %v591 = vrot.slane %v430, 1
  %v592 = vsel %vm534, %v589, %v591
  %v593 = vrot.slane %v434, 1
  %v594 = vsel %vm534, %v591, %v593
  %v595 = vrot.slane %v440, 1
  %v596 = vsel %vm534, %v593, %v595
  %v597 = vrot.slane %v444, 1
  %v598 = vsel %vm534, %v595, %v597
  %v599 = vrot.slane %v450, 1
  %v600 = vsel %vm534, %v597, %v599
  %601 = vrot.lane.b32.xlu0 %v537, 96
  %v602 = vpop.permute.xlu0 %601
  %603 = vrot.lane.b32.xlu0 %v539, 96
  %v604 = vpop.permute.xlu0 %603
  %605 = vrot.lane.b32.xlu0 %v541, 96
  %v606 = vpop.permute.xlu0 %605
  %607 = vrot.lane.b32.xlu0 %v543, 96
  %v608 = vpop.permute.xlu0 %607
  %609 = vrot.lane.b32.xlu0 %v545, 96
  %v610 = vpop.permute.xlu0 %609
  %611 = vrot.lane.b32.xlu0 %v547, 96
  %v612 = vpop.permute.xlu0 %611
  %613 = vrot.lane.b32.xlu0 %v549, 96
  %v614 = vpop.permute.xlu0 %613
  %615 = vrot.lane.b32.xlu0 %v551, 96
  %v616 = vpop.permute.xlu0 %615
  %617 = vrot.lane.b32.xlu0 %v553, 96
  %v618 = vpop.permute.xlu0 %617
  %619 = vrot.lane.b32.xlu0 %v555, 96
  %v620 = vpop.permute.xlu0 %619
  %621 = vrot.lane.b32.xlu0 %v557, 96
  %v622 = vpop.permute.xlu0 %621
  %623 = vrot.lane.b32.xlu0 %v559, 96
  %v624 = vpop.permute.xlu0 %623
  %625 = vrot.lane.b32.xlu0 %v561, 96
  %v626 = vpop.permute.xlu0 %625
  %627 = vrot.lane.b32.xlu0 %v563, 96
  %v628 = vpop.permute.xlu0 %627
  %629 = vrot.lane.b32.xlu0 %v565, 96
  %v630 = vpop.permute.xlu0 %629
  %631 = vrot.lane.b32.xlu0 %v567, 96
  %v632 = vpop.permute.xlu0 %631
  %633 = vrot.lane.b32.xlu0 %v566, 96
  %v634 = vpop.permute.xlu0 %633
  %635 = vrot.lane.b32.xlu0 %v570, 96
  %v636 = vpop.permute.xlu0 %635
  %637 = vrot.lane.b32.xlu0 %v572, 96
  %v638 = vpop.permute.xlu0 %637
  %639 = vrot.lane.b32.xlu0 %v574, 96
  %v640 = vpop.permute.xlu0 %639
  %641 = vrot.lane.b32.xlu0 %v576, 96
  %v642 = vpop.permute.xlu0 %641
  %643 = vrot.lane.b32.xlu0 %v578, 96
  %v644 = vpop.permute.xlu0 %643
  %645 = vrot.lane.b32.xlu0 %v580, 96
  %v646 = vpop.permute.xlu0 %645
  %647 = vrot.lane.b32.xlu0 %v582, 96
  %v648 = vpop.permute.xlu0 %647
  %649 = vrot.lane.b32.xlu0 %v584, 96
  %v650 = vpop.permute.xlu0 %649
  %651 = vrot.lane.b32.xlu0 %v586, 96
  %v652 = vpop.permute.xlu0 %651
  %653 = vrot.lane.b32.xlu0 %v588, 96
  %v654 = vpop.permute.xlu0 %653
  %655 = vrot.lane.b32.xlu0 %v590, 96
  %v656 = vpop.permute.xlu0 %655
  %657 = vrot.lane.b32.xlu0 %v592, 96
  %v658 = vpop.permute.xlu0 %657
  %659 = vrot.lane.b32.xlu0 %v594, 96
  %v660 = vpop.permute.xlu0 %659
  %661 = vrot.lane.b32.xlu0 %v596, 96
  %v662 = vpop.permute.xlu0 %661
  %663 = vrot.lane.b32.xlu0 %v598, 96
  %v664 = vpop.permute.xlu0 %663
  %665 = vrot.lane.b32.xlu0 %v600, 96
  %v666 = vpop.permute.xlu0 %665
  %667 = vrot.lane.b32.xlu0 %v599, 96
  %v668 = vpop.permute.xlu0 %667
  %v703 = vadd.f32 %v466, %v602
  %v704 = vadd.f32 %v467, %v604
  %v705 = vadd.f32 %v468, %v606
  %v706 = vadd.f32 %v469, %v608
  %v707 = vadd.f32 %v470, %v610
  %v708 = vadd.f32 %v471, %v612
  %v709 = vadd.f32 %v472, %v614
  %v710 = vadd.f32 %v473, %v616
  %v711 = vadd.f32 %v474, %v618
  %v712 = vadd.f32 %v475, %v620
  %v713 = vadd.f32 %v476, %v622
  %v714 = vadd.f32 %v477, %v624
  %v715 = vadd.f32 %v478, %v626
  %v716 = vadd.f32 %v479, %v628
  %v717 = vadd.f32 %v480, %v630
  %v718 = vadd.f32 %v481, %v632
  %v719 = vadd.f32 %v482, %v634
  %v720 = vadd.f32 %v483, %v636
  %v721 = vadd.f32 %v484, %v638
  %v722 = vadd.f32 %v485, %v640
  %v723 = vadd.f32 %v486, %v642
  %v724 = vadd.f32 %v487, %v644
  %v725 = vadd.f32 %v488, %v646
  %v726 = vadd.f32 %v489, %v648
  %v727 = vadd.f32 %v490, %v650
  %v728 = vadd.f32 %v491, %v652
  %v729 = vadd.f32 %v492, %v654
  %v730 = vadd.f32 %v493, %v656
  %v731 = vadd.f32 %v494, %v658
  %v732 = vadd.f32 %v495, %v660
  %v733 = vadd.f32 %v496, %v662
  %v734 = vadd.f32 %v497, %v664
  %v735 = vadd.f32 %v498, %v666
  %v736 = vadd.f32 %v499, %v668
  %vm737 = vcmask 1045504
  %v738 = vrot.slane %v285, 2
  %v739 = vrot.slane %v291, 2
  %v740 = vsel %vm737, %v738, %v739
  %v741 = vrot.slane %v295, 2
  %v742 = vsel %vm737, %v739, %v741
  %v743 = vrot.slane %v301, 2
  %v744 = vsel %vm737, %v741, %v743
  %v745 = vrot.slane %v305, 2
  %v746 = vsel %vm737, %v743, %v745
  %v747 = vrot.slane %v311, 2
  %v748 = vsel %vm737, %v745, %v747
  %v749 = vrot.slane %v315, 2
  %v750 = vsel %vm737, %v747, %v749
  %v751 = vrot.slane %v321, 2
  %v752 = vsel %vm737, %v749, %v751
  %v753 = vrot.slane %v325, 2
  %v754 = vsel %vm737, %v751, %v753
  %v755 = vrot.slane %v331, 2
  %v756 = vsel %vm737, %v753, %v755
  %v757 = vrot.slane %v335, 2
  %v758 = vsel %vm737, %v755, %v757
  %v759 = vrot.slane %v341, 2
  %v760 = vsel %vm737, %v757, %v759
  %v761 = vrot.slane %v345, 2
  %v762 = vsel %vm737, %v759, %v761
  %v763 = vrot.slane %v351, 2
  %v764 = vsel %vm737, %v761, %v763
  %v765 = vrot.slane %v355, 2
  %v766 = vsel %vm737, %v763, %v765
  %v767 = vrot.slane %v361, 2
  %v768 = vsel %vm737, %v765, %v767
  %v769 = vrot.slane %v374, 2
  %v770 = vrot.slane %v380, 2
  %v771 = vsel %vm737, %v769, %v770
  %v772 = vrot.slane %v384, 2
  %v773 = vsel %vm737, %v770, %v772
  %v774 = vrot.slane %v390, 2
  %v775 = vsel %vm737, %v772, %v774
  %v776 = vrot.slane %v394, 2
  %v777 = vsel %vm737, %v774, %v776
  %v778 = vrot.slane %v400, 2
  %v779 = vsel %vm737, %v776, %v778
  %v780 = vrot.slane %v404, 2
  %v781 = vsel %vm737, %v778, %v780
  %v782 = vrot.slane %v410, 2
  %v783 = vsel %vm737, %v780, %v782
  %v784 = vrot.slane %v414, 2
  %v785 = vsel %vm737, %v782, %v784
  %v786 = vrot.slane %v420, 2
  %v787 = vsel %vm737, %v784, %v786
  %v788 = vrot.slane %v424, 2
  %v789 = vsel %vm737, %v786, %v788
  %v790 = vrot.slane %v430, 2
  %v791 = vsel %vm737, %v788, %v790
  %v792 = vrot.slane %v434, 2
  %v793 = vsel %vm737, %v790, %v792
  %v794 = vrot.slane %v440, 2
  %v795 = vsel %vm737, %v792, %v794
  %v796 = vrot.slane %v444, 2
  %v797 = vsel %vm737, %v794, %v796
  %v798 = vrot.slane %v450, 2
  %v799 = vsel %vm737, %v796, %v798
  %800 = vrot.lane.b32.xlu0 %v738, 64
  %v801 = vpop.permute.xlu0 %800
  %802 = vrot.lane.b32.xlu0 %v740, 64
  %v803 = vpop.permute.xlu0 %802
  %804 = vrot.lane.b32.xlu0 %v742, 64
  %v805 = vpop.permute.xlu0 %804
  %806 = vrot.lane.b32.xlu0 %v744, 64
  %v807 = vpop.permute.xlu0 %806
  %808 = vrot.lane.b32.xlu0 %v746, 64
  %v809 = vpop.permute.xlu0 %808
  %810 = vrot.lane.b32.xlu0 %v748, 64
  %v811 = vpop.permute.xlu0 %810
  %812 = vrot.lane.b32.xlu0 %v750, 64
  %v813 = vpop.permute.xlu0 %812
  %814 = vrot.lane.b32.xlu0 %v752, 64
  %v815 = vpop.permute.xlu0 %814
  %816 = vrot.lane.b32.xlu0 %v754, 64
  %v817 = vpop.permute.xlu0 %816
  %818 = vrot.lane.b32.xlu0 %v756, 64
  %v819 = vpop.permute.xlu0 %818
  %820 = vrot.lane.b32.xlu0 %v758, 64
  %v821 = vpop.permute.xlu0 %820
  %822 = vrot.lane.b32.xlu0 %v760, 64
  %v823 = vpop.permute.xlu0 %822
  %824 = vrot.lane.b32.xlu0 %v762, 64
  %v825 = vpop.permute.xlu0 %824
  %826 = vrot.lane.b32.xlu0 %v764, 64
  %v827 = vpop.permute.xlu0 %826
  %828 = vrot.lane.b32.xlu0 %v766, 64
  %v829 = vpop.permute.xlu0 %828
  %830 = vrot.lane.b32.xlu0 %v768, 64
  %v831 = vpop.permute.xlu0 %830
  %832 = vrot.lane.b32.xlu0 %v767, 64
  %v833 = vpop.permute.xlu0 %832
  %834 = vrot.lane.b32.xlu0 %v769, 64
  %v835 = vpop.permute.xlu0 %834
  %836 = vrot.lane.b32.xlu0 %v771, 64
  %v837 = vpop.permute.xlu0 %836
  %838 = vrot.lane.b32.xlu0 %v773, 64
  %v839 = vpop.permute.xlu0 %838
  %840 = vrot.lane.b32.xlu0 %v775, 64
  %v841 = vpop.permute.xlu0 %840
  %842 = vrot.lane.b32.xlu0 %v777, 64
  %v843 = vpop.permute.xlu0 %842
  %844 = vrot.lane.b32.xlu0 %v779, 64
  %v845 = vpop.permute.xlu0 %844
  %846 = vrot.lane.b32.xlu0 %v781, 64
  %v847 = vpop.permute.xlu0 %846
  %848 = vrot.lane.b32.xlu0 %v783, 64
  %v849 = vpop.permute.xlu0 %848
  %850 = vrot.lane.b32.xlu0 %v785, 64
  %v851 = vpop.permute.xlu0 %850
  %852 = vrot.lane.b32.xlu0 %v787, 64
  %v853 = vpop.permute.xlu0 %852
  %854 = vrot.lane.b32.xlu0 %v789, 64
  %v855 = vpop.permute.xlu0 %854
  %856 = vrot.lane.b32.xlu0 %v791, 64
  %v857 = vpop.permute.xlu0 %856
  %858 = vrot.lane.b32.xlu0 %v793, 64
  %v859 = vpop.permute.xlu0 %858
  %860 = vrot.lane.b32.xlu0 %v795, 64
  %v861 = vpop.permute.xlu0 %860
  %862 = vrot.lane.b32.xlu0 %v797, 64
  %v863 = vpop.permute.xlu0 %862
  %864 = vrot.lane.b32.xlu0 %v799, 64
  %v865 = vpop.permute.xlu0 %864
  %866 = vrot.lane.b32.xlu0 %v798, 64
  %v867 = vpop.permute.xlu0 %866
  %v902 = vadd.f32 %v703, %v801
  %v903 = vadd.f32 %v704, %v803
  %v904 = vadd.f32 %v705, %v805
  %v905 = vadd.f32 %v706, %v807
  %v906 = vadd.f32 %v707, %v809
  %v907 = vadd.f32 %v708, %v811
  %v908 = vadd.f32 %v709, %v813
  %v909 = vadd.f32 %v710, %v815
  %v910 = vadd.f32 %v711, %v817
  %v911 = vadd.f32 %v712, %v819
  %v912 = vadd.f32 %v713, %v821
  %v913 = vadd.f32 %v714, %v823
  %v914 = vadd.f32 %v715, %v825
  %v915 = vadd.f32 %v716, %v827
  %v916 = vadd.f32 %v717, %v829
  %v917 = vadd.f32 %v718, %v831
  %v918 = vadd.f32 %v719, %v833
  %v919 = vadd.f32 %v720, %v835
  %v920 = vadd.f32 %v721, %v837
  %v921 = vadd.f32 %v722, %v839
  %v922 = vadd.f32 %v723, %v841
  %v923 = vadd.f32 %v724, %v843
  %v924 = vadd.f32 %v725, %v845
  %v925 = vadd.f32 %v726, %v847
  %v926 = vadd.f32 %v727, %v849
  %v927 = vadd.f32 %v728, %v851
  %v928 = vadd.f32 %v729, %v853
  %v929 = vadd.f32 %v730, %v855
  %v930 = vadd.f32 %v731, %v857
  %v931 = vadd.f32 %v732, %v859
  %v932 = vadd.f32 %v733, %v861
  %v933 = vadd.f32 %v734, %v863
  %v934 = vadd.f32 %v735, %v865
  %v935 = vadd.f32 %v736, %v867
  %vm938 = vcmask 1044480
  %v939 = vrot.slane %v285, 3
  %v940 = vrot.slane %v291, 3
  %v941 = vsel %vm938, %v939, %v940
  %v942 = vrot.slane %v295, 3
  %v943 = vsel %vm938, %v940, %v942
  %v944 = vrot.slane %v301, 3
  %v945 = vsel %vm938, %v942, %v944
  %v946 = vrot.slane %v305, 3
  %v947 = vsel %vm938, %v944, %v946
  %v948 = vrot.slane %v311, 3
  %v949 = vsel %vm938, %v946, %v948
  %v950 = vrot.slane %v315, 3
  %v951 = vsel %vm938, %v948, %v950
  %v952 = vrot.slane %v321, 3
  %v953 = vsel %vm938, %v950, %v952
  %v954 = vrot.slane %v325, 3
  %v955 = vsel %vm938, %v952, %v954
  %v956 = vrot.slane %v331, 3
  %v957 = vsel %vm938, %v954, %v956
  %v958 = vrot.slane %v335, 3
  %v959 = vsel %vm938, %v956, %v958
  %v960 = vrot.slane %v341, 3
  %v961 = vsel %vm938, %v958, %v960
  %v962 = vrot.slane %v345, 3
  %v963 = vsel %vm938, %v960, %v962
  %v964 = vrot.slane %v351, 3
  %v965 = vsel %vm938, %v962, %v964
  %v966 = vrot.slane %v355, 3
  %v967 = vsel %vm938, %v964, %v966
  %v968 = vrot.slane %v361, 3
  %v969 = vsel %vm938, %v966, %v968
  %v970 = vrot.slane %v365, 3
  %v971 = vsel %vm938, %v968, %v970
  %v972 = vrot.slane %v374, 3
  %v973 = vrot.slane %v380, 3
  %v974 = vsel %vm938, %v972, %v973
  %v975 = vrot.slane %v384, 3
  %v976 = vsel %vm938, %v973, %v975
  %v977 = vrot.slane %v390, 3
  %v978 = vsel %vm938, %v975, %v977
  %v979 = vrot.slane %v394, 3
  %v980 = vsel %vm938, %v977, %v979
  %v981 = vrot.slane %v400, 3
  %v982 = vsel %vm938, %v979, %v981
  %v983 = vrot.slane %v404, 3
  %v984 = vsel %vm938, %v981, %v983
  %v985 = vrot.slane %v410, 3
  %v986 = vsel %vm938, %v983, %v985
  %v987 = vrot.slane %v414, 3
  %v988 = vsel %vm938, %v985, %v987
  %v989 = vrot.slane %v420, 3
  %v990 = vsel %vm938, %v987, %v989
  %v991 = vrot.slane %v424, 3
  %v992 = vsel %vm938, %v989, %v991
  %v993 = vrot.slane %v430, 3
  %v994 = vsel %vm938, %v991, %v993
  %v995 = vrot.slane %v434, 3
  %v996 = vsel %vm938, %v993, %v995
  %v997 = vrot.slane %v440, 3
  %v998 = vsel %vm938, %v995, %v997
  %v999 = vrot.slane %v444, 3
  %v1000 = vsel %vm938, %v997, %v999
  %v1001 = vrot.slane %v450, 3
  %v1002 = vsel %vm938, %v999, %v1001
  %v1003 = vrot.slane %v454, 3
  %v1004 = vsel %vm938, %v1001, %v1003
  %1005 = vrot.lane.b32.xlu0 %v939, 32
  %v1006 = vpop.permute.xlu0 %1005
  %1007 = vrot.lane.b32.xlu0 %v941, 32
  %v1008 = vpop.permute.xlu0 %1007
  %1009 = vrot.lane.b32.xlu0 %v943, 32
  %v1010 = vpop.permute.xlu0 %1009
  %1011 = vrot.lane.b32.xlu0 %v945, 32
  %v1012 = vpop.permute.xlu0 %1011
  %1013 = vrot.lane.b32.xlu0 %v947, 32
  %v1014 = vpop.permute.xlu0 %1013
  %1015 = vrot.lane.b32.xlu0 %v949, 32
  %v1016 = vpop.permute.xlu0 %1015
  %1017 = vrot.lane.b32.xlu0 %v951, 32
  %v1018 = vpop.permute.xlu0 %1017
  %1019 = vrot.lane.b32.xlu0 %v953, 32
  %v1020 = vpop.permute.xlu0 %1019
  %1021 = vrot.lane.b32.xlu0 %v955, 32
  %v1022 = vpop.permute.xlu0 %1021
  %1023 = vrot.lane.b32.xlu0 %v957, 32
  %v1024 = vpop.permute.xlu0 %1023
  %1025 = vrot.lane.b32.xlu0 %v959, 32
  %v1026 = vpop.permute.xlu0 %1025
  %1027 = vrot.lane.b32.xlu0 %v961, 32
  %v1028 = vpop.permute.xlu0 %1027
  %1029 = vrot.lane.b32.xlu0 %v963, 32
  %v1030 = vpop.permute.xlu0 %1029
  %1031 = vrot.lane.b32.xlu0 %v965, 32
  %v1032 = vpop.permute.xlu0 %1031
  %1033 = vrot.lane.b32.xlu0 %v967, 32
  %v1034 = vpop.permute.xlu0 %1033
  %1035 = vrot.lane.b32.xlu0 %v969, 32
  %v1036 = vpop.permute.xlu0 %1035
  %1037 = vrot.lane.b32.xlu0 %v971, 32
  %v1038 = vpop.permute.xlu0 %1037
  %1039 = vrot.lane.b32.xlu0 %v972, 32
  %v1040 = vpop.permute.xlu0 %1039
  %1041 = vrot.lane.b32.xlu0 %v974, 32
  %v1042 = vpop.permute.xlu0 %1041
  %1043 = vrot.lane.b32.xlu0 %v976, 32
  %v1044 = vpop.permute.xlu0 %1043
  %1045 = vrot.lane.b32.xlu0 %v978, 32
  %v1046 = vpop.permute.xlu0 %1045
  %1047 = vrot.lane.b32.xlu0 %v980, 32
  %v1048 = vpop.permute.xlu0 %1047
  %1049 = vrot.lane.b32.xlu0 %v982, 32
  %v1050 = vpop.permute.xlu0 %1049
  %1051 = vrot.lane.b32.xlu0 %v984, 32
  %v1052 = vpop.permute.xlu0 %1051
  %1053 = vrot.lane.b32.xlu0 %v986, 32
  %v1054 = vpop.permute.xlu0 %1053
  %1055 = vrot.lane.b32.xlu0 %v988, 32
  %v1056 = vpop.permute.xlu0 %1055
  %1057 = vrot.lane.b32.xlu0 %v990, 32
  %v1058 = vpop.permute.xlu0 %1057
  %1059 = vrot.lane.b32.xlu0 %v992, 32
  %v1060 = vpop.permute.xlu0 %1059
  %1061 = vrot.lane.b32.xlu0 %v994, 32
  %v1062 = vpop.permute.xlu0 %1061
  %1063 = vrot.lane.b32.xlu0 %v996, 32
  %v1064 = vpop.permute.xlu0 %1063
  %1065 = vrot.lane.b32.xlu0 %v998, 32
  %v1066 = vpop.permute.xlu0 %1065
  %1067 = vrot.lane.b32.xlu0 %v1000, 32
  %v1068 = vpop.permute.xlu0 %1067
  %1069 = vrot.lane.b32.xlu0 %v1002, 32
  %v1070 = vpop.permute.xlu0 %1069
  %1071 = vrot.lane.b32.xlu0 %v1004, 32
  %v1072 = vpop.permute.xlu0 %1071
  %v1107 = vadd.f32 %v902, %v1006
  %v1108 = vadd.f32 %v903, %v1008
  %v1109 = vadd.f32 %v904, %v1010
  %v1110 = vadd.f32 %v905, %v1012
  %v1111 = vadd.f32 %v906, %v1014
  %v1112 = vadd.f32 %v907, %v1016
  %v1113 = vadd.f32 %v908, %v1018
  %v1114 = vadd.f32 %v909, %v1020
  %v1115 = vadd.f32 %v910, %v1022
  %v1116 = vadd.f32 %v911, %v1024
  %v1117 = vadd.f32 %v912, %v1026
  %v1118 = vadd.f32 %v913, %v1028
  %v1119 = vadd.f32 %v914, %v1030
  %v1120 = vadd.f32 %v915, %v1032
  %v1121 = vadd.f32 %v916, %v1034
  %v1122 = vadd.f32 %v917, %v1036
  %v1123 = vadd.f32 %v918, %v1038
  %v1124 = vadd.f32 %v919, %v1040
  %v1125 = vadd.f32 %v920, %v1042
  %v1126 = vadd.f32 %v921, %v1044
  %v1127 = vadd.f32 %v922, %v1046
  %v1128 = vadd.f32 %v923, %v1048
  %v1129 = vadd.f32 %v924, %v1050
  %v1130 = vadd.f32 %v925, %v1052
  %v1131 = vadd.f32 %v926, %v1054
  %v1132 = vadd.f32 %v927, %v1056
  %v1133 = vadd.f32 %v928, %v1058
  %v1134 = vadd.f32 %v929, %v1060
  %v1135 = vadd.f32 %v930, %v1062
  %v1136 = vadd.f32 %v931, %v1064
  %v1137 = vadd.f32 %v932, %v1066
  %v1138 = vadd.f32 %v933, %v1068
  %v1139 = vadd.f32 %v934, %v1070
  %v1140 = vadd.f32 %v935, %v1072
  %vm1175 = vcmask 1043456
  %v1176 = vrot.slane %v287, 4
  %v1177 = vrot.slane %v293, 4
  %v1178 = vsel %vm1175, %v1176, %v1177
  %v1179 = vrot.slane %v297, 4
  %v1180 = vsel %vm1175, %v1177, %v1179
  %v1181 = vrot.slane %v303, 4
  %v1182 = vsel %vm1175, %v1179, %v1181
  %v1183 = vrot.slane %v307, 4
  %v1184 = vsel %vm1175, %v1181, %v1183
  %v1185 = vrot.slane %v313, 4
  %v1186 = vsel %vm1175, %v1183, %v1185
  %v1187 = vrot.slane %v317, 4
  %v1188 = vsel %vm1175, %v1185, %v1187
  %v1189 = vrot.slane %v323, 4
  %v1190 = vsel %vm1175, %v1187, %v1189
  %v1191 = vrot.slane %v327, 4
  %v1192 = vsel %vm1175, %v1189, %v1191
  %v1193 = vrot.slane %v333, 4
  %v1194 = vsel %vm1175, %v1191, %v1193
  %v1195 = vrot.slane %v337, 4
  %v1196 = vsel %vm1175, %v1193, %v1195
  %v1197 = vrot.slane %v343, 4
  %v1198 = vsel %vm1175, %v1195, %v1197
  %v1199 = vrot.slane %v347, 4
  %v1200 = vsel %vm1175, %v1197, %v1199
  %v1201 = vrot.slane %v353, 4
  %v1202 = vsel %vm1175, %v1199, %v1201
  %v1203 = vrot.slane %v357, 4
  %v1204 = vsel %vm1175, %v1201, %v1203
  %v1205 = vrot.slane %v363, 4
  %v1206 = vsel %vm1175, %v1203, %v1205
  %v1207 = vrot.slane %v367, 4
  %v1208 = vsel %vm1175, %v1205, %v1207
  %v1209 = vrot.slane %v376, 4
  %v1210 = vrot.slane %v382, 4
  %v1211 = vsel %vm1175, %v1209, %v1210
  %v1212 = vrot.slane %v386, 4
  %v1213 = vsel %vm1175, %v1210, %v1212
  %v1214 = vrot.slane %v392, 4
  %v1215 = vsel %vm1175, %v1212, %v1214
  %v1216 = vrot.slane %v396, 4
  %v1217 = vsel %vm1175, %v1214, %v1216
  %v1218 = vrot.slane %v402, 4
  %v1219 = vsel %vm1175, %v1216, %v1218
  %v1220 = vrot.slane %v406, 4
  %v1221 = vsel %vm1175, %v1218, %v1220
  %v1222 = vrot.slane %v412, 4
  %v1223 = vsel %vm1175, %v1220, %v1222
  %v1224 = vrot.slane %v416, 4
  %v1225 = vsel %vm1175, %v1222, %v1224
  %v1226 = vrot.slane %v422, 4
  %v1227 = vsel %vm1175, %v1224, %v1226
  %v1228 = vrot.slane %v426, 4
  %v1229 = vsel %vm1175, %v1226, %v1228
  %v1230 = vrot.slane %v432, 4
  %v1231 = vsel %vm1175, %v1228, %v1230
  %v1232 = vrot.slane %v436, 4
  %v1233 = vsel %vm1175, %v1230, %v1232
  %v1234 = vrot.slane %v442, 4
  %v1235 = vsel %vm1175, %v1232, %v1234
  %v1236 = vrot.slane %v446, 4
  %v1237 = vsel %vm1175, %v1234, %v1236
  %v1238 = vrot.slane %v452, 4
  %v1239 = vsel %vm1175, %v1236, %v1238
  %v1240 = vrot.slane %v456, 4
  %v1241 = vsel %vm1175, %v1238, %v1240
  %v1276 = vadd.f32 %v1107, %v1176
  %v1277 = vadd.f32 %v1108, %v1178
  %v1278 = vadd.f32 %v1109, %v1180
  %v1279 = vadd.f32 %v1110, %v1182
  %v1280 = vadd.f32 %v1111, %v1184
  %v1281 = vadd.f32 %v1112, %v1186
  %v1282 = vadd.f32 %v1113, %v1188
  %v1283 = vadd.f32 %v1114, %v1190
  %v1284 = vadd.f32 %v1115, %v1192
  %v1285 = vadd.f32 %v1116, %v1194
  %v1286 = vadd.f32 %v1117, %v1196
  %v1287 = vadd.f32 %v1118, %v1198
  %v1288 = vadd.f32 %v1119, %v1200
  %v1289 = vadd.f32 %v1120, %v1202
  %v1290 = vadd.f32 %v1121, %v1204
  %v1291 = vadd.f32 %v1122, %v1206
  %v1292 = vadd.f32 %v1123, %v1208
  %v1293 = vadd.f32 %v1124, %v1209
  %v1294 = vadd.f32 %v1125, %v1211
  %v1295 = vadd.f32 %v1126, %v1213
  %v1296 = vadd.f32 %v1127, %v1215
  %v1297 = vadd.f32 %v1128, %v1217
  %v1298 = vadd.f32 %v1129, %v1219
  %v1299 = vadd.f32 %v1130, %v1221
  %v1300 = vadd.f32 %v1131, %v1223
  %v1301 = vadd.f32 %v1132, %v1225
  %v1302 = vadd.f32 %v1133, %v1227
  %v1303 = vadd.f32 %v1134, %v1229
  %v1304 = vadd.f32 %v1135, %v1231
  %v1305 = vadd.f32 %v1136, %v1233
  %v1306 = vadd.f32 %v1137, %v1235
  %v1307 = vadd.f32 %v1138, %v1237
  %v1308 = vadd.f32 %v1139, %v1239
  %v1309 = vadd.f32 %v1140, %v1241
  %v1310 = vmax.f32 %v1276, 0.0
  %v1311 = vmax.f32 %v1277, 0.0
  %v1312 = vmax.f32 %v1278, 0.0
  %v1313 = vmax.f32 %v1279, 0.0
  %v1314 = vmax.f32 %v1280, 0.0
  %v1315 = vmax.f32 %v1281, 0.0
  %v1316 = vmax.f32 %v1282, 0.0
  %v1317 = vmax.f32 %v1283, 0.0
  %v1318 = vmax.f32 %v1284, 0.0
  %v1319 = vmax.f32 %v1285, 0.0
  %v1320 = vmax.f32 %v1286, 0.0
  %v1321 = vmax.f32 %v1287, 0.0
  %v1322 = vmax.f32 %v1288, 0.0
  %v1323 = vmax.f32 %v1289, 0.0
  %v1324 = vmax.f32 %v1290, 0.0
  %v1325 = vmax.f32 %v1291, 0.0
  %v1326 = vmax.f32 %v1292, 0.0
  %v1327 = vmax.f32 %v1293, 0.0
  %v1328 = vmax.f32 %v1294, 0.0
  %v1329 = vmax.f32 %v1295, 0.0
  %v1330 = vmax.f32 %v1296, 0.0
  %v1331 = vmax.f32 %v1297, 0.0
  %v1332 = vmax.f32 %v1298, 0.0
  %v1333 = vmax.f32 %v1299, 0.0
  %v1334 = vmax.f32 %v1300, 0.0
  %v1335 = vmax.f32 %v1301, 0.0
  %v1336 = vmax.f32 %v1302, 0.0
  %v1337 = vmax.f32 %v1303, 0.0
  %v1338 = vmax.f32 %v1304, 0.0
  %v1339 = vmax.f32 %v1305, 0.0
  %v1340 = vmax.f32 %v1306, 0.0
  %v1341 = vmax.f32 %v1307, 0.0
  %v1342 = vmax.f32 %v1308, 0.0
  %v1343 = vmax.f32 %v1309, 0.0
  %vm1344 = vcmask 261126
  %1345 = vst.msk [vmem:[#allocation3 + $0x2] sm:$0xc0] %vm1344, %v1310
  %1346 = vst.msk [vmem:[#allocation3 + $0xa] sm:$0xff] %vm117, %v1311
  %1347 = vst.msk [vmem:[#allocation3 + $0x12] sm:$0xff] %vm117, %v1312
  %1348 = vst.msk [vmem:[#allocation3 + $0x1a] sm:$0xff] %vm117, %v1313
  %1349 = vst.msk [vmem:[#allocation3 + $0x22] sm:$0xff] %vm117, %v1314
  %1350 = vst.msk [vmem:[#allocation3 + $0x2a] sm:$0xff] %vm117, %v1315
  %1351 = vst.msk [vmem:[#allocation3 + $0x32] sm:$0xff] %vm117, %v1316
  %1352 = vst.msk [vmem:[#allocation3 + $0x3a] sm:$0xff] %vm117, %v1317
  %1353 = vst.msk [vmem:[#allocation3 + $0x42] sm:$0xff] %vm117, %v1318
  %1354 = vst.msk [vmem:[#allocation3 + $0x4a] sm:$0xff] %vm117, %v1319
  %1355 = vst.msk [vmem:[#allocation3 + $0x52] sm:$0xff] %vm117, %v1320
  %1356 = vst.msk [vmem:[#allocation3 + $0x5a] sm:$0xff] %vm117, %v1321
  %1357 = vst.msk [vmem:[#allocation3 + $0x62] sm:$0xff] %vm117, %v1322
  %1358 = vst.msk [vmem:[#allocation3 + $0x6a] sm:$0xff] %vm117, %v1323
  %1359 = vst.msk [vmem:[#allocation3 + $0x72] sm:$0xff] %vm117, %v1324
  %1360 = vst.msk [vmem:[#allocation3 + $0x7a] sm:$0xff] %vm117, %v1325
  %vm1361 = vcmask 259072
  %1362 = vst.msk [vmem:[#allocation3 + $0x82] sm:$0x3f] %vm1361, %v1326
  %1363 = vst.msk [vmem:[#allocation3 + $0x92] sm:$0xc0] %vm1344, %v1327
  %1364 = vst.msk [vmem:[#allocation3 + $0x9a] sm:$0xff] %vm117, %v1328
  %1365 = vst.msk [vmem:[#allocation3 + $0xa2] sm:$0xff] %vm117, %v1329
  %1366 = vst.msk [vmem:[#allocation3 + $0xaa] sm:$0xff] %vm117, %v1330
  %1367 = vst.msk [vmem:[#allocation3 + $0xb2] sm:$0xff] %vm117, %v1331
  %1368 = vst.msk [vmem:[#allocation3 + $0xba] sm:$0xff] %vm117, %v1332
  %1369 = vst.msk [vmem:[#allocation3 + $0xc2] sm:$0xff] %vm117, %v1333
  %1370 = vst.msk [vmem:[#allocation3 + $0xca] sm:$0xff] %vm117, %v1334
  %1371 = vst.msk [vmem:[#allocation3 + $0xd2] sm:$0xff] %vm117, %v1335
  %1372 = vst.msk [vmem:[#allocation3 + $0xda] sm:$0xff] %vm117, %v1336
  %1373 = vst.msk [vmem:[#allocation3 + $0xe2] sm:$0xff] %vm117, %v1337
  %1374 = vst.msk [vmem:[#allocation3 + $0xea] sm:$0xff] %vm117, %v1338
  %1375 = vst.msk [vmem:[#allocation3 + $0xf2] sm:$0xff] %vm117, %v1339
  %1376 = vst.msk [vmem:[#allocation3 + $0xfa] sm:$0xff] %vm117, %v1340
  %1377 = vst.msk [vmem:[#allocation3 + $0x102] sm:$0xff] %vm117, %v1341
  %1378 = vst.msk [vmem:[#allocation3 + $0x10a] sm:$0xff] %vm117, %v1342
  %1379 = vst.msk [vmem:[#allocation3 + $0x112] sm:$0x3f] %vm1361, %v1343
  %v1380 = vld [vmem:[#allocation3] sm:$0xff]
  %v1381 = vld [vmem:[#allocation3 + $0x8] sm:$0xff]
  %v1382 = vld [vmem:[#allocation3 + $0x10] sm:$0xff]
  %v1383 = vld [vmem:[#allocation3 + $0x18] sm:$0xff]
  %v1384 = vld [vmem:[#allocation3 + $0x20] sm:$0xff]
  %v1385 = vld [vmem:[#allocation3 + $0x28] sm:$0xff]
  %v1386 = vld [vmem:[#allocation3 + $0x30] sm:$0xff]
  %v1387 = vld [vmem:[#allocation3 + $0x38] sm:$0xff]
  %v1388 = vld [vmem:[#allocation3 + $0x40] sm:$0xff]
  %v1389 = vld [vmem:[#allocation3 + $0x48] sm:$0xff]
  %v1390 = vld [vmem:[#allocation3 + $0x50] sm:$0xff]
  %v1391 = vld [vmem:[#allocation3 + $0x58] sm:$0xff]
  %v1392 = vld [vmem:[#allocation3 + $0x60] sm:$0xff]
  %v1393 = vld [vmem:[#allocation3 + $0x68] sm:$0xff]
  %v1394 = vld [vmem:[#allocation3 + $0x70] sm:$0xff]
  %v1395 = vld [vmem:[#allocation3 + $0x78] sm:$0xff]
  %v1396 = vld [vmem:[#allocation3 + $0x80] sm:$0xff]
  %v1397 = vld [vmem:[#allocation3 + $0x88] sm:$0xff]
  %v1398 = vld [vmem:[#allocation3 + $0x90] sm:$0xff]
  %v1399 = vld [vmem:[#allocation3 + $0x98] sm:$0xff]
  %v1400 = vld [vmem:[#allocation3 + $0xa0] sm:$0xff]
  %v1401 = vld [vmem:[#allocation3 + $0xa8] sm:$0xff]
  %v1402 = vld [vmem:[#allocation3 + $0xb0] sm:$0xff]
  %v1403 = vld [vmem:[#allocation3 + $0xb8] sm:$0xff]
  %v1404 = vld [vmem:[#allocation3 + $0xc0] sm:$0xff]
  %v1405 = vld [vmem:[#allocation3 + $0xc8] sm:$0xff]
  %v1406 = vld [vmem:[#allocation3 + $0xd0] sm:$0xff]
  %v1407 = vld [vmem:[#allocation3 + $0xd8] sm:$0xff]
  %v1408 = vld [vmem:[#allocation3 + $0xe0] sm:$0xff]
  %v1409 = vld [vmem:[#allocation3 + $0xe8] sm:$0xff]
  %v1410 = vld [vmem:[#allocation3 + $0xf0] sm:$0xff]
  %v1411 = vld [vmem:[#allocation3 + $0xf8] sm:$0xff]
  %v1412 = vld [vmem:[#allocation3 + $0x100] sm:$0xff]
  %v1413 = vld [vmem:[#allocation3 + $0x108] sm:$0xff]
  %v1414 = vld [vmem:[#allocation3 + $0x110] sm:$0xff]
  %v1415 = vld [vmem:[#allocation3 + $0x118] sm:$0xff]
  %v1416 = vpack.c.bf16 %v1381, %v1380
  %v1417 = vpack.c.bf16 %v1383, %v1382
  %v1418 = vpack.c.bf16 %v1385, %v1384
  %v1419 = vpack.c.bf16 %v1387, %v1386
  %v1420 = vpack.c.bf16 %v1389, %v1388
  %v1421 = vpack.c.bf16 %v1391, %v1390
  %v1422 = vpack.c.bf16 %v1393, %v1392
  %v1423 = vpack.c.bf16 %v1395, %v1394
  %v1424 = vpack.c.bf16 %v1397, %v1396
  %v1425 = vpack.c.bf16 %v1399, %v1398
  %v1426 = vpack.c.bf16 %v1401, %v1400
  %v1427 = vpack.c.bf16 %v1403, %v1402
  %v1428 = vpack.c.bf16 %v1405, %v1404
  %v1429 = vpack.c.bf16 %v1407, %v1406
  %v1430 = vpack.c.bf16 %v1409, %v1408
  %v1431 = vpack.c.bf16 %v1411, %v1410
  %v1432 = vpack.c.bf16 %v1413, %v1412
  %v1433 = vpack.c.bf16 %v1415, %v1414
  %v1434 = vld [vmem:[%s4] sm:$0xff]
  %v1435 = vld [vmem:[%s4 + $0x8] sm:$0xff]
  %v1436 = vld [vmem:[%s4 + $0x10] sm:$0xff]
  %v1437 = vld [vmem:[%s4 + $0x18] sm:$0xff]
  %v1442 = vunpack.c.l.b16 %v1434
  %v1443 = vunpack.c.h.b16 %v1434
  %v1444 = vunpack.c.l.b16 %v1435
  %v1445 = vunpack.c.h.b16 %v1435
  %v1446 = vunpack.c.l.b16 %v1436
  %v1447 = vunpack.c.h.b16 %v1436
  %v1448 = vunpack.c.l.b16 %v1437
  %v1449 = vunpack.c.h.b16 %v1437
  %v1450 = vpack.c.b16 %v1444, %v1442
  %v1451 = vpack.c.b16 %v1445, %v1443
  %v1452 = vpack.c.b16 %v1448, %v1446
  %v1453 = vpack.c.b16 %v1449, %v1447
  %v1459 = vsel %vm117, %v1416, 0
  %v1462 = vsel %vm117, %v1417, 0
  %v1465 = vsel %vm117, %v1418, 0
  %v1468 = vsel %vm117, %v1419, 0
  %v1471 = vsel %vm117, %v1420, 0
  %v1474 = vsel %vm117, %v1421, 0
  %v1477 = vsel %vm117, %v1422, 0
  %v1480 = vsel %vm117, %v1423, 0
  %v1483 = vsel %vm117, %v1424, 0
  %v1486 = vsel %vm117, %v1425, 0
  %v1489 = vsel %vm117, %v1426, 0
  %v1492 = vsel %vm117, %v1427, 0
  %v1495 = vsel %vm117, %v1428, 0
  %v1498 = vsel %vm117, %v1429, 0
  %v1501 = vsel %vm117, %v1430, 0
  %v1504 = vsel %vm117, %v1431, 0
  %v1507 = vsel %vm117, %v1432, 0
  %v1510 = vsel %vm117, %v1433, 0
  %1512 = vmatprep.subr.bf16.mxu0 %v1451
  %1513 = vmatpush1.bf16.msra.mxu0 %v1450
  %1514 = vmatprep.subr.bf16.mxu0 %v1453
  %1515 = vmatpush1.bf16.msra.mxu0 %v1452
  %1516 = vmatprep.subr.bf16.mxu0 0
  %1517 = vmatpush1.bf16.msra.mxu0 0
  %1518 = vmatprep.subr.bf16.mxu0 0
  %1519 = vmatpush1.bf16.msra.mxu0 0
  %1520 = vmatprep.subr.bf16.mxu0 0
  %1521 = vmatpush1.bf16.msra.mxu0 0
  %1522 = vmatprep.subr.bf16.mxu0 0
  %1523 = vmatpush1.bf16.msra.mxu0 0
  %1524 = vmatprep.subr.bf16.mxu0 0
  %1525 = vmatpush1.bf16.msra.mxu0 0
  %1526 = vmatprep.subr.bf16.mxu0 0
  %1527 = vmatpush1.bf16.msra.mxu0 0
  %1528 = vmatprep.subr.bf16.mxu0 0
  %1529 = vmatpush1.bf16.msra.mxu0 0
  %1530 = vmatprep.subr.bf16.mxu0 0
  %1531 = vmatpush1.bf16.msra.mxu0 0
  %1532 = vmatprep.subr.bf16.mxu0 0
  %1533 = vmatpush1.bf16.msra.mxu0 0
  %1534 = vmatprep.subr.bf16.mxu0 0
  %1535 = vmatpush1.bf16.msra.mxu0 0
  %1536 = vmatprep.subr.bf16.mxu0 0
  %1537 = vmatpush1.bf16.msra.mxu0 0
  %1538 = vmatprep.subr.bf16.mxu0 0
  %1539 = vmatpush1.bf16.msra.mxu0 0
  %1540 = vmatprep.subr.bf16.mxu0 0
  %1541 = vmatpush1.bf16.msra.mxu0 0
  %1542 = vmatprep.subr.bf16.mxu0 0
  %1543 = vmatpush1.bf16.msra.mxu0 0
  %1544 = vmatprep.mubr.bf16.mxu0 0
  %1545 = vmatmul.mubr.bf16.gmra.mrb[0].mxu0 %v1459
  %v1546 = vpop.f32.mrb[0].mxu0
  %v1547 = vadd.f32 0.0, %v1546
  %v1548 = vpop.f32.mrb[0].mxu0
  %v1549 = vpop.f32.mrb[0].mxu0
  %v1550 = vadd.f32 0.0, %v1549
  %v1551 = vpop.f32.mrb[0].mxu0
  %v1552 = vadd.f32 0.0, %v1551
  %1553 = vmatprep.mubr.bf16.mxu0 0
  %1554 = vmatmul.mubr.bf16.gmra.mrb[0].mxu0 %v1462
  %v1555 = vpop.f32.mrb[0].mxu0
  %v1556 = vadd.f32 0.0, %v1555
  %v1557 = vpop.f32.mrb[0].mxu0
  %v1558 = vadd.f32 0.0, %v1557
  %v1559 = vpop.f32.mrb[0].mxu0
  %v1560 = vadd.f32 0.0, %v1559
  %v1561 = vpop.f32.mrb[0].mxu0
  %v1562 = vadd.f32 0.0, %v1561
  %1563 = vmatprep.mubr.bf16.mxu0 0
  %1564 = vmatmul.mubr.bf16.gmra.mrb[0].mxu0 %v1465
  %v1565 = vpop.f32.mrb[0].mxu0
  %v1566 = vadd.f32 0.0, %v1565
  %v1567 = vpop.f32.mrb[0].mxu0
  %v1568 = vadd.f32 0.0, %v1567
  %v1569 = vpop.f32.mrb[0].mxu0
  %v1570 = vadd.f32 0.0, %v1569
  %v1571 = vpop.f32.mrb[0].mxu0
  %v1572 = vadd.f32 0.0, %v1571
  %1573 = vmatprep.mubr.bf16.mxu0 0
  %1574 = vmatmul.mubr.bf16.gmra.mrb[0].mxu0 %v1468
  %v1575 = vpop.f32.mrb[0].mxu0
  %v1576 = vadd.f32 0.0, %v1575
  %v1577 = vpop.f32.mrb[0].mxu0
  %v1578 = vadd.f32 0.0, %v1577
  %v1579 = vpop.f32.mrb[0].mxu0
  %v1580 = vadd.f32 0.0, %v1579
  %v1581 = vpop.f32.mrb[0].mxu0
  %v1582 = vadd.f32 0.0, %v1581
  %1583 = vmatprep.mubr.bf16.mxu0 0
  %1584 = vmatmul.mubr.bf16.gmra.mrb[0].mxu0 %v1471
  %v1585 = vpop.f32.mrb[0].mxu0
  %v1586 = vadd.f32 0.0, %v1585
  %v1587 = vpop.f32.mrb[0].mxu0
  %v1588 = vadd.f32 0.0, %v1587
  %v1589 = vpop.f32.mrb[0].mxu0
  %v1590 = vadd.f32 0.0, %v1589
  %v1591 = vpop.f32.mrb[0].mxu0
  %v1592 = vadd.f32 0.0, %v1591
  %1593 = vmatprep.mubr.bf16.mxu0 0
  %1594 = vmatmul.mubr.bf16.gmra.mrb[0].mxu0 %v1474
  %v1595 = vpop.f32.mrb[0].mxu0
  %v1596 = vadd.f32 0.0, %v1595
  %v1597 = vpop.f32.mrb[0].mxu0
  %v1598 = vadd.f32 0.0, %v1597
  %v1599 = vpop.f32.mrb[0].mxu0
  %v1600 = vadd.f32 0.0, %v1599
  %v1601 = vpop.f32.mrb[0].mxu0
  %v1602 = vadd.f32 0.0, %v1601
  %1603 = vmatprep.mubr.bf16.mxu0 0
  %1604 = vmatmul.mubr.bf16.gmra.mrb[0].mxu0 %v1477
  %v1605 = vpop.f32.mrb[0].mxu0
  %v1606 = vadd.f32 0.0, %v1605
  %v1607 = vpop.f32.mrb[0].mxu0
  %v1608 = vadd.f32 0.0, %v1607
  %v1609 = vpop.f32.mrb[0].mxu0
  %v1610 = vadd.f32 0.0, %v1609
  %v1611 = vpop.f32.mrb[0].mxu0
  %v1612 = vadd.f32 0.0, %v1611
  %1613 = vmatprep.mubr.bf16.mxu0 0
  %1614 = vmatmul.mubr.bf16.gmra.mrb[0].mxu0 %v1480
  %v1615 = vpop.f32.mrb[0].mxu0
  %v1616 = vadd.f32 0.0, %v1615
  %v1617 = vpop.f32.mrb[0].mxu0
  %v1618 = vadd.f32 0.0, %v1617
  %v1619 = vpop.f32.mrb[0].mxu0
  %v1620 = vadd.f32 0.0, %v1619
  %v1621 = vpop.f32.mrb[0].mxu0
  %v1622 = vadd.f32 0.0, %v1621
  %1623 = vmatprep.mubr.bf16.mxu0 0
  %1624 = vmatmul.mubr.bf16.gmra.mrb[0].mxu0 %v1483
  %v1625 = vpop.f32.mrb[0].mxu0
  %v1626 = vadd.f32 0.0, %v1625
  %v1627 = vpop.f32.mrb[0].mxu0
  %v1628 = vadd.f32 0.0, %v1627
  %v1629 = vpop.f32.mrb[0].mxu0
  %v1630 = vadd.f32 0.0, %v1629
  %v1631 = vpop.f32.mrb[0].mxu0
  %v1632 = vadd.f32 0.0, %v1631
  %1633 = vmatprep.mubr.bf16.mxu0 0
  %1634 = vmatmul.mubr.bf16.gmra.mrb[0].mxu0 %v1486
  %v1635 = vpop.f32.mrb[0].mxu0
  %v1636 = vadd.f32 0.0, %v1635
  %v1637 = vpop.f32.mrb[0].mxu0
  %v1638 = vpop.f32.mrb[0].mxu0
  %v1639 = vadd.f32 0.0, %v1638
  %v1640 = vpop.f32.mrb[0].mxu0
  %v1641 = vadd.f32 0.0, %v1640
  %1642 = vmatprep.mubr.bf16.mxu0 0
  %1643 = vmatmul.mubr.bf16.gmra.mrb[0].mxu0 %v1489
  %v1644 = vpop.f32.mrb[0].mxu0
  %v1645 = vadd.f32 0.0, %v1644
  %v1646 = vpop.f32.mrb[0].mxu0
  %v1647 = vadd.f32 0.0, %v1646
  %v1648 = vpop.f32.mrb[0].mxu0
  %v1649 = vadd.f32 0.0, %v1648
  %v1650 = vpop.f32.mrb[0].mxu0
  %v1651 = vadd.f32 0.0, %v1650
  %1652 = vmatprep.mubr.bf16.mxu0 0
  %1653 = vmatmul.mubr.bf16.gmra.mrb[0].mxu0 %v1492
  %v1654 = vpop.f32.mrb[0].mxu0
  %v1655 = vadd.f32 0.0, %v1654
  %v1656 = vpop.f32.mrb[0].mxu0
  %v1657 = vadd.f32 0.0, %v1656
  %v1658 = vpop.f32.mrb[0].mxu0
  %v1659 = vadd.f32 0.0, %v1658
  %v1660 = vpop.f32.mrb[0].mxu0
  %v1661 = vadd.f32 0.0, %v1660
  %1662 = vmatprep.mubr.bf16.mxu0 0
  %1663 = vmatmul.mubr.bf16.gmra.mrb[0].mxu0 %v1495
  %v1664 = vpop.f32.mrb[0].mxu0
  %v1665 = vadd.f32 0.0, %v1664
  %v1666 = vpop.f32.mrb[0].mxu0
  %v1667 = vadd.f32 0.0, %v1666
  %v1668 = vpop.f32.mrb[0].mxu0
  %v1669 = vadd.f32 0.0, %v1668
  %v1670 = vpop.f32.mrb[0].mxu0
  %v1671 = vadd.f32 0.0, %v1670
  %1672 = vmatprep.mubr.bf16.mxu0 0
  %1673 = vmatmul.mubr.bf16.gmra.mrb[0].mxu0 %v1498
  %v1674 = vpop.f32.mrb[0].mxu0
  %v1675 = vadd.f32 0.0, %v1674
  %v1676 = vpop.f32.mrb[0].mxu0
  %v1677 = vadd.f32 0.0, %v1676
  %v1678 = vpop.f32.mrb[0].mxu0
  %v1679 = vadd.f32 0.0, %v1678
  %v1680 = vpop.f32.mrb[0].mxu0
  %v1681 = vadd.f32 0.0, %v1680
  %1682 = vmatprep.mubr.bf16.mxu0 0
  %1683 = vmatmul.mubr.bf16.gmra.mrb[0].mxu0 %v1501
  %v1684 = vpop.f32.mrb[0].mxu0
  %v1685 = vadd.f32 0.0, %v1684
  %v1686 = vpop.f32.mrb[0].mxu0
  %v1687 = vadd.f32 0.0, %v1686
  %v1688 = vpop.f32.mrb[0].mxu0
  %v1689 = vadd.f32 0.0, %v1688
  %v1690 = vpop.f32.mrb[0].mxu0
  %v1691 = vadd.f32 0.0, %v1690
  %1692 = vmatprep.mubr.bf16.mxu0 0
  %1693 = vmatmul.mubr.bf16.gmra.mrb[0].mxu0 %v1504
  %v1694 = vpop.f32.mrb[0].mxu0
  %v1695 = vadd.f32 0.0, %v1694
  %v1696 = vpop.f32.mrb[0].mxu0
  %v1697 = vadd.f32 0.0, %v1696
  %v1698 = vpop.f32.mrb[0].mxu0
  %v1699 = vadd.f32 0.0, %v1698
  %v1700 = vpop.f32.mrb[0].mxu0
  %v1701 = vadd.f32 0.0, %v1700
  %1702 = vmatprep.mubr.bf16.mxu0 0
  %1703 = vmatmul.mubr.bf16.gmra.mrb[0].mxu0 %v1507
  %v1704 = vpop.f32.mrb[0].mxu0
  %v1705 = vadd.f32 0.0, %v1704
  %v1706 = vpop.f32.mrb[0].mxu0
  %v1707 = vadd.f32 0.0, %v1706
  %v1708 = vpop.f32.mrb[0].mxu0
  %v1709 = vadd.f32 0.0, %v1708
  %v1710 = vpop.f32.mrb[0].mxu0
  %v1711 = vadd.f32 0.0, %v1710
  %1712 = vmatprep.mubr.bf16.mxu0 0
  %1713 = vmatmul.mubr.bf16.gmra.mrb[0].mxu0 %v1510
  %v1714 = vpop.f32.mrb[0].mxu0
  %v1715 = vadd.f32 0.0, %v1714
  %v1716 = vpop.f32.mrb[0].mxu0
  %v1717 = vadd.f32 0.0, %v1716
  %v1718 = vpop.f32.mrb[0].mxu0
  %v1719 = vadd.f32 0.0, %v1718
  %v1720 = vpop.f32.mrb[0].mxu0
  %v1721 = vadd.f32 0.0, %v1720
  %1722 = vdwg.mxu0
  %v1723 = vld [vmem:[%s5] sm:$0x1]
  %v1725 = vlaneseq
  %v1726 = vshrl.u32 %v1725, 7
  %v1727 = vsub.s32 0, %v1726
  %v1728 = vrot.slane %v1723, %v1727
  %v1730 = vadd.f32 %v1728, 0.0
  %v1731 = vadd.f32 %v1730, %v1547
  %v1732 = vadd.f32 %v1730, %v1550
  %v1733 = vadd.f32 %v1730, %v1556
  %v1734 = vadd.f32 %v1730, %v1560
  %v1735 = vadd.f32 %v1730, %v1566
  %v1736 = vadd.f32 %v1730, %v1570
  %v1737 = vadd.f32 %v1730, %v1576
  %v1738 = vadd.f32 %v1730, %v1580
  %v1739 = vadd.f32 %v1730, %v1586
  %v1740 = vadd.f32 %v1730, %v1590
  %v1741 = vadd.f32 %v1730, %v1596
  %v1742 = vadd.f32 %v1730, %v1600
  %v1743 = vadd.f32 %v1730, %v1606
  %v1744 = vadd.f32 %v1730, %v1610
  %v1745 = vadd.f32 %v1730, %v1616
  %v1746 = vadd.f32 %v1730, %v1620
  %v1747 = vadd.f32 %v1730, %v1626
  %v1748 = vadd.f32 %v1730, %v1636
  %v1749 = vadd.f32 %v1730, %v1639
  %v1750 = vadd.f32 %v1730, %v1645
  %v1751 = vadd.f32 %v1730, %v1649
  %v1752 = vadd.f32 %v1730, %v1655
  %v1753 = vadd.f32 %v1730, %v1659
  %v1754 = vadd.f32 %v1730, %v1665
  %v1755 = vadd.f32 %v1730, %v1669
  %v1756 = vadd.f32 %v1730, %v1675
  %v1757 = vadd.f32 %v1730, %v1679
  %v1758 = vadd.f32 %v1730, %v1685
  %v1759 = vadd.f32 %v1730, %v1689
  %v1760 = vadd.f32 %v1730, %v1695
  %v1761 = vadd.f32 %v1730, %v1699
  %v1762 = vadd.f32 %v1730, %v1705
  %v1763 = vadd.f32 %v1730, %v1709
  %v1764 = vadd.f32 %v1730, %v1715
  %v1799 = vrot.slane %v1547, 1
  %v1800 = vrot.slane %v1550, 1
  %v1801 = vsel %vm534, %v1799, %v1800
  %v1802 = vrot.slane %v1556, 1
  %v1803 = vsel %vm534, %v1800, %v1802
  %v1804 = vrot.slane %v1560, 1
  %v1805 = vsel %vm534, %v1802, %v1804
  %v1806 = vrot.slane %v1566, 1
  %v1807 = vsel %vm534, %v1804, %v1806
  %v1808 = vrot.slane %v1570, 1
  %v1809 = vsel %vm534, %v1806, %v1808
  %v1810 = vrot.slane %v1576, 1
  %v1811 = vsel %vm534, %v1808, %v1810
  %v1812 = vrot.slane %v1580, 1
  %v1813 = vsel %vm534, %v1810, %v1812
  %v1814 = vrot.slane %v1586, 1
  %v1815 = vsel %vm534, %v1812, %v1814
  %v1816 = vrot.slane %v1590, 1
  %v1817 = vsel %vm534, %v1814, %v1816
  %v1818 = vrot.slane %v1596, 1
  %v1819 = vsel %vm534, %v1816, %v1818
  %v1820 = vrot.slane %v1600, 1
  %v1821 = vsel %vm534, %v1818, %v1820
  %v1822 = vrot.slane %v1606, 1
  %v1823 = vsel %vm534, %v1820, %v1822
  %v1824 = vrot.slane %v1610, 1
  %v1825 = vsel %vm534, %v1822, %v1824
  %v1826 = vrot.slane %v1616, 1
  %v1827 = vsel %vm534, %v1824, %v1826
  %v1828 = vrot.slane %v1620, 1
  %v1829 = vsel %vm534, %v1826, %v1828
  %v1830 = vrot.slane %v1626, 1
  %v1831 = vsel %vm534, %v1828, %v1830
  %v1832 = vrot.slane %v1636, 1
  %v1833 = vrot.slane %v1639, 1
  %v1834 = vsel %vm534, %v1832, %v1833
  %v1835 = vrot.slane %v1645, 1
  %v1836 = vsel %vm534, %v1833, %v1835
  %v1837 = vrot.slane %v1649, 1
  %v1838 = vsel %vm534, %v1835, %v1837
  %v1839 = vrot.slane %v1655, 1
  %v1840 = vsel %vm534, %v1837, %v1839
  %v1841 = vrot.slane %v1659, 1
  %v1842 = vsel %vm534, %v1839, %v1841
  %v1843 = vrot.slane %v1665, 1
  %v1844 = vsel %vm534, %v1841, %v1843
  %v1845 = vrot.slane %v1669, 1
  %v1846 = vsel %vm534, %v1843, %v1845
  %v1847 = vrot.slane %v1675, 1
  %v1848 = vsel %vm534, %v1845, %v1847
  %v1849 = vrot.slane %v1679, 1
  %v1850 = vsel %vm534, %v1847, %v1849
  %v1851 = vrot.slane %v1685, 1
  %v1852 = vsel %vm534, %v1849, %v1851
  %v1853 = vrot.slane %v1689, 1
  %v1854 = vsel %vm534, %v1851, %v1853
  %v1855 = vrot.slane %v1695, 1
  %v1856 = vsel %vm534, %v1853, %v1855
  %v1857 = vrot.slane %v1699, 1
  %v1858 = vsel %vm534, %v1855, %v1857
  %v1859 = vrot.slane %v1705, 1
  %v1860 = vsel %vm534, %v1857, %v1859
  %v1861 = vrot.slane %v1709, 1
  %v1862 = vsel %vm534, %v1859, %v1861
  %v1863 = vrot.slane %v1715, 1
  %v1864 = vsel %vm534, %v1861, %v1863
  %1865 = vrot.lane.b32.xlu0 %v1801, 96
  %v1866 = vpop.permute.xlu0 %1865
  %1867 = vrot.lane.b32.xlu0 %v1803, 96
  %v1868 = vpop.permute.xlu0 %1867
  %1869 = vrot.lane.b32.xlu0 %v1805, 96
  %v1870 = vpop.permute.xlu0 %1869
  %1871 = vrot.lane.b32.xlu0 %v1807, 96
  %v1872 = vpop.permute.xlu0 %1871
  %1873 = vrot.lane.b32.xlu0 %v1809, 96
  %v1874 = vpop.permute.xlu0 %1873
  %1875 = vrot.lane.b32.xlu0 %v1811, 96
  %v1876 = vpop.permute.xlu0 %1875
  %1877 = vrot.lane.b32.xlu0 %v1813, 96
  %v1878 = vpop.permute.xlu0 %1877
  %1879 = vrot.lane.b32.xlu0 %v1815, 96
  %v1880 = vpop.permute.xlu0 %1879
  %1881 = vrot.lane.b32.xlu0 %v1817, 96
  %v1882 = vpop.permute.xlu0 %1881
  %1883 = vrot.lane.b32.xlu0 %v1819, 96
  %v1884 = vpop.permute.xlu0 %1883
  %1885 = vrot.lane.b32.xlu0 %v1821, 96
  %v1886 = vpop.permute.xlu0 %1885
  %1887 = vrot.lane.b32.xlu0 %v1823, 96
  %v1888 = vpop.permute.xlu0 %1887
  %1889 = vrot.lane.b32.xlu0 %v1825, 96
  %v1890 = vpop.permute.xlu0 %1889
  %1891 = vrot.lane.b32.xlu0 %v1827, 96
  %v1892 = vpop.permute.xlu0 %1891
  %1893 = vrot.lane.b32.xlu0 %v1829, 96
  %v1894 = vpop.permute.xlu0 %1893
  %1895 = vrot.lane.b32.xlu0 %v1831, 96
  %v1896 = vpop.permute.xlu0 %1895
  %1897 = vrot.lane.b32.xlu0 %v1830, 96
  %v1898 = vpop.permute.xlu0 %1897
  %1899 = vrot.lane.b32.xlu0 %v1834, 96
  %v1900 = vpop.permute.xlu0 %1899
  %1901 = vrot.lane.b32.xlu0 %v1836, 96
  %v1902 = vpop.permute.xlu0 %1901
  %1903 = vrot.lane.b32.xlu0 %v1838, 96
  %v1904 = vpop.permute.xlu0 %1903
  %1905 = vrot.lane.b32.xlu0 %v1840, 96
  %v1906 = vpop.permute.xlu0 %1905
  %1907 = vrot.lane.b32.xlu0 %v1842, 96
  %v1908 = vpop.permute.xlu0 %1907
  %1909 = vrot.lane.b32.xlu0 %v1844, 96
  %v1910 = vpop.permute.xlu0 %1909
  %1911 = vrot.lane.b32.xlu0 %v1846, 96
  %v1912 = vpop.permute.xlu0 %1911
  %1913 = vrot.lane.b32.xlu0 %v1848, 96
  %v1914 = vpop.permute.xlu0 %1913
  %1915 = vrot.lane.b32.xlu0 %v1850, 96
  %v1916 = vpop.permute.xlu0 %1915
  %1917 = vrot.lane.b32.xlu0 %v1852, 96
  %v1918 = vpop.permute.xlu0 %1917
  %1919 = vrot.lane.b32.xlu0 %v1854, 96
  %v1920 = vpop.permute.xlu0 %1919
  %1921 = vrot.lane.b32.xlu0 %v1856, 96
  %v1922 = vpop.permute.xlu0 %1921
  %1923 = vrot.lane.b32.xlu0 %v1858, 96
  %v1924 = vpop.permute.xlu0 %1923
  %1925 = vrot.lane.b32.xlu0 %v1860, 96
  %v1926 = vpop.permute.xlu0 %1925
  %1927 = vrot.lane.b32.xlu0 %v1862, 96
  %v1928 = vpop.permute.xlu0 %1927
  %1929 = vrot.lane.b32.xlu0 %v1864, 96
  %v1930 = vpop.permute.xlu0 %1929
  %1931 = vrot.lane.b32.xlu0 %v1863, 96
  %v1932 = vpop.permute.xlu0 %1931
  %v1967 = vadd.f32 %v1731, %v1866
  %v1968 = vadd.f32 %v1732, %v1868
  %v1969 = vadd.f32 %v1733, %v1870
  %v1970 = vadd.f32 %v1734, %v1872
  %v1971 = vadd.f32 %v1735, %v1874
  %v1972 = vadd.f32 %v1736, %v1876
  %v1973 = vadd.f32 %v1737, %v1878
  %v1974 = vadd.f32 %v1738, %v1880
  %v1975 = vadd.f32 %v1739, %v1882
  %v1976 = vadd.f32 %v1740, %v1884
  %v1977 = vadd.f32 %v1741, %v1886
  %v1978 = vadd.f32 %v1742, %v1888
  %v1979 = vadd.f32 %v1743, %v1890
  %v1980 = vadd.f32 %v1744, %v1892
  %v1981 = vadd.f32 %v1745, %v1894
  %v1982 = vadd.f32 %v1746, %v1896
  %v1983 = vadd.f32 %v1747, %v1898
  %v1984 = vadd.f32 %v1748, %v1900
  %v1985 = vadd.f32 %v1749, %v1902
  %v1986 = vadd.f32 %v1750, %v1904
  %v1987 = vadd.f32 %v1751, %v1906
  %v1988 = vadd.f32 %v1752, %v1908
  %v1989 = vadd.f32 %v1753, %v1910
  %v1990 = vadd.f32 %v1754, %v1912
  %v1991 = vadd.f32 %v1755, %v1914
  %v1992 = vadd.f32 %v1756, %v1916
  %v1993 = vadd.f32 %v1757, %v1918
  %v1994 = vadd.f32 %v1758, %v1920
  %v1995 = vadd.f32 %v1759, %v1922
  %v1996 = vadd.f32 %v1760, %v1924
  %v1997 = vadd.f32 %v1761, %v1926
  %v1998 = vadd.f32 %v1762, %v1928
  %v1999 = vadd.f32 %v1763, %v1930
  %v2000 = vadd.f32 %v1764, %v1932
  %v2001 = vrot.slane %v1550, 2
  %v2002 = vrot.slane %v1556, 2
  %v2003 = vsel %vm737, %v2001, %v2002
  %v2004 = vrot.slane %v1560, 2
  %v2005 = vsel %vm737, %v2002, %v2004
  %v2006 = vrot.slane %v1566, 2
  %v2007 = vsel %vm737, %v2004, %v2006
  %v2008 = vrot.slane %v1570, 2
  %v2009 = vsel %vm737, %v2006, %v2008
  %v2010 = vrot.slane %v1576, 2
  %v2011 = vsel %vm737, %v2008, %v2010
  %v2012 = vrot.slane %v1580, 2
  %v2013 = vsel %vm737, %v2010, %v2012
  %v2014 = vrot.slane %v1586, 2
  %v2015 = vsel %vm737, %v2012, %v2014
  %v2016 = vrot.slane %v1590, 2
  %v2017 = vsel %vm737, %v2014, %v2016
  %v2018 = vrot.slane %v1596, 2
  %v2019 = vsel %vm737, %v2016, %v2018
  %v2020 = vrot.slane %v1600, 2
  %v2021 = vsel %vm737, %v2018, %v2020
  %v2022 = vrot.slane %v1606, 2
  %v2023 = vsel %vm737, %v2020, %v2022
  %v2024 = vrot.slane %v1610, 2
  %v2025 = vsel %vm737, %v2022, %v2024
  %v2026 = vrot.slane %v1616, 2
  %v2027 = vsel %vm737, %v2024, %v2026
  %v2028 = vrot.slane %v1620, 2
  %v2029 = vsel %vm737, %v2026, %v2028
  %v2030 = vrot.slane %v1626, 2
  %v2031 = vsel %vm737, %v2028, %v2030
  %v2032 = vrot.slane %v1639, 2
  %v2033 = vrot.slane %v1645, 2
  %v2034 = vsel %vm737, %v2032, %v2033
  %v2035 = vrot.slane %v1649, 2
  %v2036 = vsel %vm737, %v2033, %v2035
  %v2037 = vrot.slane %v1655, 2
  %v2038 = vsel %vm737, %v2035, %v2037
  %v2039 = vrot.slane %v1659, 2
  %v2040 = vsel %vm737, %v2037, %v2039
  %v2041 = vrot.slane %v1665, 2
  %v2042 = vsel %vm737, %v2039, %v2041
  %v2043 = vrot.slane %v1669, 2
  %v2044 = vsel %vm737, %v2041, %v2043
  %v2045 = vrot.slane %v1675, 2
  %v2046 = vsel %vm737, %v2043, %v2045
  %v2047 = vrot.slane %v1679, 2
  %v2048 = vsel %vm737, %v2045, %v2047
  %v2049 = vrot.slane %v1685, 2
  %v2050 = vsel %vm737, %v2047, %v2049
  %v2051 = vrot.slane %v1689, 2
  %v2052 = vsel %vm737, %v2049, %v2051
  %v2053 = vrot.slane %v1695, 2
  %v2054 = vsel %vm737, %v2051, %v2053
  %v2055 = vrot.slane %v1699, 2
  %v2056 = vsel %vm737, %v2053, %v2055
  %v2057 = vrot.slane %v1705, 2
  %v2058 = vsel %vm737, %v2055, %v2057
  %v2059 = vrot.slane %v1709, 2
  %v2060 = vsel %vm737, %v2057, %v2059
  %v2061 = vrot.slane %v1715, 2
  %v2062 = vsel %vm737, %v2059, %v2061
  %2063 = vrot.lane.b32.xlu0 %v2001, 64
  %v2064 = vpop.permute.xlu0 %2063
  %2065 = vrot.lane.b32.xlu0 %v2003, 64
  %v2066 = vpop.permute.xlu0 %2065
  %2067 = vrot.lane.b32.xlu0 %v2005, 64
  %v2068 = vpop.permute.xlu0 %2067
  %2069 = vrot.lane.b32.xlu0 %v2007, 64
  %v2070 = vpop.permute.xlu0 %2069
  %2071 = vrot.lane.b32.xlu0 %v2009, 64
  %v2072 = vpop.permute.xlu0 %2071
  %2073 = vrot.lane.b32.xlu0 %v2011, 64
  %v2074 = vpop.permute.xlu0 %2073
  %2075 = vrot.lane.b32.xlu0 %v2013, 64
  %v2076 = vpop.permute.xlu0 %2075
  %2077 = vrot.lane.b32.xlu0 %v2015, 64
  %v2078 = vpop.permute.xlu0 %2077
  %2079 = vrot.lane.b32.xlu0 %v2017, 64
  %v2080 = vpop.permute.xlu0 %2079
  %2081 = vrot.lane.b32.xlu0 %v2019, 64
  %v2082 = vpop.permute.xlu0 %2081
  %2083 = vrot.lane.b32.xlu0 %v2021, 64
  %v2084 = vpop.permute.xlu0 %2083
  %2085 = vrot.lane.b32.xlu0 %v2023, 64
  %v2086 = vpop.permute.xlu0 %2085
  %2087 = vrot.lane.b32.xlu0 %v2025, 64
  %v2088 = vpop.permute.xlu0 %2087
  %2089 = vrot.lane.b32.xlu0 %v2027, 64
  %v2090 = vpop.permute.xlu0 %2089
  %2091 = vrot.lane.b32.xlu0 %v2029, 64
  %v2092 = vpop.permute.xlu0 %2091
  %2093 = vrot.lane.b32.xlu0 %v2031, 64
  %v2094 = vpop.permute.xlu0 %2093
  %2095 = vrot.lane.b32.xlu0 %v2030, 64
  %v2096 = vpop.permute.xlu0 %2095
  %2097 = vrot.lane.b32.xlu0 %v2032, 64
  %v2098 = vpop.permute.xlu0 %2097
  %2099 = vrot.lane.b32.xlu0 %v2034, 64
  %v2100 = vpop.permute.xlu0 %2099
  %2101 = vrot.lane.b32.xlu0 %v2036, 64
  %v2102 = vpop.permute.xlu0 %2101
  %2103 = vrot.lane.b32.xlu0 %v2038, 64
  %v2104 = vpop.permute.xlu0 %2103
  %2105 = vrot.lane.b32.xlu0 %v2040, 64
  %v2106 = vpop.permute.xlu0 %2105
  %2107 = vrot.lane.b32.xlu0 %v2042, 64
  %v2108 = vpop.permute.xlu0 %2107
  %2109 = vrot.lane.b32.xlu0 %v2044, 64
  %v2110 = vpop.permute.xlu0 %2109
  %2111 = vrot.lane.b32.xlu0 %v2046, 64
  %v2112 = vpop.permute.xlu0 %2111
  %2113 = vrot.lane.b32.xlu0 %v2048, 64
  %v2114 = vpop.permute.xlu0 %2113
  %2115 = vrot.lane.b32.xlu0 %v2050, 64
  %v2116 = vpop.permute.xlu0 %2115
  %2117 = vrot.lane.b32.xlu0 %v2052, 64
  %v2118 = vpop.permute.xlu0 %2117
  %2119 = vrot.lane.b32.xlu0 %v2054, 64
  %v2120 = vpop.permute.xlu0 %2119
  %2121 = vrot.lane.b32.xlu0 %v2056, 64
  %v2122 = vpop.permute.xlu0 %2121
  %2123 = vrot.lane.b32.xlu0 %v2058, 64
  %v2124 = vpop.permute.xlu0 %2123
  %2125 = vrot.lane.b32.xlu0 %v2060, 64
  %v2126 = vpop.permute.xlu0 %2125
  %2127 = vrot.lane.b32.xlu0 %v2062, 64
  %v2128 = vpop.permute.xlu0 %2127
  %2129 = vrot.lane.b32.xlu0 %v2061, 64
  %v2130 = vpop.permute.xlu0 %2129
  %v2165 = vadd.f32 %v1967, %v2064
  %v2166 = vadd.f32 %v1968, %v2066
  %v2167 = vadd.f32 %v1969, %v2068
  %v2168 = vadd.f32 %v1970, %v2070
  %v2169 = vadd.f32 %v1971, %v2072
  %v2170 = vadd.f32 %v1972, %v2074
  %v2171 = vadd.f32 %v1973, %v2076
  %v2172 = vadd.f32 %v1974, %v2078
  %v2173 = vadd.f32 %v1975, %v2080
  %v2174 = vadd.f32 %v1976, %v2082
  %v2175 = vadd.f32 %v1977, %v2084
  %v2176 = vadd.f32 %v1978, %v2086
  %v2177 = vadd.f32 %v1979, %v2088
  %v2178 = vadd.f32 %v1980, %v2090
  %v2179 = vadd.f32 %v1981, %v2092
  %v2180 = vadd.f32 %v1982, %v2094
  %v2181 = vadd.f32 %v1983, %v2096
  %v2182 = vadd.f32 %v1984, %v2098
  %v2183 = vadd.f32 %v1985, %v2100
  %v2184 = vadd.f32 %v1986, %v2102
  %v2185 = vadd.f32 %v1987, %v2104
  %v2186 = vadd.f32 %v1988, %v2106
  %v2187 = vadd.f32 %v1989, %v2108
  %v2188 = vadd.f32 %v1990, %v2110
  %v2189 = vadd.f32 %v1991, %v2112
  %v2190 = vadd.f32 %v1992, %v2114
  %v2191 = vadd.f32 %v1993, %v2116
  %v2192 = vadd.f32 %v1994, %v2118
  %v2193 = vadd.f32 %v1995, %v2120
  %v2194 = vadd.f32 %v1996, %v2122
  %v2195 = vadd.f32 %v1997, %v2124
  %v2196 = vadd.f32 %v1998, %v2126
  %v2197 = vadd.f32 %v1999, %v2128
  %v2198 = vadd.f32 %v2000, %v2130
  %v2201 = vrot.slane %v1550, 3
  %v2202 = vrot.slane %v1556, 3
  %v2203 = vsel %vm938, %v2201, %v2202
  %v2204 = vrot.slane %v1560, 3
  %v2205 = vsel %vm938, %v2202, %v2204
  %v2206 = vrot.slane %v1566, 3
  %v2207 = vsel %vm938, %v2204, %v2206
  %v2208 = vrot.slane %v1570, 3
  %v2209 = vsel %vm938, %v2206, %v2208
  %v2210 = vrot.slane %v1576, 3
  %v2211 = vsel %vm938, %v2208, %v2210
  %v2212 = vrot.slane %v1580, 3
  %v2213 = vsel %vm938, %v2210, %v2212
  %v2214 = vrot.slane %v1586, 3
  %v2215 = vsel %vm938, %v2212, %v2214
  %v2216 = vrot.slane %v1590, 3
  %v2217 = vsel %vm938, %v2214, %v2216
  %v2218 = vrot.slane %v1596, 3
  %v2219 = vsel %vm938, %v2216, %v2218
  %v2220 = vrot.slane %v1600, 3
  %v2221 = vsel %vm938, %v2218, %v2220
  %v2222 = vrot.slane %v1606, 3
  %v2223 = vsel %vm938, %v2220, %v2222
  %v2224 = vrot.slane %v1610, 3
  %v2225 = vsel %vm938, %v2222, %v2224
  %v2226 = vrot.slane %v1616, 3
  %v2227 = vsel %vm938, %v2224, %v2226
  %v2228 = vrot.slane %v1620, 3
  %v2229 = vsel %vm938, %v2226, %v2228
  %v2230 = vrot.slane %v1626, 3
  %v2231 = vsel %vm938, %v2228, %v2230
  %v2232 = vrot.slane %v1630, 3
  %v2233 = vsel %vm938, %v2230, %v2232
  %v2234 = vrot.slane %v1639, 3
  %v2235 = vrot.slane %v1645, 3
  %v2236 = vsel %vm938, %v2234, %v2235
  %v2237 = vrot.slane %v1649, 3
  %v2238 = vsel %vm938, %v2235, %v2237
  %v2239 = vrot.slane %v1655, 3
  %v2240 = vsel %vm938, %v2237, %v2239
  %v2241 = vrot.slane %v1659, 3
  %v2242 = vsel %vm938, %v2239, %v2241
  %v2243 = vrot.slane %v1665, 3
  %v2244 = vsel %vm938, %v2241, %v2243
  %v2245 = vrot.slane %v1669, 3
  %v2246 = vsel %vm938, %v2243, %v2245
  %v2247 = vrot.slane %v1675, 3
  %v2248 = vsel %vm938, %v2245, %v2247
  %v2249 = vrot.slane %v1679, 3
  %v2250 = vsel %vm938, %v2247, %v2249
  %v2251 = vrot.slane %v1685, 3
  %v2252 = vsel %vm938, %v2249, %v2251
  %v2253 = vrot.slane %v1689, 3
  %v2254 = vsel %vm938, %v2251, %v2253
  %v2255 = vrot.slane %v1695, 3
  %v2256 = vsel %vm938, %v2253, %v2255
  %v2257 = vrot.slane %v1699, 3
  %v2258 = vsel %vm938, %v2255, %v2257
  %v2259 = vrot.slane %v1705, 3
  %v2260 = vsel %vm938, %v2257, %v2259
  %v2261 = vrot.slane %v1709, 3
  %v2262 = vsel %vm938, %v2259, %v2261
  %v2263 = vrot.slane %v1715, 3
  %v2264 = vsel %vm938, %v2261, %v2263
  %v2265 = vrot.slane %v1719, 3
  %v2266 = vsel %vm938, %v2263, %v2265
  %2267 = vrot.lane.b32.xlu0 %v2201, 32
  %v2268 = vpop.permute.xlu0 %2267
  %2269 = vrot.lane.b32.xlu0 %v2203, 32
  %v2270 = vpop.permute.xlu0 %2269
  %2271 = vrot.lane.b32.xlu0 %v2205, 32
  %v2272 = vpop.permute.xlu0 %2271
  %2273 = vrot.lane.b32.xlu0 %v2207, 32
  %v2274 = vpop.permute.xlu0 %2273
  %2275 = vrot.lane.b32.xlu0 %v2209, 32
  %v2276 = vpop.permute.xlu0 %2275
  %2277 = vrot.lane.b32.xlu0 %v2211, 32
  %v2278 = vpop.permute.xlu0 %2277
  %2279 = vrot.lane.b32.xlu0 %v2213, 32
  %v2280 = vpop.permute.xlu0 %2279
  %2281 = vrot.lane.b32.xlu0 %v2215, 32
  %v2282 = vpop.permute.xlu0 %2281
  %2283 = vrot.lane.b32.xlu0 %v2217, 32
  %v2284 = vpop.permute.xlu0 %2283
  %2285 = vrot.lane.b32.xlu0 %v2219, 32
  %v2286 = vpop.permute.xlu0 %2285
  %2287 = vrot.lane.b32.xlu0 %v2221, 32
  %v2288 = vpop.permute.xlu0 %2287
  %2289 = vrot.lane.b32.xlu0 %v2223, 32
  %v2290 = vpop.permute.xlu0 %2289
  %2291 = vrot.lane.b32.xlu0 %v2225, 32
  %v2292 = vpop.permute.xlu0 %2291
  %2293 = vrot.lane.b32.xlu0 %v2227, 32
  %v2294 = vpop.permute.xlu0 %2293
  %2295 = vrot.lane.b32.xlu0 %v2229, 32
  %v2296 = vpop.permute.xlu0 %2295
  %2297 = vrot.lane.b32.xlu0 %v2231, 32
  %v2298 = vpop.permute.xlu0 %2297
  %2299 = vrot.lane.b32.xlu0 %v2233, 32
  %v2300 = vpop.permute.xlu0 %2299
  %2301 = vrot.lane.b32.xlu0 %v2234, 32
  %v2302 = vpop.permute.xlu0 %2301
  %2303 = vrot.lane.b32.xlu0 %v2236, 32
  %v2304 = vpop.permute.xlu0 %2303
  %2305 = vrot.lane.b32.xlu0 %v2238, 32
  %v2306 = vpop.permute.xlu0 %2305
  %2307 = vrot.lane.b32.xlu0 %v2240, 32
  %v2308 = vpop.permute.xlu0 %2307
  %2309 = vrot.lane.b32.xlu0 %v2242, 32
  %v2310 = vpop.permute.xlu0 %2309
  %2311 = vrot.lane.b32.xlu0 %v2244, 32
  %v2312 = vpop.permute.xlu0 %2311
  %2313 = vrot.lane.b32.xlu0 %v2246, 32
  %v2314 = vpop.permute.xlu0 %2313
  %2315 = vrot.lane.b32.xlu0 %v2248, 32
  %v2316 = vpop.permute.xlu0 %2315
  %2317 = vrot.lane.b32.xlu0 %v2250, 32
  %v2318 = vpop.permute.xlu0 %2317
  %2319 = vrot.lane.b32.xlu0 %v2252, 32
  %v2320 = vpop.permute.xlu0 %2319
  %2321 = vrot.lane.b32.xlu0 %v2254, 32
  %v2322 = vpop.permute.xlu0 %2321
  %2323 = vrot.lane.b32.xlu0 %v2256, 32
  %v2324 = vpop.permute.xlu0 %2323
  %2325 = vrot.lane.b32.xlu0 %v2258, 32
  %v2326 = vpop.permute.xlu0 %2325
  %2327 = vrot.lane.b32.xlu0 %v2260, 32
  %v2328 = vpop.permute.xlu0 %2327
  %2329 = vrot.lane.b32.xlu0 %v2262, 32
  %v2330 = vpop.permute.xlu0 %2329
  %2331 = vrot.lane.b32.xlu0 %v2264, 32
  %v2332 = vpop.permute.xlu0 %2331
  %2333 = vrot.lane.b32.xlu0 %v2266, 32
  %v2334 = vpop.permute.xlu0 %2333
  %v2369 = vadd.f32 %v2165, %v2268
  %v2370 = vadd.f32 %v2166, %v2270
  %v2371 = vadd.f32 %v2167, %v2272
  %v2372 = vadd.f32 %v2168, %v2274
  %v2373 = vadd.f32 %v2169, %v2276
  %v2374 = vadd.f32 %v2170, %v2278
  %v2375 = vadd.f32 %v2171, %v2280
  %v2376 = vadd.f32 %v2172, %v2282
  %v2377 = vadd.f32 %v2173, %v2284
  %v2378 = vadd.f32 %v2174, %v2286
  %v2379 = vadd.f32 %v2175, %v2288
  %v2380 = vadd.f32 %v2176, %v2290
  %v2381 = vadd.f32 %v2177, %v2292
  %v2382 = vadd.f32 %v2178, %v2294
  %v2383 = vadd.f32 %v2179, %v2296
  %v2384 = vadd.f32 %v2180, %v2298
  %v2385 = vadd.f32 %v2181, %v2300
  %v2386 = vadd.f32 %v2182, %v2302
  %v2387 = vadd.f32 %v2183, %v2304
  %v2388 = vadd.f32 %v2184, %v2306
  %v2389 = vadd.f32 %v2185, %v2308
  %v2390 = vadd.f32 %v2186, %v2310
  %v2391 = vadd.f32 %v2187, %v2312
  %v2392 = vadd.f32 %v2188, %v2314
  %v2393 = vadd.f32 %v2189, %v2316
  %v2394 = vadd.f32 %v2190, %v2318
  %v2395 = vadd.f32 %v2191, %v2320
  %v2396 = vadd.f32 %v2192, %v2322
  %v2397 = vadd.f32 %v2193, %v2324
  %v2398 = vadd.f32 %v2194, %v2326
  %v2399 = vadd.f32 %v2195, %v2328
  %v2400 = vadd.f32 %v2196, %v2330
  %v2401 = vadd.f32 %v2197, %v2332
  %v2402 = vadd.f32 %v2198, %v2334
  %v2437 = vrot.slane %v1552, 4
  %v2438 = vrot.slane %v1558, 4
  %v2439 = vsel %vm1175, %v2437, %v2438
  %v2440 = vrot.slane %v1562, 4
  %v2441 = vsel %vm1175, %v2438, %v2440
  %v2442 = vrot.slane %v1568, 4
  %v2443 = vsel %vm1175, %v2440, %v2442
  %v2444 = vrot.slane %v1572, 4
  %v2445 = vsel %vm1175, %v2442, %v2444
  %v2446 = vrot.slane %v1578, 4
  %v2447 = vsel %vm1175, %v2444, %v2446
  %v2448 = vrot.slane %v1582, 4
  %v2449 = vsel %vm1175, %v2446, %v2448
  %v2450 = vrot.slane %v1588, 4
  %v2451 = vsel %vm1175, %v2448, %v2450
  %v2452 = vrot.slane %v1592, 4
  %v2453 = vsel %vm1175, %v2450, %v2452
  %v2454 = vrot.slane %v1598, 4
  %v2455 = vsel %vm1175, %v2452, %v2454
  %v2456 = vrot.slane %v1602, 4
  %v2457 = vsel %vm1175, %v2454, %v2456
  %v2458 = vrot.slane %v1608, 4
  %v2459 = vsel %vm1175, %v2456, %v2458
  %v2460 = vrot.slane %v1612, 4
  %v2461 = vsel %vm1175, %v2458, %v2460
  %v2462 = vrot.slane %v1618, 4
  %v2463 = vsel %vm1175, %v2460, %v2462
  %v2464 = vrot.slane %v1622, 4
  %v2465 = vsel %vm1175, %v2462, %v2464
  %v2466 = vrot.slane %v1628, 4
  %v2467 = vsel %vm1175, %v2464, %v2466
  %v2468 = vrot.slane %v1632, 4
  %v2469 = vsel %vm1175, %v2466, %v2468
  %v2470 = vrot.slane %v1641, 4
  %v2471 = vrot.slane %v1647, 4
  %v2472 = vsel %vm1175, %v2470, %v2471
  %v2473 = vrot.slane %v1651, 4
  %v2474 = vsel %vm1175, %v2471, %v2473
  %v2475 = vrot.slane %v1657, 4
  %v2476 = vsel %vm1175, %v2473, %v2475
  %v2477 = vrot.slane %v1661, 4
  %v2478 = vsel %vm1175, %v2475, %v2477
  %v2479 = vrot.slane %v1667, 4
  %v2480 = vsel %vm1175, %v2477, %v2479
  %v2481 = vrot.slane %v1671, 4
  %v2482 = vsel %vm1175, %v2479, %v2481
  %v2483 = vrot.slane %v1677, 4
  %v2484 = vsel %vm1175, %v2481, %v2483
  %v2485 = vrot.slane %v1681, 4
  %v2486 = vsel %vm1175, %v2483, %v2485
  %v2487 = vrot.slane %v1687, 4
  %v2488 = vsel %vm1175, %v2485, %v2487
  %v2489 = vrot.slane %v1691, 4
  %v2490 = vsel %vm1175, %v2487, %v2489
  %v2491 = vrot.slane %v1697, 4
  %v2492 = vsel %vm1175, %v2489, %v2491
  %v2493 = vrot.slane %v1701, 4
  %v2494 = vsel %vm1175, %v2491, %v2493
  %v2495 = vrot.slane %v1707, 4
  %v2496 = vsel %vm1175, %v2493, %v2495
  %v2497 = vrot.slane %v1711, 4
  %v2498 = vsel %vm1175, %v2495, %v2497
  %v2499 = vrot.slane %v1717, 4
  %v2500 = vsel %vm1175, %v2497, %v2499
  %v2501 = vrot.slane %v1721, 4
  %v2502 = vsel %vm1175, %v2499, %v2501
  %v2537 = vadd.f32 %v2369, %v2437
  %v2538 = vadd.f32 %v2370, %v2439
  %v2539 = vadd.f32 %v2371, %v2441
  %v2540 = vadd.f32 %v2372, %v2443
  %v2541 = vadd.f32 %v2373, %v2445
  %v2542 = vadd.f32 %v2374, %v2447
  %v2543 = vadd.f32 %v2375, %v2449
  %v2544 = vadd.f32 %v2376, %v2451
  %v2545 = vadd.f32 %v2377, %v2453
  %v2546 = vadd.f32 %v2378, %v2455
  %v2547 = vadd.f32 %v2379, %v2457
  %v2548 = vadd.f32 %v2380, %v2459
  %v2549 = vadd.f32 %v2381, %v2461
  %v2550 = vadd.f32 %v2382, %v2463
  %v2551 = vadd.f32 %v2383, %v2465
  %v2552 = vadd.f32 %v2384, %v2467
  %v2553 = vadd.f32 %v2385, %v2469
  %v2554 = vadd.f32 %v2386, %v2470
  %v2555 = vadd.f32 %v2387, %v2472
  %v2556 = vadd.f32 %v2388, %v2474
  %v2557 = vadd.f32 %v2389, %v2476
  %v2558 = vadd.f32 %v2390, %v2478
  %v2559 = vadd.f32 %v2391, %v2480
  %v2560 = vadd.f32 %v2392, %v2482
  %v2561 = vadd.f32 %v2393, %v2484
  %v2562 = vadd.f32 %v2394, %v2486
  %v2563 = vadd.f32 %v2395, %v2488
  %v2564 = vadd.f32 %v2396, %v2490
  %v2565 = vadd.f32 %v2397, %v2492
  %v2566 = vadd.f32 %v2398, %v2494
  %v2567 = vadd.f32 %v2399, %v2496
  %v2568 = vadd.f32 %v2400, %v2498
  %v2569 = vadd.f32 %v2401, %v2500
  %v2570 = vadd.f32 %v2402, %v2502
  %v2571 = vmax.f32 %v2537, 0.0
  %v2572 = vmax.f32 %v2538, 0.0
  %v2573 = vmax.f32 %v2539, 0.0
  %v2574 = vmax.f32 %v2540, 0.0
  %v2575 = vmax.f32 %v2541, 0.0
  %v2576 = vmax.f32 %v2542, 0.0
  %v2577 = vmax.f32 %v2543, 0.0
  %v2578 = vmax.f32 %v2544, 0.0
  %v2579 = vmax.f32 %v2545, 0.0
  %v2580 = vmax.f32 %v2546, 0.0
  %v2581 = vmax.f32 %v2547, 0.0
  %v2582 = vmax.f32 %v2548, 0.0
  %v2583 = vmax.f32 %v2549, 0.0
  %v2584 = vmax.f32 %v2550, 0.0
  %v2585 = vmax.f32 %v2551, 0.0
  %v2586 = vmax.f32 %v2552, 0.0
  %v2587 = vmax.f32 %v2553, 0.0
  %v2588 = vmax.f32 %v2554, 0.0
  %v2589 = vmax.f32 %v2555, 0.0
  %v2590 = vmax.f32 %v2556, 0.0
  %v2591 = vmax.f32 %v2557, 0.0
  %v2592 = vmax.f32 %v2558, 0.0
  %v2593 = vmax.f32 %v2559, 0.0
  %v2594 = vmax.f32 %v2560, 0.0
  %v2595 = vmax.f32 %v2561, 0.0
  %v2596 = vmax.f32 %v2562, 0.0
  %v2597 = vmax.f32 %v2563, 0.0
  %v2598 = vmax.f32 %v2564, 0.0
  %v2599 = vmax.f32 %v2565, 0.0
  %v2600 = vmax.f32 %v2566, 0.0
  %v2601 = vmax.f32 %v2567, 0.0
  %v2602 = vmax.f32 %v2568, 0.0
  %v2603 = vmax.f32 %v2569, 0.0
  %v2604 = vmax.f32 %v2570, 0.0
  %2605 = vst.msk [vmem:[#allocation3 + $0x2] sm:$0xc0] %vm1344, %v2571
  %2606 = vst.msk [vmem:[#allocation3 + $0xa] sm:$0xff] %vm117, %v2572
  %2607 = vst.msk [vmem:[#allocation3 + $0x12] sm:$0xff] %vm117, %v2573
  %2608 = vst.msk [vmem:[#allocation3 + $0x1a] sm:$0xff] %vm117, %v2574
  %2609 = vst.msk [vmem:[#allocation3 + $0x22] sm:$0xff] %vm117, %v2575
  %2610 = vst.msk [vmem:[#allocation3 + $0x2a] sm:$0xff] %vm117, %v2576
  %2611 = vst.msk [vmem:[#allocation3 + $0x32] sm:$0xff] %vm117, %v2577
  %2612 = vst.msk [vmem:[#allocation3 + $0x3a] sm:$0xff] %vm117, %v2578
  %2613 = vst.msk [vmem:[#allocation3 + $0x42] sm:$0xff] %vm117, %v2579
  %2614 = vst.msk [vmem:[#allocation3 + $0x4a] sm:$0xff] %vm117, %v2580
  %2615 = vst.msk [vmem:[#allocation3 + $0x52] sm:$0xff] %vm117, %v2581
  %2616 = vst.msk [vmem:[#allocation3 + $0x5a] sm:$0xff] %vm117, %v2582
  %2617 = vst.msk [vmem:[#allocation3 + $0x62] sm:$0xff] %vm117, %v2583
  %2618 = vst.msk [vmem:[#allocation3 + $0x6a] sm:$0xff] %vm117, %v2584
  %2619 = vst.msk [vmem:[#allocation3 + $0x72] sm:$0xff] %vm117, %v2585
  %2620 = vst.msk [vmem:[#allocation3 + $0x7a] sm:$0xff] %vm117, %v2586
  %2621 = vst.msk [vmem:[#allocation3 + $0x82] sm:$0x3f] %vm1361, %v2587
  %2622 = vst.msk [vmem:[#allocation3 + $0x92] sm:$0xc0] %vm1344, %v2588
  %2623 = vst.msk [vmem:[#allocation3 + $0x9a] sm:$0xff] %vm117, %v2589
  %2624 = vst.msk [vmem:[#allocation3 + $0xa2] sm:$0xff] %vm117, %v2590
  %2625 = vst.msk [vmem:[#allocation3 + $0xaa] sm:$0xff] %vm117, %v2591
  %2626 = vst.msk [vmem:[#allocation3 + $0xb2] sm:$0xff] %vm117, %v2592
  %2627 = vst.msk [vmem:[#allocation3 + $0xba] sm:$0xff] %vm117, %v2593
  %2628 = vst.msk [vmem:[#allocation3 + $0xc2] sm:$0xff] %vm117, %v2594
  %2629 = vst.msk [vmem:[#allocation3 + $0xca] sm:$0xff] %vm117, %v2595
  %2630 = vst.msk [vmem:[#allocation3 + $0xd2] sm:$0xff] %vm117, %v2596
  %2631 = vst.msk [vmem:[#allocation3 + $0xda] sm:$0xff] %vm117, %v2597
  %2632 = vst.msk [vmem:[#allocation3 + $0xe2] sm:$0xff] %vm117, %v2598
  %2633 = vst.msk [vmem:[#allocation3 + $0xea] sm:$0xff] %vm117, %v2599
  %2634 = vst.msk [vmem:[#allocation3 + $0xf2] sm:$0xff] %vm117, %v2600
  %2635 = vst.msk [vmem:[#allocation3 + $0xfa] sm:$0xff] %vm117, %v2601
  %2636 = vst.msk [vmem:[#allocation3 + $0x102] sm:$0xff] %vm117, %v2602
  %2637 = vst.msk [vmem:[#allocation3 + $0x10a] sm:$0xff] %vm117, %v2603
  %2638 = vst.msk [vmem:[#allocation3 + $0x112] sm:$0x3f] %vm1361, %v2604
  %v2639 = vld [vmem:[#allocation3] sm:$0xff]
  %v2640 = vld [vmem:[#allocation3 + $0x8] sm:$0xff]
  %v2641 = vld [vmem:[#allocation3 + $0x10] sm:$0xff]
  %v2642 = vld [vmem:[#allocation3 + $0x18] sm:$0xff]
  %v2643 = vld [vmem:[#allocation3 + $0x20] sm:$0xff]
  %v2644 = vld [vmem:[#allocation3 + $0x28] sm:$0xff]
  %v2645 = vld [vmem:[#allocation3 + $0x30] sm:$0xff]
  %v2646 = vld [vmem:[#allocation3 + $0x38] sm:$0xff]
  %v2647 = vld [vmem:[#allocation3 + $0x40] sm:$0xff]
  %v2648 = vld [vmem:[#allocation3 + $0x48] sm:$0xff]
  %v2649 = vld [vmem:[#allocation3 + $0x50] sm:$0xff]
  %v2650 = vld [vmem:[#allocation3 + $0x58] sm:$0xff]
  %v2651 = vld [vmem:[#allocation3 + $0x60] sm:$0xff]
  %v2652 = vld [vmem:[#allocation3 + $0x68] sm:$0xff]
  %v2653 = vld [vmem:[#allocation3 + $0x70] sm:$0xff]
  %v2654 = vld [vmem:[#allocation3 + $0x78] sm:$0xff]
  %v2655 = vld [vmem:[#allocation3 + $0x80] sm:$0xff]
  %v2656 = vld [vmem:[#allocation3 + $0x88] sm:$0xff]
  %v2657 = vld [vmem:[#allocation3 + $0x90] sm:$0xff]
  %v2658 = vld [vmem:[#allocation3 + $0x98] sm:$0xff]
  %v2659 = vld [vmem:[#allocation3 + $0xa0] sm:$0xff]
  %v2660 = vld [vmem:[#allocation3 + $0xa8] sm:$0xff]
  %v2661 = vld [vmem:[#allocation3 + $0xb0] sm:$0xff]
  %v2662 = vld [vmem:[#allocation3 + $0xb8] sm:$0xff]
  %v2663 = vld [vmem:[#allocation3 + $0xc0] sm:$0xff]
  %v2664 = vld [vmem:[#allocation3 + $0xc8] sm:$0xff]
  %v2665 = vld [vmem:[#allocation3 + $0xd0] sm:$0xff]
  %v2666 = vld [vmem:[#allocation3 + $0xd8] sm:$0xff]
  %v2667 = vld [vmem:[#allocation3 + $0xe0] sm:$0xff]
  %v2668 = vld [vmem:[#allocation3 + $0xe8] sm:$0xff]
  %v2669 = vld [vmem:[#allocation3 + $0xf0] sm:$0xff]
  %v2670 = vld [vmem:[#allocation3 + $0xf8] sm:$0xff]
  %v2671 = vld [vmem:[#allocation3 + $0x100] sm:$0xff]
  %v2672 = vld [vmem:[#allocation3 + $0x108] sm:$0xff]
  %v2673 = vld [vmem:[#allocation3 + $0x110] sm:$0xff]
  %v2674 = vld [vmem:[#allocation3 + $0x118] sm:$0xff]
  %v2675 = vpack.c.bf16 %v2640, %v2639
  %v2676 = vpack.c.bf16 %v2642, %v2641
  %v2677 = vpack.c.bf16 %v2644, %v2643
  %v2678 = vpack.c.bf16 %v2646, %v2645
  %v2679 = vpack.c.bf16 %v2648, %v2647
  %v2680 = vpack.c.bf16 %v2650, %v2649
  %v2681 = vpack.c.bf16 %v2652, %v2651
  %v2682 = vpack.c.bf16 %v2654, %v2653
  %v2683 = vpack.c.bf16 %v2656, %v2655
  %v2684 = vpack.c.bf16 %v2658, %v2657
  %v2685 = vpack.c.bf16 %v2660, %v2659
  %v2686 = vpack.c.bf16 %v2662, %v2661
  %v2687 = vpack.c.bf16 %v2664, %v2663
  %v2688 = vpack.c.bf16 %v2666, %v2665
  %v2689 = vpack.c.bf16 %v2668, %v2667
  %v2690 = vpack.c.bf16 %v2670, %v2669
  %v2691 = vpack.c.bf16 %v2672, %v2671
  %v2692 = vpack.c.bf16 %v2674, %v2673
  %v2693 = vld [vmem:[%s6] sm:$0xff]
  %v2694 = vld [vmem:[%s6 + $0x8] sm:$0xff]
  %v2695 = vld [vmem:[%s6 + $0x10] sm:$0xff]
  %v2696 = vld [vmem:[%s6 + $0x18] sm:$0xff]
  %v2701 = vunpack.c.l.b16 %v2693
  %v2702 = vunpack.c.h.b16 %v2693
  %v2703 = vunpack.c.l.b16 %v2694
  %v2704 = vunpack.c.h.b16 %v2694
  %v2705 = vunpack.c.l.b16 %v2695
  %v2706 = vunpack.c.h.b16 %v2695
  %v2707 = vunpack.c.l.b16 %v2696
  %v2708 = vunpack.c.h.b16 %v2696
  %v2709 = vpack.c.b16 %v2703, %v2701
  %v2710 = vpack.c.b16 %v2704, %v2702
  %v2711 = vpack.c.b16 %v2707, %v2705
  %v2712 = vpack.c.b16 %v2708, %v2706
  %v2718 = vsel %vm117, %v2675, 0
  %v2721 = vsel %vm117, %v2676, 0
  %v2724 = vsel %vm117, %v2677, 0
  %v2727 = vsel %vm117, %v2678, 0
  %v2730 = vsel %vm117, %v2679, 0
  %v2733 = vsel %vm117, %v2680, 0
  %v2736 = vsel %vm117, %v2681, 0
  %v2739 = vsel %vm117, %v2682, 0
  %v2742 = vsel %vm117, %v2683, 0
  %v2745 = vsel %vm117, %v2684, 0
  %v2748 = vsel %vm117, %v2685, 0
  %v2751 = vsel %vm117, %v2686, 0
  %v2754 = vsel %vm117, %v2687, 0
  %v2757 = vsel %vm117, %v2688, 0
  %v2760 = vsel %vm117, %v2689, 0
  %v2763 = vsel %vm117, %v2690, 0
  %v2766 = vsel %vm117, %v2691, 0
  %v2769 = vsel %vm117, %v2692, 0
  %2771 = vmatprep.subr.bf16.mxu0 %v2710
  %2772 = vmatpush1.bf16.msra.mxu0 %v2709
  %2773 = vmatprep.subr.bf16.mxu0 %v2712
  %2774 = vmatpush1.bf16.msra.mxu0 %v2711
  %2775 = vmatprep.subr.bf16.mxu0 0
  %2776 = vmatpush1.bf16.msra.mxu0 0
  %2777 = vmatprep.subr.bf16.mxu0 0
  %2778 = vmatpush1.bf16.msra.mxu0 0
  %2779 = vmatprep.subr.bf16.mxu0 0
  %2780 = vmatpush1.bf16.msra.mxu0 0
  %2781 = vmatprep.subr.bf16.mxu0 0
  %2782 = vmatpush1.bf16.msra.mxu0 0
  %2783 = vmatprep.subr.bf16.mxu0 0
  %2784 = vmatpush1.bf16.msra.mxu0 0
  %2785 = vmatprep.subr.bf16.mxu0 0
  %2786 = vmatpush1.bf16.msra.mxu0 0
  %2787 = vmatprep.subr.bf16.mxu0 0
  %2788 = vmatpush1.bf16.msra.mxu0 0
  %2789 = vmatprep.subr.bf16.mxu0 0
  %2790 = vmatpush1.bf16.msra.mxu0 0
  %2791 = vmatprep.subr.bf16.mxu0 0
  %2792 = vmatpush1.bf16.msra.mxu0 0
  %2793 = vmatprep.subr.bf16.mxu0 0
  %2794 = vmatpush1.bf16.msra.mxu0 0
  %2795 = vmatprep.subr.bf16.mxu0 0
  %2796 = vmatpush1.bf16.msra.mxu0 0
  %2797 = vmatprep.subr.bf16.mxu0 0
  %2798 = vmatpush1.bf16.msra.mxu0 0
  %2799 = vmatprep.subr.bf16.mxu0 0
  %2800 = vmatpush1.bf16.msra.mxu0 0
  %2801 = vmatprep.subr.bf16.mxu0 0
  %2802 = vmatpush1.bf16.msra.mxu0 0
  %2803 = vmatprep.mubr.bf16.mxu0 0
  %2804 = vmatmul.mubr.bf16.gmra.mrb[0].mxu0 %v2718
  %v2805 = vpop.f32.mrb[0].mxu0
  %v2806 = vadd.f32 0.0, %v2805
  %v2807 = vpop.f32.mrb[0].mxu0
  %v2808 = vpop.f32.mrb[0].mxu0
  %v2809 = vadd.f32 0.0, %v2808
  %v2810 = vpop.f32.mrb[0].mxu0
  %v2811 = vadd.f32 0.0, %v2810
  %2812 = vmatprep.mubr.bf16.mxu0 0
  %2813 = vmatmul.mubr.bf16.gmra.mrb[0].mxu0 %v2721
  %v2814 = vpop.f32.mrb[0].mxu0
  %v2815 = vadd.f32 0.0, %v2814
  %v2816 = vpop.f32.mrb[0].mxu0
  %v2817 = vadd.f32 0.0, %v2816
  %v2818 = vpop.f32.mrb[0].mxu0
  %v2819 = vadd.f32 0.0, %v2818
  %v2820 = vpop.f32.mrb[0].mxu0
  %v2821 = vadd.f32 0.0, %v2820
  %2822 = vmatprep.mubr.bf16.mxu0 0
  %2823 = vmatmul.mubr.bf16.gmra.mrb[0].mxu0 %v2724
  %v2824 = vpop.f32.mrb[0].mxu0
  %v2825 = vadd.f32 0.0, %v2824
  %v2826 = vpop.f32.mrb[0].mxu0
  %v2827 = vadd.f32 0.0, %v2826
  %v2828 = vpop.f32.mrb[0].mxu0
  %v2829 = vadd.f32 0.0, %v2828
  %v2830 = vpop.f32.mrb[0].mxu0
  %v2831 = vadd.f32 0.0, %v2830
  %2832 = vmatprep.mubr.bf16.mxu0 0
  %2833 = vmatmul.mubr.bf16.gmra.mrb[0].mxu0 %v2727
  %v2834 = vpop.f32.mrb[0].mxu0
  %v2835 = vadd.f32 0.0, %v2834
  %v2836 = vpop.f32.mrb[0].mxu0
  %v2837 = vadd.f32 0.0, %v2836
  %v2838 = vpop.f32.mrb[0].mxu0
  %v2839 = vadd.f32 0.0, %v2838
  %v2840 = vpop.f32.mrb[0].mxu0
  %v2841 = vadd.f32 0.0, %v2840
  %2842 = vmatprep.mubr.bf16.mxu0 0
  %2843 = vmatmul.mubr.bf16.gmra.mrb[0].mxu0 %v2730
  %v2844 = vpop.f32.mrb[0].mxu0
  %v2845 = vadd.f32 0.0, %v2844
  %v2846 = vpop.f32.mrb[0].mxu0
  %v2847 = vadd.f32 0.0, %v2846
  %v2848 = vpop.f32.mrb[0].mxu0
  %v2849 = vadd.f32 0.0, %v2848
  %v2850 = vpop.f32.mrb[0].mxu0
  %v2851 = vadd.f32 0.0, %v2850
  %2852 = vmatprep.mubr.bf16.mxu0 0
  %2853 = vmatmul.mubr.bf16.gmra.mrb[0].mxu0 %v2733
  %v2854 = vpop.f32.mrb[0].mxu0
  %v2855 = vadd.f32 0.0, %v2854
  %v2856 = vpop.f32.mrb[0].mxu0
  %v2857 = vadd.f32 0.0, %v2856
  %v2858 = vpop.f32.mrb[0].mxu0
  %v2859 = vadd.f32 0.0, %v2858
  %v2860 = vpop.f32.mrb[0].mxu0
  %v2861 = vadd.f32 0.0, %v2860
  %2862 = vmatprep.mubr.bf16.mxu0 0
  %2863 = vmatmul.mubr.bf16.gmra.mrb[0].mxu0 %v2736
  %v2864 = vpop.f32.mrb[0].mxu0
  %v2865 = vadd.f32 0.0, %v2864
  %v2866 = vpop.f32.mrb[0].mxu0
  %v2867 = vadd.f32 0.0, %v2866
  %v2868 = vpop.f32.mrb[0].mxu0
  %v2869 = vadd.f32 0.0, %v2868
  %v2870 = vpop.f32.mrb[0].mxu0
  %v2871 = vadd.f32 0.0, %v2870
  %2872 = vmatprep.mubr.bf16.mxu0 0
  %2873 = vmatmul.mubr.bf16.gmra.mrb[0].mxu0 %v2739
  %v2874 = vpop.f32.mrb[0].mxu0
  %v2875 = vadd.f32 0.0, %v2874
  %v2876 = vpop.f32.mrb[0].mxu0
  %v2877 = vadd.f32 0.0, %v2876
  %v2878 = vpop.f32.mrb[0].mxu0
  %v2879 = vadd.f32 0.0, %v2878
  %v2880 = vpop.f32.mrb[0].mxu0
  %v2881 = vadd.f32 0.0, %v2880
  %2882 = vmatprep.mubr.bf16.mxu0 0
  %2883 = vmatmul.mubr.bf16.gmra.mrb[0].mxu0 %v2742
  %v2884 = vpop.f32.mrb[0].mxu0
  %v2885 = vadd.f32 0.0, %v2884
  %v2886 = vpop.f32.mrb[0].mxu0
  %v2887 = vadd.f32 0.0, %v2886
  %v2888 = vpop.f32.mrb[0].mxu0
  %v2889 = vadd.f32 0.0, %v2888
  %v2890 = vpop.f32.mrb[0].mxu0
  %v2891 = vadd.f32 0.0, %v2890
  %2892 = vmatprep.mubr.bf16.mxu0 0
  %2893 = vmatmul.mubr.bf16.gmra.mrb[0].mxu0 %v2745
  %v2894 = vpop.f32.mrb[0].mxu0
  %v2895 = vadd.f32 0.0, %v2894
  %v2896 = vpop.f32.mrb[0].mxu0
  %v2897 = vpop.f32.mrb[0].mxu0
  %v2898 = vadd.f32 0.0, %v2897
  %v2899 = vpop.f32.mrb[0].mxu0
  %v2900 = vadd.f32 0.0, %v2899
  %2901 = vmatprep.mubr.bf16.mxu0 0
  %2902 = vmatmul.mubr.bf16.gmra.mrb[0].mxu0 %v2748
  %v2903 = vpop.f32.mrb[0].mxu0
  %v2904 = vadd.f32 0.0, %v2903
  %v2905 = vpop.f32.mrb[0].mxu0
  %v2906 = vadd.f32 0.0, %v2905
  %v2907 = vpop.f32.mrb[0].mxu0
  %v2908 = vadd.f32 0.0, %v2907
  %v2909 = vpop.f32.mrb[0].mxu0
  %v2910 = vadd.f32 0.0, %v2909
  %2911 = vmatprep.mubr.bf16.mxu0 0
  %2912 = vmatmul.mubr.bf16.gmra.mrb[0].mxu0 %v2751
  %v2913 = vpop.f32.mrb[0].mxu0
  %v2914 = vadd.f32 0.0, %v2913
  %v2915 = vpop.f32.mrb[0].mxu0
  %v2916 = vadd.f32 0.0, %v2915
  %v2917 = vpop.f32.mrb[0].mxu0
  %v2918 = vadd.f32 0.0, %v2917
  %v2919 = vpop.f32.mrb[0].mxu0
  %v2920 = vadd.f32 0.0, %v2919
  %2921 = vmatprep.mubr.bf16.mxu0 0
  %2922 = vmatmul.mubr.bf16.gmra.mrb[0].mxu0 %v2754
  %v2923 = vpop.f32.mrb[0].mxu0
  %v2924 = vadd.f32 0.0, %v2923
  %v2925 = vpop.f32.mrb[0].mxu0
  %v2926 = vadd.f32 0.0, %v2925
  %v2927 = vpop.f32.mrb[0].mxu0
  %v2928 = vadd.f32 0.0, %v2927
  %v2929 = vpop.f32.mrb[0].mxu0
  %v2930 = vadd.f32 0.0, %v2929
  %2931 = vmatprep.mubr.bf16.mxu0 0
  %2932 = vmatmul.mubr.bf16.gmra.mrb[0].mxu0 %v2757
  %v2933 = vpop.f32.mrb[0].mxu0
  %v2934 = vadd.f32 0.0, %v2933
  %v2935 = vpop.f32.mrb[0].mxu0
  %v2936 = vadd.f32 0.0, %v2935
  %v2937 = vpop.f32.mrb[0].mxu0
  %v2938 = vadd.f32 0.0, %v2937
  %v2939 = vpop.f32.mrb[0].mxu0
  %v2940 = vadd.f32 0.0, %v2939
  %2941 = vmatprep.mubr.bf16.mxu0 0
  %2942 = vmatmul.mubr.bf16.gmra.mrb[0].mxu0 %v2760
  %v2943 = vpop.f32.mrb[0].mxu0
  %v2944 = vadd.f32 0.0, %v2943
  %v2945 = vpop.f32.mrb[0].mxu0
  %v2946 = vadd.f32 0.0, %v2945
  %v2947 = vpop.f32.mrb[0].mxu0
  %v2948 = vadd.f32 0.0, %v2947
  %v2949 = vpop.f32.mrb[0].mxu0
  %v2950 = vadd.f32 0.0, %v2949
  %2951 = vmatprep.mubr.bf16.mxu0 0
  %2952 = vmatmul.mubr.bf16.gmra.mrb[0].mxu0 %v2763
  %v2953 = vpop.f32.mrb[0].mxu0
  %v2954 = vadd.f32 0.0, %v2953
  %v2955 = vpop.f32.mrb[0].mxu0
  %v2956 = vadd.f32 0.0, %v2955
  %v2957 = vpop.f32.mrb[0].mxu0
  %v2958 = vadd.f32 0.0, %v2957
  %v2959 = vpop.f32.mrb[0].mxu0
  %v2960 = vadd.f32 0.0, %v2959
  %2961 = vmatprep.mubr.bf16.mxu0 0
  %2962 = vmatmul.mubr.bf16.gmra.mrb[0].mxu0 %v2766
  %v2963 = vpop.f32.mrb[0].mxu0
  %v2964 = vadd.f32 0.0, %v2963
  %v2965 = vpop.f32.mrb[0].mxu0
  %v2966 = vadd.f32 0.0, %v2965
  %v2967 = vpop.f32.mrb[0].mxu0
  %v2968 = vadd.f32 0.0, %v2967
  %v2969 = vpop.f32.mrb[0].mxu0
  %v2970 = vadd.f32 0.0, %v2969
  %2971 = vmatprep.mubr.bf16.mxu0 0
  %2972 = vmatmul.mubr.bf16.gmra.mrb[0].mxu0 %v2769
  %v2973 = vpop.f32.mrb[0].mxu0
  %v2974 = vadd.f32 0.0, %v2973
  %v2975 = vpop.f32.mrb[0].mxu0
  %v2976 = vadd.f32 0.0, %v2975
  %v2977 = vpop.f32.mrb[0].mxu0
  %v2978 = vadd.f32 0.0, %v2977
  %v2979 = vpop.f32.mrb[0].mxu0
  %v2980 = vadd.f32 0.0, %v2979
  %2981 = vdwg.mxu0
  %v2982 = vld [vmem:[%s7] sm:$0x1]
  %v2984 = vlaneseq
  %v2985 = vshrl.u32 %v2984, 7
  %v2986 = vsub.s32 0, %v2985
  %v2987 = vrot.slane %v2982, %v2986
  %v2989 = vadd.f32 %v2987, 0.0
  %v2990 = vadd.f32 %v2989, %v2806
  %v2991 = vadd.f32 %v2989, %v2809
  %v2992 = vadd.f32 %v2989, %v2815
  %v2993 = vadd.f32 %v2989, %v2819
  %v2994 = vadd.f32 %v2989, %v2825
  %v2995 = vadd.f32 %v2989, %v2829
  %v2996 = vadd.f32 %v2989, %v2835
  %v2997 = vadd.f32 %v2989, %v2839
  %v2998 = vadd.f32 %v2989, %v2845
  %v2999 = vadd.f32 %v2989, %v2849
  %v3000 = vadd.f32 %v2989, %v2855
  %v3001 = vadd.f32 %v2989, %v2859
  %v3002 = vadd.f32 %v2989, %v2865
  %v3003 = vadd.f32 %v2989, %v2869
  %v3004 = vadd.f32 %v2989, %v2875
  %v3005 = vadd.f32 %v2989, %v2879
  %v3006 = vadd.f32 %v2989, %v2885
  %v3007 = vadd.f32 %v2989, %v2895
  %v3008 = vadd.f32 %v2989, %v2898
  %v3009 = vadd.f32 %v2989, %v2904
  %v3010 = vadd.f32 %v2989, %v2908
  %v3011 = vadd.f32 %v2989, %v2914
  %v3012 = vadd.f32 %v2989, %v2918
  %v3013 = vadd.f32 %v2989, %v2924
  %v3014 = vadd.f32 %v2989, %v2928
  %v3015 = vadd.f32 %v2989, %v2934
  %v3016 = vadd.f32 %v2989, %v2938
  %v3017 = vadd.f32 %v2989, %v2944
  %v3018 = vadd.f32 %v2989, %v2948
  %v3019 = vadd.f32 %v2989, %v2954
  %v3020 = vadd.f32 %v2989, %v2958
  %v3021 = vadd.f32 %v2989, %v2964
  %v3022 = vadd.f32 %v2989, %v2968
  %v3023 = vadd.f32 %v2989, %v2974
  %v3058 = vrot.slane %v2806, 1
  %v3059 = vrot.slane %v2809, 1
  %v3060 = vsel %vm534, %v3058, %v3059
  %v3061 = vrot.slane %v2815, 1
  %v3062 = vsel %vm534, %v3059, %v3061
  %v3063 = vrot.slane %v2819, 1
  %v3064 = vsel %vm534, %v3061, %v3063
  %v3065 = vrot.slane %v2825, 1
  %v3066 = vsel %vm534, %v3063, %v3065
  %v3067 = vrot.slane %v2829, 1
  %v3068 = vsel %vm534, %v3065, %v3067
  %v3069 = vrot.slane %v2835, 1
  %v3070 = vsel %vm534, %v3067, %v3069
  %v3071 = vrot.slane %v2839, 1
  %v3072 = vsel %vm534, %v3069, %v3071
  %v3073 = vrot.slane %v2845, 1
  %v3074 = vsel %vm534, %v3071, %v3073
  %v3075 = vrot.slane %v2849, 1
  %v3076 = vsel %vm534, %v3073, %v3075
  %v3077 = vrot.slane %v2855, 1
  %v3078 = vsel %vm534, %v3075, %v3077
  %v3079 = vrot.slane %v2859, 1
  %v3080 = vsel %vm534, %v3077, %v3079
  %v3081 = vrot.slane %v2865, 1
  %v3082 = vsel %vm534, %v3079, %v3081
  %v3083 = vrot.slane %v2869, 1
  %v3084 = vsel %vm534, %v3081, %v3083
  %v3085 = vrot.slane %v2875, 1
  %v3086 = vsel %vm534, %v3083, %v3085
  %v3087 = vrot.slane %v2879, 1
  %v3088 = vsel %vm534, %v3085, %v3087
  %v3089 = vrot.slane %v2885, 1
  %v3090 = vsel %vm534, %v3087, %v3089
  %v3091 = vrot.slane %v2895, 1
  %v3092 = vrot.slane %v2898, 1
  %v3093 = vsel %vm534, %v3091, %v3092
  %v3094 = vrot.slane %v2904, 1
  %v3095 = vsel %vm534, %v3092, %v3094
  %v3096 = vrot.slane %v2908, 1
  %v3097 = vsel %vm534, %v3094, %v3096
  %v3098 = vrot.slane %v2914, 1
  %v3099 = vsel %vm534, %v3096, %v3098
  %v3100 = vrot.slane %v2918, 1
  %v3101 = vsel %vm534, %v3098, %v3100
  %v3102 = vrot.slane %v2924, 1
  %v3103 = vsel %vm534, %v3100, %v3102
  %v3104 = vrot.slane %v2928, 1
  %v3105 = vsel %vm534, %v3102, %v3104
  %v3106 = vrot.slane %v2934, 1
  %v3107 = vsel %vm534, %v3104, %v3106
  %v3108 = vrot.slane %v2938, 1
  %v3109 = vsel %vm534, %v3106, %v3108
  %v3110 = vrot.slane %v2944, 1
  %v3111 = vsel %vm534, %v3108, %v3110
  %v3112 = vrot.slane %v2948, 1
  %v3113 = vsel %vm534, %v3110, %v3112
  %v3114 = vrot.slane %v2954, 1
  %v3115 = vsel %vm534, %v3112, %v3114
  %v3116 = vrot.slane %v2958, 1
  %v3117 = vsel %vm534, %v3114, %v3116
  %v3118 = vrot.slane %v2964, 1
  %v3119 = vsel %vm534, %v3116, %v3118
  %v3120 = vrot.slane %v2968, 1
  %v3121 = vsel %vm534, %v3118, %v3120
  %v3122 = vrot.slane %v2974, 1
  %v3123 = vsel %vm534, %v3120, %v3122
  %3124 = vrot.lane.b32.xlu0 %v3060, 96
  %v3125 = vpop.permute.xlu0 %3124
  %3126 = vrot.lane.b32.xlu0 %v3062, 96
  %v3127 = vpop.permute.xlu0 %3126
  %3128 = vrot.lane.b32.xlu0 %v3064, 96
  %v3129 = vpop.permute.xlu0 %3128
  %3130 = vrot.lane.b32.xlu0 %v3066, 96
  %v3131 = vpop.permute.xlu0 %3130
  %3132 = vrot.lane.b32.xlu0 %v3068, 96
  %v3133 = vpop.permute.xlu0 %3132
  %3134 = vrot.lane.b32.xlu0 %v3070, 96
  %v3135 = vpop.permute.xlu0 %3134
  %3136 = vrot.lane.b32.xlu0 %v3072, 96
  %v3137 = vpop.permute.xlu0 %3136
  %3138 = vrot.lane.b32.xlu0 %v3074, 96
  %v3139 = vpop.permute.xlu0 %3138
  %3140 = vrot.lane.b32.xlu0 %v3076, 96
  %v3141 = vpop.permute.xlu0 %3140
  %3142 = vrot.lane.b32.xlu0 %v3078, 96
  %v3143 = vpop.permute.xlu0 %3142
  %3144 = vrot.lane.b32.xlu0 %v3080, 96
  %v3145 = vpop.permute.xlu0 %3144
  %3146 = vrot.lane.b32.xlu0 %v3082, 96
  %v3147 = vpop.permute.xlu0 %3146
  %3148 = vrot.lane.b32.xlu0 %v3084, 96
  %v3149 = vpop.permute.xlu0 %3148
  %3150 = vrot.lane.b32.xlu0 %v3086, 96
  %v3151 = vpop.permute.xlu0 %3150
  %3152 = vrot.lane.b32.xlu0 %v3088, 96
  %v3153 = vpop.permute.xlu0 %3152
  %3154 = vrot.lane.b32.xlu0 %v3090, 96
  %v3155 = vpop.permute.xlu0 %3154
  %3156 = vrot.lane.b32.xlu0 %v3089, 96
  %v3157 = vpop.permute.xlu0 %3156
  %3158 = vrot.lane.b32.xlu0 %v3093, 96
  %v3159 = vpop.permute.xlu0 %3158
  %3160 = vrot.lane.b32.xlu0 %v3095, 96
  %v3161 = vpop.permute.xlu0 %3160
  %3162 = vrot.lane.b32.xlu0 %v3097, 96
  %v3163 = vpop.permute.xlu0 %3162
  %3164 = vrot.lane.b32.xlu0 %v3099, 96
  %v3165 = vpop.permute.xlu0 %3164
  %3166 = vrot.lane.b32.xlu0 %v3101, 96
  %v3167 = vpop.permute.xlu0 %3166
  %3168 = vrot.lane.b32.xlu0 %v3103, 96
  %v3169 = vpop.permute.xlu0 %3168
  %3170 = vrot.lane.b32.xlu0 %v3105, 96
  %v3171 = vpop.permute.xlu0 %3170
  %3172 = vrot.lane.b32.xlu0 %v3107, 96
  %v3173 = vpop.permute.xlu0 %3172
  %3174 = vrot.lane.b32.xlu0 %v3109, 96
  %v3175 = vpop.permute.xlu0 %3174
  %3176 = vrot.lane.b32.xlu0 %v3111, 96
  %v3177 = vpop.permute.xlu0 %3176
  %3178 = vrot.lane.b32.xlu0 %v3113, 96
  %v3179 = vpop.permute.xlu0 %3178
  %3180 = vrot.lane.b32.xlu0 %v3115, 96
  %v3181 = vpop.permute.xlu0 %3180
  %3182 = vrot.lane.b32.xlu0 %v3117, 96
  %v3183 = vpop.permute.xlu0 %3182
  %3184 = vrot.lane.b32.xlu0 %v3119, 96
  %v3185 = vpop.permute.xlu0 %3184
  %3186 = vrot.lane.b32.xlu0 %v3121, 96
  %v3187 = vpop.permute.xlu0 %3186
  %3188 = vrot.lane.b32.xlu0 %v3123, 96
  %v3189 = vpop.permute.xlu0 %3188
  %3190 = vrot.lane.b32.xlu0 %v3122, 96
  %v3191 = vpop.permute.xlu0 %3190
  %v3226 = vadd.f32 %v2990, %v3125
  %v3227 = vadd.f32 %v2991, %v3127
  %v3228 = vadd.f32 %v2992, %v3129
  %v3229 = vadd.f32 %v2993, %v3131
  %v3230 = vadd.f32 %v2994, %v3133
  %v3231 = vadd.f32 %v2995, %v3135
  %v3232 = vadd.f32 %v2996, %v3137
  %v3233 = vadd.f32 %v2997, %v3139
  %v3234 = vadd.f32 %v2998, %v3141
  %v3235 = vadd.f32 %v2999, %v3143
  %v3236 = vadd.f32 %v3000, %v3145
  %v3237 = vadd.f32 %v3001, %v3147
  %v3238 = vadd.f32 %v3002, %v3149
  %v3239 = vadd.f32 %v3003, %v3151
  %v3240 = vadd.f32 %v3004, %v3153
  %v3241 = vadd.f32 %v3005, %v3155
  %v3242 = vadd.f32 %v3006, %v3157
  %v3243 = vadd.f32 %v3007, %v3159
  %v3244 = vadd.f32 %v3008, %v3161
  %v3245 = vadd.f32 %v3009, %v3163
  %v3246 = vadd.f32 %v3010, %v3165
  %v3247 = vadd.f32 %v3011, %v3167
  %v3248 = vadd.f32 %v3012, %v3169
  %v3249 = vadd.f32 %v3013, %v3171
  %v3250 = vadd.f32 %v3014, %v3173
  %v3251 = vadd.f32 %v3015, %v3175
  %v3252 = vadd.f32 %v3016, %v3177
  %v3253 = vadd.f32 %v3017, %v3179
  %v3254 = vadd.f32 %v3018, %v3181
  %v3255 = vadd.f32 %v3019, %v3183
  %v3256 = vadd.f32 %v3020, %v3185
  %v3257 = vadd.f32 %v3021, %v3187
  %v3258 = vadd.f32 %v3022, %v3189
  %v3259 = vadd.f32 %v3023, %v3191
  %v3260 = vrot.slane %v2809, 2
  %v3261 = vrot.slane %v2815, 2
  %v3262 = vsel %vm737, %v3260, %v3261
  %v3263 = vrot.slane %v2819, 2
  %v3264 = vsel %vm737, %v3261, %v3263
  %v3265 = vrot.slane %v2825, 2
  %v3266 = vsel %vm737, %v3263, %v3265
  %v3267 = vrot.slane %v2829, 2
  %v3268 = vsel %vm737, %v3265, %v3267
  %v3269 = vrot.slane %v2835, 2
  %v3270 = vsel %vm737, %v3267, %v3269
  %v3271 = vrot.slane %v2839, 2
  %v3272 = vsel %vm737, %v3269, %v3271
  %v3273 = vrot.slane %v2845, 2
  %v3274 = vsel %vm737, %v3271, %v3273
  %v3275 = vrot.slane %v2849, 2
  %v3276 = vsel %vm737, %v3273, %v3275
  %v3277 = vrot.slane %v2855, 2
  %v3278 = vsel %vm737, %v3275, %v3277
  %v3279 = vrot.slane %v2859, 2
  %v3280 = vsel %vm737, %v3277, %v3279
  %v3281 = vrot.slane %v2865, 2
  %v3282 = vsel %vm737, %v3279, %v3281
  %v3283 = vrot.slane %v2869, 2
  %v3284 = vsel %vm737, %v3281, %v3283
  %v3285 = vrot.slane %v2875, 2
  %v3286 = vsel %vm737, %v3283, %v3285
  %v3287 = vrot.slane %v2879, 2
  %v3288 = vsel %vm737, %v3285, %v3287
  %v3289 = vrot.slane %v2885, 2
  %v3290 = vsel %vm737, %v3287, %v3289
  %v3291 = vrot.slane %v2898, 2
  %v3292 = vrot.slane %v2904, 2
  %v3293 = vsel %vm737, %v3291, %v3292
  %v3294 = vrot.slane %v2908, 2
  %v3295 = vsel %vm737, %v3292, %v3294
  %v3296 = vrot.slane %v2914, 2
  %v3297 = vsel %vm737, %v3294, %v3296
  %v3298 = vrot.slane %v2918, 2
  %v3299 = vsel %vm737, %v3296, %v3298
  %v3300 = vrot.slane %v2924, 2
  %v3301 = vsel %vm737, %v3298, %v3300
  %v3302 = vrot.slane %v2928, 2
  %v3303 = vsel %vm737, %v3300, %v3302
  %v3304 = vrot.slane %v2934, 2
  %v3305 = vsel %vm737, %v3302, %v3304
  %v3306 = vrot.slane %v2938, 2
  %v3307 = vsel %vm737, %v3304, %v3306
  %v3308 = vrot.slane %v2944, 2
  %v3309 = vsel %vm737, %v3306, %v3308
  %v3310 = vrot.slane %v2948, 2
  %v3311 = vsel %vm737, %v3308, %v3310
  %v3312 = vrot.slane %v2954, 2
  %v3313 = vsel %vm737, %v3310, %v3312
  %v3314 = vrot.slane %v2958, 2
  %v3315 = vsel %vm737, %v3312, %v3314
  %v3316 = vrot.slane %v2964, 2
  %v3317 = vsel %vm737, %v3314, %v3316
  %v3318 = vrot.slane %v2968, 2
  %v3319 = vsel %vm737, %v3316, %v3318
  %v3320 = vrot.slane %v2974, 2
  %v3321 = vsel %vm737, %v3318, %v3320
  %3322 = vrot.lane.b32.xlu0 %v3260, 64
  %v3323 = vpop.permute.xlu0 %3322
  %3324 = vrot.lane.b32.xlu0 %v3262, 64
  %v3325 = vpop.permute.xlu0 %3324
  %3326 = vrot.lane.b32.xlu0 %v3264, 64
  %v3327 = vpop.permute.xlu0 %3326
  %3328 = vrot.lane.b32.xlu0 %v3266, 64
  %v3329 = vpop.permute.xlu0 %3328
  %3330 = vrot.lane.b32.xlu0 %v3268, 64
  %v3331 = vpop.permute.xlu0 %3330
  %3332 = vrot.lane.b32.xlu0 %v3270, 64
  %v3333 = vpop.permute.xlu0 %3332
  %3334 = vrot.lane.b32.xlu0 %v3272, 64
  %v3335 = vpop.permute.xlu0 %3334
  %3336 = vrot.lane.b32.xlu0 %v3274, 64
  %v3337 = vpop.permute.xlu0 %3336
  %3338 = vrot.lane.b32.xlu0 %v3276, 64
  %v3339 = vpop.permute.xlu0 %3338
  %3340 = vrot.lane.b32.xlu0 %v3278, 64
  %v3341 = vpop.permute.xlu0 %3340
  %3342 = vrot.lane.b32.xlu0 %v3280, 64
  %v3343 = vpop.permute.xlu0 %3342
  %3344 = vrot.lane.b32.xlu0 %v3282, 64
  %v3345 = vpop.permute.xlu0 %3344
  %3346 = vrot.lane.b32.xlu0 %v3284, 64
  %v3347 = vpop.permute.xlu0 %3346
  %3348 = vrot.lane.b32.xlu0 %v3286, 64
  %v3349 = vpop.permute.xlu0 %3348
  %3350 = vrot.lane.b32.xlu0 %v3288, 64
  %v3351 = vpop.permute.xlu0 %3350
  %3352 = vrot.lane.b32.xlu0 %v3290, 64
  %v3353 = vpop.permute.xlu0 %3352
  %3354 = vrot.lane.b32.xlu0 %v3289, 64
  %v3355 = vpop.permute.xlu0 %3354
  %3356 = vrot.lane.b32.xlu0 %v3291, 64
  %v3357 = vpop.permute.xlu0 %3356
  %3358 = vrot.lane.b32.xlu0 %v3293, 64
  %v3359 = vpop.permute.xlu0 %3358
  %3360 = vrot.lane.b32.xlu0 %v3295, 64
  %v3361 = vpop.permute.xlu0 %3360
  %3362 = vrot.lane.b32.xlu0 %v3297, 64
  %v3363 = vpop.permute.xlu0 %3362
  %3364 = vrot.lane.b32.xlu0 %v3299, 64
  %v3365 = vpop.permute.xlu0 %3364
  %3366 = vrot.lane.b32.xlu0 %v3301, 64
  %v3367 = vpop.permute.xlu0 %3366
  %3368 = vrot.lane.b32.xlu0 %v3303, 64
  %v3369 = vpop.permute.xlu0 %3368
  %3370 = vrot.lane.b32.xlu0 %v3305, 64
  %v3371 = vpop.permute.xlu0 %3370
  %3372 = vrot.lane.b32.xlu0 %v3307, 64
  %v3373 = vpop.permute.xlu0 %3372
  %3374 = vrot.lane.b32.xlu0 %v3309, 64
  %v3375 = vpop.permute.xlu0 %3374
  %3376 = vrot.lane.b32.xlu0 %v3311, 64
  %v3377 = vpop.permute.xlu0 %3376
  %3378 = vrot.lane.b32.xlu0 %v3313, 64
  %v3379 = vpop.permute.xlu0 %3378
  %3380 = vrot.lane.b32.xlu0 %v3315, 64
  %v3381 = vpop.permute.xlu0 %3380
  %3382 = vrot.lane.b32.xlu0 %v3317, 64
  %v3383 = vpop.permute.xlu0 %3382
  %3384 = vrot.lane.b32.xlu0 %v3319, 64
  %v3385 = vpop.permute.xlu0 %3384
  %3386 = vrot.lane.b32.xlu0 %v3321, 64
  %v3387 = vpop.permute.xlu0 %3386
  %3388 = vrot.lane.b32.xlu0 %v3320, 64
  %v3389 = vpop.permute.xlu0 %3388
  %v3424 = vadd.f32 %v3226, %v3323
  %v3425 = vadd.f32 %v3227, %v3325
  %v3426 = vadd.f32 %v3228, %v3327
  %v3427 = vadd.f32 %v3229, %v3329
  %v3428 = vadd.f32 %v3230, %v3331
  %v3429 = vadd.f32 %v3231, %v3333
  %v3430 = vadd.f32 %v3232, %v3335
  %v3431 = vadd.f32 %v3233, %v3337
  %v3432 = vadd.f32 %v3234, %v3339
  %v3433 = vadd.f32 %v3235, %v3341
  %v3434 = vadd.f32 %v3236, %v3343
  %v3435 = vadd.f32 %v3237, %v3345
  %v3436 = vadd.f32 %v3238, %v3347
  %v3437 = vadd.f32 %v3239, %v3349
  %v3438 = vadd.f32 %v3240, %v3351
  %v3439 = vadd.f32 %v3241, %v3353
  %v3440 = vadd.f32 %v3242, %v3355
  %v3441 = vadd.f32 %v3243, %v3357
  %v3442 = vadd.f32 %v3244, %v3359
  %v3443 = vadd.f32 %v3245, %v3361
  %v3444 = vadd.f32 %v3246, %v3363
  %v3445 = vadd.f32 %v3247, %v3365
  %v3446 = vadd.f32 %v3248, %v3367
  %v3447 = vadd.f32 %v3249, %v3369
  %v3448 = vadd.f32 %v3250, %v3371
  %v3449 = vadd.f32 %v3251, %v3373
  %v3450 = vadd.f32 %v3252, %v3375
  %v3451 = vadd.f32 %v3253, %v3377
  %v3452 = vadd.f32 %v3254, %v3379
  %v3453 = vadd.f32 %v3255, %v3381
  %v3454 = vadd.f32 %v3256, %v3383
  %v3455 = vadd.f32 %v3257, %v3385
  %v3456 = vadd.f32 %v3258, %v3387
  %v3457 = vadd.f32 %v3259, %v3389
  %v3460 = vrot.slane %v2809, 3
  %v3461 = vrot.slane %v2815, 3
  %v3462 = vsel %vm938, %v3460, %v3461
  %v3463 = vrot.slane %v2819, 3
  %v3464 = vsel %vm938, %v3461, %v3463
  %v3465 = vrot.slane %v2825, 3
  %v3466 = vsel %vm938, %v3463, %v3465
  %v3467 = vrot.slane %v2829, 3
  %v3468 = vsel %vm938, %v3465, %v3467
  %v3469 = vrot.slane %v2835, 3
  %v3470 = vsel %vm938, %v3467, %v3469
  %v3471 = vrot.slane %v2839, 3
  %v3472 = vsel %vm938, %v3469, %v3471
  %v3473 = vrot.slane %v2845, 3
  %v3474 = vsel %vm938, %v3471, %v3473
  %v3475 = vrot.slane %v2849, 3
  %v3476 = vsel %vm938, %v3473, %v3475
  %v3477 = vrot.slane %v2855, 3
  %v3478 = vsel %vm938, %v3475, %v3477
  %v3479 = vrot.slane %v2859, 3
  %v3480 = vsel %vm938, %v3477, %v3479
  %v3481 = vrot.slane %v2865, 3
  %v3482 = vsel %vm938, %v3479, %v3481
  %v3483 = vrot.slane %v2869, 3
  %v3484 = vsel %vm938, %v3481, %v3483
  %v3485 = vrot.slane %v2875, 3
  %v3486 = vsel %vm938, %v3483, %v3485
  %v3487 = vrot.slane %v2879, 3
  %v3488 = vsel %vm938, %v3485, %v3487
  %v3489 = vrot.slane %v2885, 3
  %v3490 = vsel %vm938, %v3487, %v3489
  %v3491 = vrot.slane %v2889, 3
  %v3492 = vsel %vm938, %v3489, %v3491
  %v3493 = vrot.slane %v2898, 3
  %v3494 = vrot.slane %v2904, 3
  %v3495 = vsel %vm938, %v3493, %v3494
  %v3496 = vrot.slane %v2908, 3
  %v3497 = vsel %vm938, %v3494, %v3496
  %v3498 = vrot.slane %v2914, 3
  %v3499 = vsel %vm938, %v3496, %v3498
  %v3500 = vrot.slane %v2918, 3
  %v3501 = vsel %vm938, %v3498, %v3500
  %v3502 = vrot.slane %v2924, 3
  %v3503 = vsel %vm938, %v3500, %v3502
  %v3504 = vrot.slane %v2928, 3
  %v3505 = vsel %vm938, %v3502, %v3504
  %v3506 = vrot.slane %v2934, 3
  %v3507 = vsel %vm938, %v3504, %v3506
  %v3508 = vrot.slane %v2938, 3
  %v3509 = vsel %vm938, %v3506, %v3508
  %v3510 = vrot.slane %v2944, 3
  %v3511 = vsel %vm938, %v3508, %v3510
  %v3512 = vrot.slane %v2948, 3
  %v3513 = vsel %vm938, %v3510, %v3512
  %v3514 = vrot.slane %v2954, 3
  %v3515 = vsel %vm938, %v3512, %v3514
  %v3516 = vrot.slane %v2958, 3
  %v3517 = vsel %vm938, %v3514, %v3516
  %v3518 = vrot.slane %v2964, 3
  %v3519 = vsel %vm938, %v3516, %v3518
  %v3520 = vrot.slane %v2968, 3
  %v3521 = vsel %vm938, %v3518, %v3520
  %v3522 = vrot.slane %v2974, 3
  %v3523 = vsel %vm938, %v3520, %v3522
  %v3524 = vrot.slane %v2978, 3
  %v3525 = vsel %vm938, %v3522, %v3524
  %3526 = vrot.lane.b32.xlu0 %v3460, 32
  %v3527 = vpop.permute.xlu0 %3526
  %3528 = vrot.lane.b32.xlu0 %v3462, 32
  %v3529 = vpop.permute.xlu0 %3528
  %3530 = vrot.lane.b32.xlu0 %v3464, 32
  %v3531 = vpop.permute.xlu0 %3530
  %3532 = vrot.lane.b32.xlu0 %v3466, 32
  %v3533 = vpop.permute.xlu0 %3532
  %3534 = vrot.lane.b32.xlu0 %v3468, 32
  %v3535 = vpop.permute.xlu0 %3534
  %3536 = vrot.lane.b32.xlu0 %v3470, 32
  %v3537 = vpop.permute.xlu0 %3536
  %3538 = vrot.lane.b32.xlu0 %v3472, 32
  %v3539 = vpop.permute.xlu0 %3538
  %3540 = vrot.lane.b32.xlu0 %v3474, 32
  %v3541 = vpop.permute.xlu0 %3540
  %3542 = vrot.lane.b32.xlu0 %v3476, 32
  %v3543 = vpop.permute.xlu0 %3542
  %3544 = vrot.lane.b32.xlu0 %v3478, 32
  %v3545 = vpop.permute.xlu0 %3544
  %3546 = vrot.lane.b32.xlu0 %v3480, 32
  %v3547 = vpop.permute.xlu0 %3546
  %3548 = vrot.lane.b32.xlu0 %v3482, 32
  %v3549 = vpop.permute.xlu0 %3548
  %3550 = vrot.lane.b32.xlu0 %v3484, 32
  %v3551 = vpop.permute.xlu0 %3550
  %3552 = vrot.lane.b32.xlu0 %v3486, 32
  %v3553 = vpop.permute.xlu0 %3552
  %3554 = vrot.lane.b32.xlu0 %v3488, 32
  %v3555 = vpop.permute.xlu0 %3554
  %3556 = vrot.lane.b32.xlu0 %v3490, 32
  %v3557 = vpop.permute.xlu0 %3556
  %3558 = vrot.lane.b32.xlu0 %v3492, 32
  %v3559 = vpop.permute.xlu0 %3558
  %3560 = vrot.lane.b32.xlu0 %v3493, 32
  %v3561 = vpop.permute.xlu0 %3560
  %3562 = vrot.lane.b32.xlu0 %v3495, 32
  %v3563 = vpop.permute.xlu0 %3562
  %3564 = vrot.lane.b32.xlu0 %v3497, 32
  %v3565 = vpop.permute.xlu0 %3564
  %3566 = vrot.lane.b32.xlu0 %v3499, 32
  %v3567 = vpop.permute.xlu0 %3566
  %3568 = vrot.lane.b32.xlu0 %v3501, 32
  %v3569 = vpop.permute.xlu0 %3568
  %3570 = vrot.lane.b32.xlu0 %v3503, 32
  %v3571 = vpop.permute.xlu0 %3570
  %3572 = vrot.lane.b32.xlu0 %v3505, 32
  %v3573 = vpop.permute.xlu0 %3572
  %3574 = vrot.lane.b32.xlu0 %v3507, 32
  %v3575 = vpop.permute.xlu0 %3574
  %3576 = vrot.lane.b32.xlu0 %v3509, 32
  %v3577 = vpop.permute.xlu0 %3576
  %3578 = vrot.lane.b32.xlu0 %v3511, 32
  %v3579 = vpop.permute.xlu0 %3578
  %3580 = vrot.lane.b32.xlu0 %v3513, 32
  %v3581 = vpop.permute.xlu0 %3580
  %3582 = vrot.lane.b32.xlu0 %v3515, 32
  %v3583 = vpop.permute.xlu0 %3582
  %3584 = vrot.lane.b32.xlu0 %v3517, 32
  %v3585 = vpop.permute.xlu0 %3584
  %3586 = vrot.lane.b32.xlu0 %v3519, 32
  %v3587 = vpop.permute.xlu0 %3586
  %3588 = vrot.lane.b32.xlu0 %v3521, 32
  %v3589 = vpop.permute.xlu0 %3588
  %3590 = vrot.lane.b32.xlu0 %v3523, 32
  %v3591 = vpop.permute.xlu0 %3590
  %3592 = vrot.lane.b32.xlu0 %v3525, 32
  %v3593 = vpop.permute.xlu0 %3592
  %v3628 = vadd.f32 %v3424, %v3527
  %v3629 = vadd.f32 %v3425, %v3529
  %v3630 = vadd.f32 %v3426, %v3531
  %v3631 = vadd.f32 %v3427, %v3533
  %v3632 = vadd.f32 %v3428, %v3535
  %v3633 = vadd.f32 %v3429, %v3537
  %v3634 = vadd.f32 %v3430, %v3539
  %v3635 = vadd.f32 %v3431, %v3541
  %v3636 = vadd.f32 %v3432, %v3543
  %v3637 = vadd.f32 %v3433, %v3545
  %v3638 = vadd.f32 %v3434, %v3547
  %v3639 = vadd.f32 %v3435, %v3549
  %v3640 = vadd.f32 %v3436, %v3551
  %v3641 = vadd.f32 %v3437, %v3553
  %v3642 = vadd.f32 %v3438, %v3555
  %v3643 = vadd.f32 %v3439, %v3557
  %v3644 = vadd.f32 %v3440, %v3559
  %v3645 = vadd.f32 %v3441, %v3561
  %v3646 = vadd.f32 %v3442, %v3563
  %v3647 = vadd.f32 %v3443, %v3565
  %v3648 = vadd.f32 %v3444, %v3567
  %v3649 = vadd.f32 %v3445, %v3569
  %v3650 = vadd.f32 %v3446, %v3571
  %v3651 = vadd.f32 %v3447, %v3573
  %v3652 = vadd.f32 %v3448, %v3575
  %v3653 = vadd.f32 %v3449, %v3577
  %v3654 = vadd.f32 %v3450, %v3579
  %v3655 = vadd.f32 %v3451, %v3581
  %v3656 = vadd.f32 %v3452, %v3583
  %v3657 = vadd.f32 %v3453, %v3585
  %v3658 = vadd.f32 %v3454, %v3587
  %v3659 = vadd.f32 %v3455, %v3589
  %v3660 = vadd.f32 %v3456, %v3591
  %v3661 = vadd.f32 %v3457, %v3593
  %v3696 = vrot.slane %v2811, 4
  %v3697 = vrot.slane %v2817, 4
  %v3698 = vsel %vm1175, %v3696, %v3697
  %v3699 = vrot.slane %v2821, 4
  %v3700 = vsel %vm1175, %v3697, %v3699
  %v3701 = vrot.slane %v2827, 4
  %v3702 = vsel %vm1175, %v3699, %v3701
  %v3703 = vrot.slane %v2831, 4
  %v3704 = vsel %vm1175, %v3701, %v3703
  %v3705 = vrot.slane %v2837, 4
  %v3706 = vsel %vm1175, %v3703, %v3705
  %v3707 = vrot.slane %v2841, 4
  %v3708 = vsel %vm1175, %v3705, %v3707
  %v3709 = vrot.slane %v2847, 4
  %v3710 = vsel %vm1175, %v3707, %v3709
  %v3711 = vrot.slane %v2851, 4
  %v3712 = vsel %vm1175, %v3709, %v3711
  %v3713 = vrot.slane %v2857, 4
  %v3714 = vsel %vm1175, %v3711, %v3713
  %v3715 = vrot.slane %v2861, 4
  %v3716 = vsel %vm1175, %v3713, %v3715
  %v3717 = vrot.slane %v2867, 4
  %v3718 = vsel %vm1175, %v3715, %v3717
  %v3719 = vrot.slane %v2871, 4
  %v3720 = vsel %vm1175, %v3717, %v3719
  %v3721 = vrot.slane %v2877, 4
  %v3722 = vsel %vm1175, %v3719, %v3721
  %v3723 = vrot.slane %v2881, 4
  %v3724 = vsel %vm1175, %v3721, %v3723
  %v3725 = vrot.slane %v2887, 4
  %v3726 = vsel %vm1175, %v3723, %v3725
  %v3727 = vrot.slane %v2891, 4
  %v3728 = vsel %vm1175, %v3725, %v3727
  %v3729 = vrot.slane %v2900, 4
  %v3730 = vrot.slane %v2906, 4
  %v3731 = vsel %vm1175, %v3729, %v3730
  %v3732 = vrot.slane %v2910, 4
  %v3733 = vsel %vm1175, %v3730, %v3732
  %v3734 = vrot.slane %v2916, 4
  %v3735 = vsel %vm1175, %v3732, %v3734
  %v3736 = vrot.slane %v2920, 4
  %v3737 = vsel %vm1175, %v3734, %v3736
  %v3738 = vrot.slane %v2926, 4
  %v3739 = vsel %vm1175, %v3736, %v3738
  %v3740 = vrot.slane %v2930, 4
  %v3741 = vsel %vm1175, %v3738, %v3740
  %v3742 = vrot.slane %v2936, 4
  %v3743 = vsel %vm1175, %v3740, %v3742
  %v3744 = vrot.slane %v2940, 4
  %v3745 = vsel %vm1175, %v3742, %v3744
  %v3746 = vrot.slane %v2946, 4
  %v3747 = vsel %vm1175, %v3744, %v3746
  %v3748 = vrot.slane %v2950, 4
  %v3749 = vsel %vm1175, %v3746, %v3748
  %v3750 = vrot.slane %v2956, 4
  %v3751 = vsel %vm1175, %v3748, %v3750
  %v3752 = vrot.slane %v2960, 4
  %v3753 = vsel %vm1175, %v3750, %v3752
  %v3754 = vrot.slane %v2966, 4
  %v3755 = vsel %vm1175, %v3752, %v3754
  %v3756 = vrot.slane %v2970, 4
  %v3757 = vsel %vm1175, %v3754, %v3756
  %v3758 = vrot.slane %v2976, 4
  %v3759 = vsel %vm1175, %v3756, %v3758
  %v3760 = vrot.slane %v2980, 4
  %v3761 = vsel %vm1175, %v3758, %v3760
  %v3796 = vadd.f32 %v3628, %v3696
  %v3797 = vadd.f32 %v3629, %v3698
  %v3798 = vadd.f32 %v3630, %v3700
  %v3799 = vadd.f32 %v3631, %v3702
  %v3800 = vadd.f32 %v3632, %v3704
  %v3801 = vadd.f32 %v3633, %v3706
  %v3802 = vadd.f32 %v3634, %v3708
  %v3803 = vadd.f32 %v3635, %v3710
  %v3804 = vadd.f32 %v3636, %v3712
  %v3805 = vadd.f32 %v3637, %v3714
  %v3806 = vadd.f32 %v3638, %v3716
  %v3807 = vadd.f32 %v3639, %v3718
  %v3808 = vadd.f32 %v3640, %v3720
  %v3809 = vadd.f32 %v3641, %v3722
  %v3810 = vadd.f32 %v3642, %v3724
  %v3811 = vadd.f32 %v3643, %v3726
  %v3812 = vadd.f32 %v3644, %v3728
  %v3813 = vadd.f32 %v3645, %v3729
  %v3814 = vadd.f32 %v3646, %v3731
  %v3815 = vadd.f32 %v3647, %v3733
  %v3816 = vadd.f32 %v3648, %v3735
  %v3817 = vadd.f32 %v3649, %v3737
  %v3818 = vadd.f32 %v3650, %v3739
  %v3819 = vadd.f32 %v3651, %v3741
  %v3820 = vadd.f32 %v3652, %v3743
  %v3821 = vadd.f32 %v3653, %v3745
  %v3822 = vadd.f32 %v3654, %v3747
  %v3823 = vadd.f32 %v3655, %v3749
  %v3824 = vadd.f32 %v3656, %v3751
  %v3825 = vadd.f32 %v3657, %v3753
  %v3826 = vadd.f32 %v3658, %v3755
  %v3827 = vadd.f32 %v3659, %v3757
  %v3828 = vadd.f32 %v3660, %v3759
  %v3829 = vadd.f32 %v3661, %v3761
  %v3830 = vmax.f32 %v3796, 0.0
  %v3831 = vmax.f32 %v3797, 0.0
  %v3832 = vmax.f32 %v3798, 0.0
  %v3833 = vmax.f32 %v3799, 0.0
  %v3834 = vmax.f32 %v3800, 0.0
  %v3835 = vmax.f32 %v3801, 0.0
  %v3836 = vmax.f32 %v3802, 0.0
  %v3837 = vmax.f32 %v3803, 0.0
  %v3838 = vmax.f32 %v3804, 0.0
  %v3839 = vmax.f32 %v3805, 0.0
  %v3840 = vmax.f32 %v3806, 0.0
  %v3841 = vmax.f32 %v3807, 0.0
  %v3842 = vmax.f32 %v3808, 0.0
  %v3843 = vmax.f32 %v3809, 0.0
  %v3844 = vmax.f32 %v3810, 0.0
  %v3845 = vmax.f32 %v3811, 0.0
  %v3846 = vmax.f32 %v3812, 0.0
  %v3847 = vmax.f32 %v3813, 0.0
  %v3848 = vmax.f32 %v3814, 0.0
  %v3849 = vmax.f32 %v3815, 0.0
  %v3850 = vmax.f32 %v3816, 0.0
  %v3851 = vmax.f32 %v3817, 0.0
  %v3852 = vmax.f32 %v3818, 0.0
  %v3853 = vmax.f32 %v3819, 0.0
  %v3854 = vmax.f32 %v3820, 0.0
  %v3855 = vmax.f32 %v3821, 0.0
  %v3856 = vmax.f32 %v3822, 0.0
  %v3857 = vmax.f32 %v3823, 0.0
  %v3858 = vmax.f32 %v3824, 0.0
  %v3859 = vmax.f32 %v3825, 0.0
  %v3860 = vmax.f32 %v3826, 0.0
  %v3861 = vmax.f32 %v3827, 0.0
  %v3862 = vmax.f32 %v3828, 0.0
  %v3863 = vmax.f32 %v3829, 0.0
  %3864 = vst.msk [vmem:[#allocation3 + $0x2] sm:$0xc0] %vm1344, %v3830
  %3865 = vst.msk [vmem:[#allocation3 + $0xa] sm:$0xff] %vm117, %v3831
  %3866 = vst.msk [vmem:[#allocation3 + $0x12] sm:$0xff] %vm117, %v3832
  %3867 = vst.msk [vmem:[#allocation3 + $0x1a] sm:$0xff] %vm117, %v3833
  %3868 = vst.msk [vmem:[#allocation3 + $0x22] sm:$0xff] %vm117, %v3834
  %3869 = vst.msk [vmem:[#allocation3 + $0x2a] sm:$0xff] %vm117, %v3835
  %3870 = vst.msk [vmem:[#allocation3 + $0x32] sm:$0xff] %vm117, %v3836
  %3871 = vst.msk [vmem:[#allocation3 + $0x3a] sm:$0xff] %vm117, %v3837
  %3872 = vst.msk [vmem:[#allocation3 + $0x42] sm:$0xff] %vm117, %v3838
  %3873 = vst.msk [vmem:[#allocation3 + $0x4a] sm:$0xff] %vm117, %v3839
  %3874 = vst.msk [vmem:[#allocation3 + $0x52] sm:$0xff] %vm117, %v3840
  %3875 = vst.msk [vmem:[#allocation3 + $0x5a] sm:$0xff] %vm117, %v3841
  %3876 = vst.msk [vmem:[#allocation3 + $0x62] sm:$0xff] %vm117, %v3842
  %3877 = vst.msk [vmem:[#allocation3 + $0x6a] sm:$0xff] %vm117, %v3843
  %3878 = vst.msk [vmem:[#allocation3 + $0x72] sm:$0xff] %vm117, %v3844
  %3879 = vst.msk [vmem:[#allocation3 + $0x7a] sm:$0xff] %vm117, %v3845
  %3880 = vst.msk [vmem:[#allocation3 + $0x82] sm:$0x3f] %vm1361, %v3846
  %3881 = vst.msk [vmem:[#allocation3 + $0x92] sm:$0xc0] %vm1344, %v3847
  %3882 = vst.msk [vmem:[#allocation3 + $0x9a] sm:$0xff] %vm117, %v3848
  %3883 = vst.msk [vmem:[#allocation3 + $0xa2] sm:$0xff] %vm117, %v3849
  %3884 = vst.msk [vmem:[#allocation3 + $0xaa] sm:$0xff] %vm117, %v3850
  %3885 = vst.msk [vmem:[#allocation3 + $0xb2] sm:$0xff] %vm117, %v3851
  %3886 = vst.msk [vmem:[#allocation3 + $0xba] sm:$0xff] %vm117, %v3852
  %3887 = vst.msk [vmem:[#allocation3 + $0xc2] sm:$0xff] %vm117, %v3853
  %3888 = vst.msk [vmem:[#allocation3 + $0xca] sm:$0xff] %vm117, %v3854
  %3889 = vst.msk [vmem:[#allocation3 + $0xd2] sm:$0xff] %vm117, %v3855
  %3890 = vst.msk [vmem:[#allocation3 + $0xda] sm:$0xff] %vm117, %v3856
  %3891 = vst.msk [vmem:[#allocation3 + $0xe2] sm:$0xff] %vm117, %v3857
  %3892 = vst.msk [vmem:[#allocation3 + $0xea] sm:$0xff] %vm117, %v3858
  %3893 = vst.msk [vmem:[#allocation3 + $0xf2] sm:$0xff] %vm117, %v3859
  %3894 = vst.msk [vmem:[#allocation3 + $0xfa] sm:$0xff] %vm117, %v3860
  %3895 = vst.msk [vmem:[#allocation3 + $0x102] sm:$0xff] %vm117, %v3861
  %3896 = vst.msk [vmem:[#allocation3 + $0x10a] sm:$0xff] %vm117, %v3862
  %3897 = vst.msk [vmem:[#allocation3 + $0x112] sm:$0x3f] %vm1361, %v3863
  %v3898 = vld [vmem:[#allocation3] sm:$0xff]
  %v3899 = vld [vmem:[#allocation3 + $0x8] sm:$0xff]
  %v3900 = vld [vmem:[#allocation3 + $0x10] sm:$0xff]
  %v3901 = vld [vmem:[#allocation3 + $0x18] sm:$0xff]
  %v3902 = vld [vmem:[#allocation3 + $0x20] sm:$0xff]
  %v3903 = vld [vmem:[#allocation3 + $0x28] sm:$0xff]
  %v3904 = vld [vmem:[#allocation3 + $0x30] sm:$0xff]
  %v3905 = vld [vmem:[#allocation3 + $0x38] sm:$0xff]
  %v3906 = vld [vmem:[#allocation3 + $0x40] sm:$0xff]
  %v3907 = vld [vmem:[#allocation3 + $0x48] sm:$0xff]
  %v3908 = vld [vmem:[#allocation3 + $0x50] sm:$0xff]
  %v3909 = vld [vmem:[#allocation3 + $0x58] sm:$0xff]
  %v3910 = vld [vmem:[#allocation3 + $0x60] sm:$0xff]
  %v3911 = vld [vmem:[#allocation3 + $0x68] sm:$0xff]
  %v3912 = vld [vmem:[#allocation3 + $0x70] sm:$0xff]
  %v3913 = vld [vmem:[#allocation3 + $0x78] sm:$0xff]
  %v3914 = vld [vmem:[#allocation3 + $0x80] sm:$0xff]
  %v3915 = vld [vmem:[#allocation3 + $0x88] sm:$0xff]
  %v3916 = vld [vmem:[#allocation3 + $0x90] sm:$0xff]
  %v3917 = vld [vmem:[#allocation3 + $0x98] sm:$0xff]
  %v3918 = vld [vmem:[#allocation3 + $0xa0] sm:$0xff]
  %v3919 = vld [vmem:[#allocation3 + $0xa8] sm:$0xff]
  %v3920 = vld [vmem:[#allocation3 + $0xb0] sm:$0xff]
  %v3921 = vld [vmem:[#allocation3 + $0xb8] sm:$0xff]
  %v3922 = vld [vmem:[#allocation3 + $0xc0] sm:$0xff]
  %v3923 = vld [vmem:[#allocation3 + $0xc8] sm:$0xff]
  %v3924 = vld [vmem:[#allocation3 + $0xd0] sm:$0xff]
  %v3925 = vld [vmem:[#allocation3 + $0xd8] sm:$0xff]
  %v3926 = vld [vmem:[#allocation3 + $0xe0] sm:$0xff]
  %v3927 = vld [vmem:[#allocation3 + $0xe8] sm:$0xff]
  %v3928 = vld [vmem:[#allocation3 + $0xf0] sm:$0xff]
  %v3929 = vld [vmem:[#allocation3 + $0xf8] sm:$0xff]
  %v3930 = vld [vmem:[#allocation3 + $0x100] sm:$0xff]
  %v3931 = vld [vmem:[#allocation3 + $0x108] sm:$0xff]
  %v3932 = vld [vmem:[#allocation3 + $0x110] sm:$0xff]
  %v3933 = vld [vmem:[#allocation3 + $0x118] sm:$0xff]
  %v3934 = vpack.c.bf16 %v3899, %v3898
  %v3935 = vpack.c.bf16 %v3901, %v3900
  %v3936 = vpack.c.bf16 %v3903, %v3902
  %v3937 = vpack.c.bf16 %v3905, %v3904
  %v3938 = vpack.c.bf16 %v3907, %v3906
  %v3939 = vpack.c.bf16 %v3909, %v3908
  %v3940 = vpack.c.bf16 %v3911, %v3910
  %v3941 = vpack.c.bf16 %v3913, %v3912
  %v3942 = vpack.c.bf16 %v3915, %v3914
  %v3943 = vpack.c.bf16 %v3917, %v3916
  %v3944 = vpack.c.bf16 %v3919, %v3918
  %v3945 = vpack.c.bf16 %v3921, %v3920
  %v3946 = vpack.c.bf16 %v3923, %v3922
  %v3947 = vpack.c.bf16 %v3925, %v3924
  %v3948 = vpack.c.bf16 %v3927, %v3926
  %v3949 = vpack.c.bf16 %v3929, %v3928
  %v3950 = vpack.c.bf16 %v3931, %v3930
  %v3951 = vpack.c.bf16 %v3933, %v3932
  %v3952 = vld [vmem:[%s8] sm:$0xff]
  %v3953 = vld [vmem:[%s8 + $0x8] sm:$0xff]
  %v3954 = vld [vmem:[%s8 + $0x10] sm:$0xff]
  %v3955 = vld [vmem:[%s8 + $0x18] sm:$0xff]
  %v3960 = vunpack.c.l.b16 %v3952
  %v3961 = vunpack.c.h.b16 %v3952
  %v3962 = vunpack.c.l.b16 %v3953
  %v3963 = vunpack.c.h.b16 %v3953
  %v3964 = vunpack.c.l.b16 %v3954
  %v3965 = vunpack.c.h.b16 %v3954
  %v3966 = vunpack.c.l.b16 %v3955
  %v3967 = vunpack.c.h.b16 %v3955
  %v3968 = vpack.c.b16 %v3962, %v3960
  %v3969 = vpack.c.b16 %v3963, %v3961
  %v3970 = vpack.c.b16 %v3966, %v3964
  %v3971 = vpack.c.b16 %v3967, %v3965
  %v3977 = vsel %vm117, %v3934, 0
  %v3980 = vsel %vm117, %v3935, 0
  %v3983 = vsel %vm117, %v3936, 0
  %v3986 = vsel %vm117, %v3937, 0
  %v3989 = vsel %vm117, %v3938, 0
  %v3992 = vsel %vm117, %v3939, 0
  %v3995 = vsel %vm117, %v3940, 0
  %v3998 = vsel %vm117, %v3941, 0
  %v4001 = vsel %vm117, %v3942, 0
  %v4004 = vsel %vm117, %v3943, 0
  %v4007 = vsel %vm117, %v3944, 0
  %v4010 = vsel %vm117, %v3945, 0
  %v4013 = vsel %vm117, %v3946, 0
  %v4016 = vsel %vm117, %v3947, 0
  %v4019 = vsel %vm117, %v3948, 0
  %v4022 = vsel %vm117, %v3949, 0
  %v4025 = vsel %vm117, %v3950, 0
  %v4028 = vsel %vm117, %v3951, 0
  %4030 = vmatprep.subr.bf16.mxu0 %v3969
  %4031 = vmatpush1.bf16.msra.mxu0 %v3968
  %4032 = vmatprep.subr.bf16.mxu0 %v3971
  %4033 = vmatpush1.bf16.msra.mxu0 %v3970
  %4034 = vmatprep.subr.bf16.mxu0 0
  %4035 = vmatpush1.bf16.msra.mxu0 0
  %4036 = vmatprep.subr.bf16.mxu0 0
  %4037 = vmatpush1.bf16.msra.mxu0 0
  %4038 = vmatprep.subr.bf16.mxu0 0
  %4039 = vmatpush1.bf16.msra.mxu0 0
  %4040 = vmatprep.subr.bf16.mxu0 0
  %4041 = vmatpush1.bf16.msra.mxu0 0
  %4042 = vmatprep.subr.bf16.mxu0 0
  %4043 = vmatpush1.bf16.msra.mxu0 0
  %4044 = vmatprep.subr.bf16.mxu0 0
  %4045 = vmatpush1.bf16.msra.mxu0 0
  %4046 = vmatprep.subr.bf16.mxu0 0
  %4047 = vmatpush1.bf16.msra.mxu0 0
  %4048 = vmatprep.subr.bf16.mxu0 0
  %4049 = vmatpush1.bf16.msra.mxu0 0
  %4050 = vmatprep.subr.bf16.mxu0 0
  %4051 = vmatpush1.bf16.msra.mxu0 0
  %4052 = vmatprep.subr.bf16.mxu0 0
  %4053 = vmatpush1.bf16.msra.mxu0 0
  %4054 = vmatprep.subr.bf16.mxu0 0
  %4055 = vmatpush1.bf16.msra.mxu0 0
  %4056 = vmatprep.subr.bf16.mxu0 0
  %4057 = vmatpush1.bf16.msra.mxu0 0
  %4058 = vmatprep.subr.bf16.mxu0 0
  %4059 = vmatpush1.bf16.msra.mxu0 0
  %4060 = vmatprep.subr.bf16.mxu0 0
  %4061 = vmatpush1.bf16.msra.mxu0 0
  %4062 = vmatprep.mubr.bf16.mxu0 0
  %4063 = vmatmul.mubr.bf16.gmra.mrb[0].mxu0 %v3977
  %v4064 = vpop.f32.mrb[0].mxu0
  %v4065 = vadd.f32 0.0, %v4064
  %v4066 = vpop.f32.mrb[0].mxu0
  %v4067 = vpop.f32.mrb[0].mxu0
  %v4068 = vadd.f32 0.0, %v4067
  %v4069 = vpop.f32.mrb[0].mxu0
  %v4070 = vadd.f32 0.0, %v4069
  %4071 = vmatprep.mubr.bf16.mxu0 0
  %4072 = vmatmul.mubr.bf16.gmra.mrb[0].mxu0 %v3980
  %v4073 = vpop.f32.mrb[0].mxu0
  %v4074 = vadd.f32 0.0, %v4073
  %v4075 = vpop.f32.mrb[0].mxu0
  %v4076 = vadd.f32 0.0, %v4075
  %v4077 = vpop.f32.mrb[0].mxu0
  %v4078 = vadd.f32 0.0, %v4077
  %v4079 = vpop.f32.mrb[0].mxu0
  %v4080 = vadd.f32 0.0, %v4079
  %4081 = vmatprep.mubr.bf16.mxu0 0
  %4082 = vmatmul.mubr.bf16.gmra.mrb[0].mxu0 %v3983
  %v4083 = vpop.f32.mrb[0].mxu0
  %v4084 = vadd.f32 0.0, %v4083
  %v4085 = vpop.f32.mrb[0].mxu0
  %v4086 = vadd.f32 0.0, %v4085
  %v4087 = vpop.f32.mrb[0].mxu0
  %v4088 = vadd.f32 0.0, %v4087
  %v4089 = vpop.f32.mrb[0].mxu0
  %v4090 = vadd.f32 0.0, %v4089
  %4091 = vmatprep.mubr.bf16.mxu0 0
  %4092 = vmatmul.mubr.bf16.gmra.mrb[0].mxu0 %v3986
  %v4093 = vpop.f32.mrb[0].mxu0
  %v4094 = vadd.f32 0.0, %v4093
  %v4095 = vpop.f32.mrb[0].mxu0
  %v4096 = vadd.f32 0.0, %v4095
  %v4097 = vpop.f32.mrb[0].mxu0
  %v4098 = vadd.f32 0.0, %v4097
  %v4099 = vpop.f32.mrb[0].mxu0
  %v4100 = vadd.f32 0.0, %v4099
  %4101 = vmatprep.mubr.bf16.mxu0 0
  %4102 = vmatmul.mubr.bf16.gmra.mrb[0].mxu0 %v3989
  %v4103 = vpop.f32.mrb[0].mxu0
  %v4104 = vadd.f32 0.0, %v4103
  %v4105 = vpop.f32.mrb[0].mxu0
  %v4106 = vadd.f32 0.0, %v4105
  %v4107 = vpop.f32.mrb[0].mxu0
  %v4108 = vadd.f32 0.0, %v4107
  %v4109 = vpop.f32.mrb[0].mxu0
  %v4110 = vadd.f32 0.0, %v4109
  %4111 = vmatprep.mubr.bf16.mxu0 0
  %4112 = vmatmul.mubr.bf16.gmra.mrb[0].mxu0 %v3992
  %v4113 = vpop.f32.mrb[0].mxu0
  %v4114 = vadd.f32 0.0, %v4113
  %v4115 = vpop.f32.mrb[0].mxu0
  %v4116 = vadd.f32 0.0, %v4115
  %v4117 = vpop.f32.mrb[0].mxu0
  %v4118 = vadd.f32 0.0, %v4117
  %v4119 = vpop.f32.mrb[0].mxu0
  %v4120 = vadd.f32 0.0, %v4119
  %4121 = vmatprep.mubr.bf16.mxu0 0
  %4122 = vmatmul.mubr.bf16.gmra.mrb[0].mxu0 %v3995
  %v4123 = vpop.f32.mrb[0].mxu0
  %v4124 = vadd.f32 0.0, %v4123
  %v4125 = vpop.f32.mrb[0].mxu0
  %v4126 = vadd.f32 0.0, %v4125
  %v4127 = vpop.f32.mrb[0].mxu0
  %v4128 = vadd.f32 0.0, %v4127
  %v4129 = vpop.f32.mrb[0].mxu0
  %v4130 = vadd.f32 0.0, %v4129
  %4131 = vmatprep.mubr.bf16.mxu0 0
  %4132 = vmatmul.mubr.bf16.gmra.mrb[0].mxu0 %v3998
  %v4133 = vpop.f32.mrb[0].mxu0
  %v4134 = vadd.f32 0.0, %v4133
  %v4135 = vpop.f32.mrb[0].mxu0
  %v4136 = vadd.f32 0.0, %v4135
  %v4137 = vpop.f32.mrb[0].mxu0
  %v4138 = vadd.f32 0.0, %v4137
  %v4139 = vpop.f32.mrb[0].mxu0
  %v4140 = vadd.f32 0.0, %v4139
  %4141 = vmatprep.mubr.bf16.mxu0 0
  %4142 = vmatmul.mubr.bf16.gmra.mrb[0].mxu0 %v4001
  %v4143 = vpop.f32.mrb[0].mxu0
  %v4144 = vadd.f32 0.0, %v4143
  %v4145 = vpop.f32.mrb[0].mxu0
  %v4146 = vadd.f32 0.0, %v4145
  %v4147 = vpop.f32.mrb[0].mxu0
  %v4148 = vadd.f32 0.0, %v4147
  %v4149 = vpop.f32.mrb[0].mxu0
  %v4150 = vadd.f32 0.0, %v4149
  %4151 = vmatprep.mubr.bf16.mxu0 0
  %4152 = vmatmul.mubr.bf16.gmra.mrb[0].mxu0 %v4004
  %v4153 = vpop.f32.mrb[0].mxu0
  %v4154 = vadd.f32 0.0, %v4153
  %v4155 = vpop.f32.mrb[0].mxu0
  %v4156 = vpop.f32.mrb[0].mxu0
  %v4157 = vadd.f32 0.0, %v4156
  %v4158 = vpop.f32.mrb[0].mxu0
  %v4159 = vadd.f32 0.0, %v4158
  %4160 = vmatprep.mubr.bf16.mxu0 0
  %4161 = vmatmul.mubr.bf16.gmra.mrb[0].mxu0 %v4007
  %v4162 = vpop.f32.mrb[0].mxu0
  %v4163 = vadd.f32 0.0, %v4162
  %v4164 = vpop.f32.mrb[0].mxu0
  %v4165 = vadd.f32 0.0, %v4164
  %v4166 = vpop.f32.mrb[0].mxu0
  %v4167 = vadd.f32 0.0, %v4166
  %v4168 = vpop.f32.mrb[0].mxu0
  %v4169 = vadd.f32 0.0, %v4168
  %4170 = vmatprep.mubr.bf16.mxu0 0
  %4171 = vmatmul.mubr.bf16.gmra.mrb[0].mxu0 %v4010
  %v4172 = vpop.f32.mrb[0].mxu0
  %v4173 = vadd.f32 0.0, %v4172
  %v4174 = vpop.f32.mrb[0].mxu0
  %v4175 = vadd.f32 0.0, %v4174
  %v4176 = vpop.f32.mrb[0].mxu0
  %v4177 = vadd.f32 0.0, %v4176
  %v4178 = vpop.f32.mrb[0].mxu0
  %v4179 = vadd.f32 0.0, %v4178
  %4180 = vmatprep.mubr.bf16.mxu0 0
  %4181 = vmatmul.mubr.bf16.gmra.mrb[0].mxu0 %v4013
  %v4182 = vpop.f32.mrb[0].mxu0
  %v4183 = vadd.f32 0.0, %v4182
  %v4184 = vpop.f32.mrb[0].mxu0
  %v4185 = vadd.f32 0.0, %v4184
  %v4186 = vpop.f32.mrb[0].mxu0
  %v4187 = vadd.f32 0.0, %v4186
  %v4188 = vpop.f32.mrb[0].mxu0
  %v4189 = vadd.f32 0.0, %v4188
  %4190 = vmatprep.mubr.bf16.mxu0 0
  %4191 = vmatmul.mubr.bf16.gmra.mrb[0].mxu0 %v4016
  %v4192 = vpop.f32.mrb[0].mxu0
  %v4193 = vadd.f32 0.0, %v4192
  %v4194 = vpop.f32.mrb[0].mxu0
  %v4195 = vadd.f32 0.0, %v4194
  %v4196 = vpop.f32.mrb[0].mxu0
  %v4197 = vadd.f32 0.0, %v4196
  %v4198 = vpop.f32.mrb[0].mxu0
  %v4199 = vadd.f32 0.0, %v4198
  %4200 = vmatprep.mubr.bf16.mxu0 0
  %4201 = vmatmul.mubr.bf16.gmra.mrb[0].mxu0 %v4019
  %v4202 = vpop.f32.mrb[0].mxu0
  %v4203 = vadd.f32 0.0, %v4202
  %v4204 = vpop.f32.mrb[0].mxu0
  %v4205 = vadd.f32 0.0, %v4204
  %v4206 = vpop.f32.mrb[0].mxu0
  %v4207 = vadd.f32 0.0, %v4206
  %v4208 = vpop.f32.mrb[0].mxu0
  %v4209 = vadd.f32 0.0, %v4208
  %4210 = vmatprep.mubr.bf16.mxu0 0
  %4211 = vmatmul.mubr.bf16.gmra.mrb[0].mxu0 %v4022
  %v4212 = vpop.f32.mrb[0].mxu0
  %v4213 = vadd.f32 0.0, %v4212
  %v4214 = vpop.f32.mrb[0].mxu0
  %v4215 = vadd.f32 0.0, %v4214
  %v4216 = vpop.f32.mrb[0].mxu0
  %v4217 = vadd.f32 0.0, %v4216
  %v4218 = vpop.f32.mrb[0].mxu0
  %v4219 = vadd.f32 0.0, %v4218
  %4220 = vmatprep.mubr.bf16.mxu0 0
  %4221 = vmatmul.mubr.bf16.gmra.mrb[0].mxu0 %v4025
  %v4222 = vpop.f32.mrb[0].mxu0
  %v4223 = vadd.f32 0.0, %v4222
  %v4224 = vpop.f32.mrb[0].mxu0
  %v4225 = vadd.f32 0.0, %v4224
  %v4226 = vpop.f32.mrb[0].mxu0
  %v4227 = vadd.f32 0.0, %v4226
  %v4228 = vpop.f32.mrb[0].mxu0
  %v4229 = vadd.f32 0.0, %v4228
  %4230 = vmatprep.mubr.bf16.mxu0 0
  %4231 = vmatmul.mubr.bf16.gmra.mrb[0].mxu0 %v4028
  %v4232 = vpop.f32.mrb[0].mxu0
  %v4233 = vadd.f32 0.0, %v4232
  %v4234 = vpop.f32.mrb[0].mxu0
  %v4235 = vadd.f32 0.0, %v4234
  %v4236 = vpop.f32.mrb[0].mxu0
  %v4237 = vadd.f32 0.0, %v4236
  %v4238 = vpop.f32.mrb[0].mxu0
  %v4239 = vadd.f32 0.0, %v4238
  %4240 = vdwg.mxu0
  %v4241 = vld [vmem:[%s9] sm:$0x1]
  %v4243 = vlaneseq
  %v4244 = vshrl.u32 %v4243, 7
  %v4245 = vsub.s32 0, %v4244
  %v4246 = vrot.slane %v4241, %v4245
  %v4248 = vadd.f32 %v4246, 0.0
  %v4249 = vadd.f32 %v4248, %v4065
  %v4250 = vadd.f32 %v4248, %v4068
  %v4251 = vadd.f32 %v4248, %v4074
  %v4252 = vadd.f32 %v4248, %v4078
  %v4253 = vadd.f32 %v4248, %v4084
  %v4254 = vadd.f32 %v4248, %v4088
  %v4255 = vadd.f32 %v4248, %v4094
  %v4256 = vadd.f32 %v4248, %v4098
  %v4257 = vadd.f32 %v4248, %v4104
  %v4258 = vadd.f32 %v4248, %v4108
  %v4259 = vadd.f32 %v4248, %v4114
  %v4260 = vadd.f32 %v4248, %v4118
  %v4261 = vadd.f32 %v4248, %v4124
  %v4262 = vadd.f32 %v4248, %v4128
  %v4263 = vadd.f32 %v4248, %v4134
  %v4264 = vadd.f32 %v4248, %v4138
  %v4265 = vadd.f32 %v4248, %v4144
  %v4266 = vadd.f32 %v4248, %v4154
  %v4267 = vadd.f32 %v4248, %v4157
  %v4268 = vadd.f32 %v4248, %v4163
  %v4269 = vadd.f32 %v4248, %v4167
  %v4270 = vadd.f32 %v4248, %v4173
  %v4271 = vadd.f32 %v4248, %v4177
  %v4272 = vadd.f32 %v4248, %v4183
  %v4273 = vadd.f32 %v4248, %v4187
  %v4274 = vadd.f32 %v4248, %v4193
  %v4275 = vadd.f32 %v4248, %v4197
  %v4276 = vadd.f32 %v4248, %v4203
  %v4277 = vadd.f32 %v4248, %v4207
  %v4278 = vadd.f32 %v4248, %v4213
  %v4279 = vadd.f32 %v4248, %v4217
  %v4280 = vadd.f32 %v4248, %v4223
  %v4281 = vadd.f32 %v4248, %v4227
  %v4282 = vadd.f32 %v4248, %v4233
  %v4317 = vrot.slane %v4065, 1
  %v4318 = vrot.slane %v4068, 1
  %v4319 = vsel %vm534, %v4317, %v4318
  %v4320 = vrot.slane %v4074, 1
  %v4321 = vsel %vm534, %v4318, %v4320
  %v4322 = vrot.slane %v4078, 1
  %v4323 = vsel %vm534, %v4320, %v4322
  %v4324 = vrot.slane %v4084, 1
  %v4325 = vsel %vm534, %v4322, %v4324
  %v4326 = vrot.slane %v4088, 1
  %v4327 = vsel %vm534, %v4324, %v4326
  %v4328 = vrot.slane %v4094, 1
  %v4329 = vsel %vm534, %v4326, %v4328
  %v4330 = vrot.slane %v4098, 1
  %v4331 = vsel %vm534, %v4328, %v4330
  %v4332 = vrot.slane %v4104, 1
  %v4333 = vsel %vm534, %v4330, %v4332
  %v4334 = vrot.slane %v4108, 1
  %v4335 = vsel %vm534, %v4332, %v4334
  %v4336 = vrot.slane %v4114, 1
  %v4337 = vsel %vm534, %v4334, %v4336
  %v4338 = vrot.slane %v4118, 1
  %v4339 = vsel %vm534, %v4336, %v4338
  %v4340 = vrot.slane %v4124, 1
  %v4341 = vsel %vm534, %v4338, %v4340
  %v4342 = vrot.slane %v4128, 1
  %v4343 = vsel %vm534, %v4340, %v4342
  %v4344 = vrot.slane %v4134, 1
  %v4345 = vsel %vm534, %v4342, %v4344
  %v4346 = vrot.slane %v4138, 1
  %v4347 = vsel %vm534, %v4344, %v4346
  %v4348 = vrot.slane %v4144, 1
  %v4349 = vsel %vm534, %v4346, %v4348
  %v4350 = vrot.slane %v4154, 1
  %v4351 = vrot.slane %v4157, 1
  %v4352 = vsel %vm534, %v4350, %v4351
  %v4353 = vrot.slane %v4163, 1
  %v4354 = vsel %vm534, %v4351, %v4353
  %v4355 = vrot.slane %v4167, 1
  %v4356 = vsel %vm534, %v4353, %v4355
  %v4357 = vrot.slane %v4173, 1
  %v4358 = vsel %vm534, %v4355, %v4357
  %v4359 = vrot.slane %v4177, 1
  %v4360 = vsel %vm534, %v4357, %v4359
  %v4361 = vrot.slane %v4183, 1
  %v4362 = vsel %vm534, %v4359, %v4361
  %v4363 = vrot.slane %v4187, 1
  %v4364 = vsel %vm534, %v4361, %v4363
  %v4365 = vrot.slane %v4193, 1
  %v4366 = vsel %vm534, %v4363, %v4365
  %v4367 = vrot.slane %v4197, 1
  %v4368 = vsel %vm534, %v4365, %v4367
  %v4369 = vrot.slane %v4203, 1
  %v4370 = vsel %vm534, %v4367, %v4369
  %v4371 = vrot.slane %v4207, 1
  %v4372 = vsel %vm534, %v4369, %v4371
  %v4373 = vrot.slane %v4213, 1
  %v4374 = vsel %vm534, %v4371, %v4373
  %v4375 = vrot.slane %v4217, 1
  %v4376 = vsel %vm534, %v4373, %v4375
  %v4377 = vrot.slane %v4223, 1
  %v4378 = vsel %vm534, %v4375, %v4377
  %v4379 = vrot.slane %v4227, 1
  %v4380 = vsel %vm534, %v4377, %v4379
  %v4381 = vrot.slane %v4233, 1
  %v4382 = vsel %vm534, %v4379, %v4381
  %4383 = vrot.lane.b32.xlu0 %v4319, 96
  %v4384 = vpop.permute.xlu0 %4383
  %4385 = vrot.lane.b32.xlu0 %v4321, 96
  %v4386 = vpop.permute.xlu0 %4385
  %4387 = vrot.lane.b32.xlu0 %v4323, 96
  %v4388 = vpop.permute.xlu0 %4387
  %4389 = vrot.lane.b32.xlu0 %v4325, 96
  %v4390 = vpop.permute.xlu0 %4389
  %4391 = vrot.lane.b32.xlu0 %v4327, 96
  %v4392 = vpop.permute.xlu0 %4391
  %4393 = vrot.lane.b32.xlu0 %v4329, 96
  %v4394 = vpop.permute.xlu0 %4393
  %4395 = vrot.lane.b32.xlu0 %v4331, 96
  %v4396 = vpop.permute.xlu0 %4395
  %4397 = vrot.lane.b32.xlu0 %v4333, 96
  %v4398 = vpop.permute.xlu0 %4397
  %4399 = vrot.lane.b32.xlu0 %v4335, 96
  %v4400 = vpop.permute.xlu0 %4399
  %4401 = vrot.lane.b32.xlu0 %v4337, 96
  %v4402 = vpop.permute.xlu0 %4401
  %4403 = vrot.lane.b32.xlu0 %v4339, 96
  %v4404 = vpop.permute.xlu0 %4403
  %4405 = vrot.lane.b32.xlu0 %v4341, 96
  %v4406 = vpop.permute.xlu0 %4405
  %4407 = vrot.lane.b32.xlu0 %v4343, 96
  %v4408 = vpop.permute.xlu0 %4407
  %4409 = vrot.lane.b32.xlu0 %v4345, 96
  %v4410 = vpop.permute.xlu0 %4409
  %4411 = vrot.lane.b32.xlu0 %v4347, 96
  %v4412 = vpop.permute.xlu0 %4411
  %4413 = vrot.lane.b32.xlu0 %v4349, 96
  %v4414 = vpop.permute.xlu0 %4413
  %4415 = vrot.lane.b32.xlu0 %v4348, 96
  %v4416 = vpop.permute.xlu0 %4415
  %4417 = vrot.lane.b32.xlu0 %v4352, 96
  %v4418 = vpop.permute.xlu0 %4417
  %4419 = vrot.lane.b32.xlu0 %v4354, 96
  %v4420 = vpop.permute.xlu0 %4419
  %4421 = vrot.lane.b32.xlu0 %v4356, 96
  %v4422 = vpop.permute.xlu0 %4421
  %4423 = vrot.lane.b32.xlu0 %v4358, 96
  %v4424 = vpop.permute.xlu0 %4423
  %4425 = vrot.lane.b32.xlu0 %v4360, 96
  %v4426 = vpop.permute.xlu0 %4425
  %4427 = vrot.lane.b32.xlu0 %v4362, 96
  %v4428 = vpop.permute.xlu0 %4427
  %4429 = vrot.lane.b32.xlu0 %v4364, 96
  %v4430 = vpop.permute.xlu0 %4429
  %4431 = vrot.lane.b32.xlu0 %v4366, 96
  %v4432 = vpop.permute.xlu0 %4431
  %4433 = vrot.lane.b32.xlu0 %v4368, 96
  %v4434 = vpop.permute.xlu0 %4433
  %4435 = vrot.lane.b32.xlu0 %v4370, 96
  %v4436 = vpop.permute.xlu0 %4435
  %4437 = vrot.lane.b32.xlu0 %v4372, 96
  %v4438 = vpop.permute.xlu0 %4437
  %4439 = vrot.lane.b32.xlu0 %v4374, 96
  %v4440 = vpop.permute.xlu0 %4439
  %4441 = vrot.lane.b32.xlu0 %v4376, 96
  %v4442 = vpop.permute.xlu0 %4441
  %4443 = vrot.lane.b32.xlu0 %v4378, 96
  %v4444 = vpop.permute.xlu0 %4443
  %4445 = vrot.lane.b32.xlu0 %v4380, 96
  %v4446 = vpop.permute.xlu0 %4445
  %4447 = vrot.lane.b32.xlu0 %v4382, 96
  %v4448 = vpop.permute.xlu0 %4447
  %4449 = vrot.lane.b32.xlu0 %v4381, 96
  %v4450 = vpop.permute.xlu0 %4449
  %v4485 = vadd.f32 %v4249, %v4384
  %v4486 = vadd.f32 %v4250, %v4386
  %v4487 = vadd.f32 %v4251, %v4388
  %v4488 = vadd.f32 %v4252, %v4390
  %v4489 = vadd.f32 %v4253, %v4392
  %v4490 = vadd.f32 %v4254, %v4394
  %v4491 = vadd.f32 %v4255, %v4396
  %v4492 = vadd.f32 %v4256, %v4398
  %v4493 = vadd.f32 %v4257, %v4400
  %v4494 = vadd.f32 %v4258, %v4402
  %v4495 = vadd.f32 %v4259, %v4404
  %v4496 = vadd.f32 %v4260, %v4406
  %v4497 = vadd.f32 %v4261, %v4408
  %v4498 = vadd.f32 %v4262, %v4410
  %v4499 = vadd.f32 %v4263, %v4412
  %v4500 = vadd.f32 %v4264, %v4414
  %v4501 = vadd.f32 %v4265, %v4416
  %v4502 = vadd.f32 %v4266, %v4418
  %v4503 = vadd.f32 %v4267, %v4420
  %v4504 = vadd.f32 %v4268, %v4422
  %v4505 = vadd.f32 %v4269, %v4424
  %v4506 = vadd.f32 %v4270, %v4426
  %v4507 = vadd.f32 %v4271, %v4428
  %v4508 = vadd.f32 %v4272, %v4430
  %v4509 = vadd.f32 %v4273, %v4432
  %v4510 = vadd.f32 %v4274, %v4434
  %v4511 = vadd.f32 %v4275, %v4436
  %v4512 = vadd.f32 %v4276, %v4438
  %v4513 = vadd.f32 %v4277, %v4440
  %v4514 = vadd.f32 %v4278, %v4442
  %v4515 = vadd.f32 %v4279, %v4444
  %v4516 = vadd.f32 %v4280, %v4446
  %v4517 = vadd.f32 %v4281, %v4448
  %v4518 = vadd.f32 %v4282, %v4450
  %v4519 = vrot.slane %v4068, 2
  %v4520 = vrot.slane %v4074, 2
  %v4521 = vsel %vm737, %v4519, %v4520
  %v4522 = vrot.slane %v4078, 2
  %v4523 = vsel %vm737, %v4520, %v4522
  %v4524 = vrot.slane %v4084, 2
  %v4525 = vsel %vm737, %v4522, %v4524
  %v4526 = vrot.slane %v4088, 2
  %v4527 = vsel %vm737, %v4524, %v4526
  %v4528 = vrot.slane %v4094, 2
  %v4529 = vsel %vm737, %v4526, %v4528
  %v4530 = vrot.slane %v4098, 2
  %v4531 = vsel %vm737, %v4528, %v4530
  %v4532 = vrot.slane %v4104, 2
  %v4533 = vsel %vm737, %v4530, %v4532
  %v4534 = vrot.slane %v4108, 2
  %v4535 = vsel %vm737, %v4532, %v4534
  %v4536 = vrot.slane %v4114, 2
  %v4537 = vsel %vm737, %v4534, %v4536
  %v4538 = vrot.slane %v4118, 2
  %v4539 = vsel %vm737, %v4536, %v4538
  %v4540 = vrot.slane %v4124, 2
  %v4541 = vsel %vm737, %v4538, %v4540
  %v4542 = vrot.slane %v4128, 2
  %v4543 = vsel %vm737, %v4540, %v4542
  %v4544 = vrot.slane %v4134, 2
  %v4545 = vsel %vm737, %v4542, %v4544
  %v4546 = vrot.slane %v4138, 2
  %v4547 = vsel %vm737, %v4544, %v4546
  %v4548 = vrot.slane %v4144, 2
  %v4549 = vsel %vm737, %v4546, %v4548
  %v4550 = vrot.slane %v4157, 2
  %v4551 = vrot.slane %v4163, 2
  %v4552 = vsel %vm737, %v4550, %v4551
  %v4553 = vrot.slane %v4167, 2
  %v4554 = vsel %vm737, %v4551, %v4553
  %v4555 = vrot.slane %v4173, 2
  %v4556 = vsel %vm737, %v4553, %v4555
  %v4557 = vrot.slane %v4177, 2
  %v4558 = vsel %vm737, %v4555, %v4557
  %v4559 = vrot.slane %v4183, 2
  %v4560 = vsel %vm737, %v4557, %v4559
  %v4561 = vrot.slane %v4187, 2
  %v4562 = vsel %vm737, %v4559, %v4561
  %v4563 = vrot.slane %v4193, 2
  %v4564 = vsel %vm737, %v4561, %v4563
  %v4565 = vrot.slane %v4197, 2
  %v4566 = vsel %vm737, %v4563, %v4565
  %v4567 = vrot.slane %v4203, 2
  %v4568 = vsel %vm737, %v4565, %v4567
  %v4569 = vrot.slane %v4207, 2
  %v4570 = vsel %vm737, %v4567, %v4569
  %v4571 = vrot.slane %v4213, 2
  %v4572 = vsel %vm737, %v4569, %v4571
  %v4573 = vrot.slane %v4217, 2
  %v4574 = vsel %vm737, %v4571, %v4573
  %v4575 = vrot.slane %v4223, 2
  %v4576 = vsel %vm737, %v4573, %v4575
  %v4577 = vrot.slane %v4227, 2
  %v4578 = vsel %vm737, %v4575, %v4577
  %v4579 = vrot.slane %v4233, 2
  %v4580 = vsel %vm737, %v4577, %v4579
  %4581 = vrot.lane.b32.xlu0 %v4519, 64
  %v4582 = vpop.permute.xlu0 %4581
  %4583 = vrot.lane.b32.xlu0 %v4521, 64
  %v4584 = vpop.permute.xlu0 %4583
  %4585 = vrot.lane.b32.xlu0 %v4523, 64
  %v4586 = vpop.permute.xlu0 %4585
  %4587 = vrot.lane.b32.xlu0 %v4525, 64
  %v4588 = vpop.permute.xlu0 %4587
  %4589 = vrot.lane.b32.xlu0 %v4527, 64
  %v4590 = vpop.permute.xlu0 %4589
  %4591 = vrot.lane.b32.xlu0 %v4529, 64
  %v4592 = vpop.permute.xlu0 %4591
  %4593 = vrot.lane.b32.xlu0 %v4531, 64
  %v4594 = vpop.permute.xlu0 %4593
  %4595 = vrot.lane.b32.xlu0 %v4533, 64
  %v4596 = vpop.permute.xlu0 %4595
  %4597 = vrot.lane.b32.xlu0 %v4535, 64
  %v4598 = vpop.permute.xlu0 %4597
  %4599 = vrot.lane.b32.xlu0 %v4537, 64
  %v4600 = vpop.permute.xlu0 %4599
  %4601 = vrot.lane.b32.xlu0 %v4539, 64
  %v4602 = vpop.permute.xlu0 %4601
  %4603 = vrot.lane.b32.xlu0 %v4541, 64
  %v4604 = vpop.permute.xlu0 %4603
  %4605 = vrot.lane.b32.xlu0 %v4543, 64
  %v4606 = vpop.permute.xlu0 %4605
  %4607 = vrot.lane.b32.xlu0 %v4545, 64
  %v4608 = vpop.permute.xlu0 %4607
  %4609 = vrot.lane.b32.xlu0 %v4547, 64
  %v4610 = vpop.permute.xlu0 %4609
  %4611 = vrot.lane.b32.xlu0 %v4549, 64
  %v4612 = vpop.permute.xlu0 %4611
  %4613 = vrot.lane.b32.xlu0 %v4548, 64
  %v4614 = vpop.permute.xlu0 %4613
  %4615 = vrot.lane.b32.xlu0 %v4550, 64
  %v4616 = vpop.permute.xlu0 %4615
  %4617 = vrot.lane.b32.xlu0 %v4552, 64
  %v4618 = vpop.permute.xlu0 %4617
  %4619 = vrot.lane.b32.xlu0 %v4554, 64
  %v4620 = vpop.permute.xlu0 %4619
  %4621 = vrot.lane.b32.xlu0 %v4556, 64
  %v4622 = vpop.permute.xlu0 %4621
  %4623 = vrot.lane.b32.xlu0 %v4558, 64
  %v4624 = vpop.permute.xlu0 %4623
  %4625 = vrot.lane.b32.xlu0 %v4560, 64
  %v4626 = vpop.permute.xlu0 %4625
  %4627 = vrot.lane.b32.xlu0 %v4562, 64
  %v4628 = vpop.permute.xlu0 %4627
  %4629 = vrot.lane.b32.xlu0 %v4564, 64
  %v4630 = vpop.permute.xlu0 %4629
  %4631 = vrot.lane.b32.xlu0 %v4566, 64
  %v4632 = vpop.permute.xlu0 %4631
  %4633 = vrot.lane.b32.xlu0 %v4568, 64
  %v4634 = vpop.permute.xlu0 %4633
  %4635 = vrot.lane.b32.xlu0 %v4570, 64
  %v4636 = vpop.permute.xlu0 %4635
  %4637 = vrot.lane.b32.xlu0 %v4572, 64
  %v4638 = vpop.permute.xlu0 %4637
  %4639 = vrot.lane.b32.xlu0 %v4574, 64
  %v4640 = vpop.permute.xlu0 %4639
  %4641 = vrot.lane.b32.xlu0 %v4576, 64
  %v4642 = vpop.permute.xlu0 %4641
  %4643 = vrot.lane.b32.xlu0 %v4578, 64
  %v4644 = vpop.permute.xlu0 %4643
  %4645 = vrot.lane.b32.xlu0 %v4580, 64
  %v4646 = vpop.permute.xlu0 %4645
  %4647 = vrot.lane.b32.xlu0 %v4579, 64
  %v4648 = vpop.permute.xlu0 %4647
  %v4683 = vadd.f32 %v4485, %v4582
  %v4684 = vadd.f32 %v4486, %v4584
  %v4685 = vadd.f32 %v4487, %v4586
  %v4686 = vadd.f32 %v4488, %v4588
  %v4687 = vadd.f32 %v4489, %v4590
  %v4688 = vadd.f32 %v4490, %v4592
  %v4689 = vadd.f32 %v4491, %v4594
  %v4690 = vadd.f32 %v4492, %v4596
  %v4691 = vadd.f32 %v4493, %v4598
  %v4692 = vadd.f32 %v4494, %v4600
  %v4693 = vadd.f32 %v4495, %v4602
  %v4694 = vadd.f32 %v4496, %v4604
  %v4695 = vadd.f32 %v4497, %v4606
  %v4696 = vadd.f32 %v4498, %v4608
  %v4697 = vadd.f32 %v4499, %v4610
  %v4698 = vadd.f32 %v4500, %v4612
  %v4699 = vadd.f32 %v4501, %v4614
  %v4700 = vadd.f32 %v4502, %v4616
  %v4701 = vadd.f32 %v4503, %v4618
  %v4702 = vadd.f32 %v4504, %v4620
  %v4703 = vadd.f32 %v4505, %v4622
  %v4704 = vadd.f32 %v4506, %v4624
  %v4705 = vadd.f32 %v4507, %v4626
  %v4706 = vadd.f32 %v4508, %v4628
  %v4707 = vadd.f32 %v4509, %v4630
  %v4708 = vadd.f32 %v4510, %v4632
  %v4709 = vadd.f32 %v4511, %v4634
  %v4710 = vadd.f32 %v4512, %v4636
  %v4711 = vadd.f32 %v4513, %v4638
  %v4712 = vadd.f32 %v4514, %v4640
  %v4713 = vadd.f32 %v4515, %v4642
  %v4714 = vadd.f32 %v4516, %v4644
  %v4715 = vadd.f32 %v4517, %v4646
  %v4716 = vadd.f32 %v4518, %v4648
  %v4719 = vrot.slane %v4068, 3
  %v4720 = vrot.slane %v4074, 3
  %v4721 = vsel %vm938, %v4719, %v4720
  %v4722 = vrot.slane %v4078, 3
  %v4723 = vsel %vm938, %v4720, %v4722
  %v4724 = vrot.slane %v4084, 3
  %v4725 = vsel %vm938, %v4722, %v4724
  %v4726 = vrot.slane %v4088, 3
  %v4727 = vsel %vm938, %v4724, %v4726
  %v4728 = vrot.slane %v4094, 3
  %v4729 = vsel %vm938, %v4726, %v4728
  %v4730 = vrot.slane %v4098, 3
  %v4731 = vsel %vm938, %v4728, %v4730
  %v4732 = vrot.slane %v4104, 3
  %v4733 = vsel %vm938, %v4730, %v4732
  %v4734 = vrot.slane %v4108, 3
  %v4735 = vsel %vm938, %v4732, %v4734
  %v4736 = vrot.slane %v4114, 3
  %v4737 = vsel %vm938, %v4734, %v4736
  %v4738 = vrot.slane %v4118, 3
  %v4739 = vsel %vm938, %v4736, %v4738
  %v4740 = vrot.slane %v4124, 3
  %v4741 = vsel %vm938, %v4738, %v4740
  %v4742 = vrot.slane %v4128, 3
  %v4743 = vsel %vm938, %v4740, %v4742
  %v4744 = vrot.slane %v4134, 3
  %v4745 = vsel %vm938, %v4742, %v4744
  %v4746 = vrot.slane %v4138, 3
  %v4747 = vsel %vm938, %v4744, %v4746
  %v4748 = vrot.slane %v4144, 3
  %v4749 = vsel %vm938, %v4746, %v4748
  %v4750 = vrot.slane %v4148, 3
  %v4751 = vsel %vm938, %v4748, %v4750
  %v4752 = vrot.slane %v4157, 3
  %v4753 = vrot.slane %v4163, 3
  %v4754 = vsel %vm938, %v4752, %v4753
  %v4755 = vrot.slane %v4167, 3
  %v4756 = vsel %vm938, %v4753, %v4755
  %v4757 = vrot.slane %v4173, 3
  %v4758 = vsel %vm938, %v4755, %v4757
  %v4759 = vrot.slane %v4177, 3
  %v4760 = vsel %vm938, %v4757, %v4759
  %v4761 = vrot.slane %v4183, 3
  %v4762 = vsel %vm938, %v4759, %v4761
  %v4763 = vrot.slane %v4187, 3
  %v4764 = vsel %vm938, %v4761, %v4763
  %v4765 = vrot.slane %v4193, 3
  %v4766 = vsel %vm938, %v4763, %v4765
  %v4767 = vrot.slane %v4197, 3
  %v4768 = vsel %vm938, %v4765, %v4767
  %v4769 = vrot.slane %v4203, 3
  %v4770 = vsel %vm938, %v4767, %v4769
  %v4771 = vrot.slane %v4207, 3
  %v4772 = vsel %vm938, %v4769, %v4771
  %v4773 = vrot.slane %v4213, 3
  %v4774 = vsel %vm938, %v4771, %v4773
  %v4775 = vrot.slane %v4217, 3
  %v4776 = vsel %vm938, %v4773, %v4775
  %v4777 = vrot.slane %v4223, 3
  %v4778 = vsel %vm938, %v4775, %v4777
  %v4779 = vrot.slane %v4227, 3
  %v4780 = vsel %vm938, %v4777, %v4779
  %v4781 = vrot.slane %v4233, 3
  %v4782 = vsel %vm938, %v4779, %v4781
  %v4783 = vrot.slane %v4237, 3
  %v4784 = vsel %vm938, %v4781, %v4783
  %4785 = vrot.lane.b32.xlu0 %v4719, 32
  %v4786 = vpop.permute.xlu0 %4785
  %4787 = vrot.lane.b32.xlu0 %v4721, 32
  %v4788 = vpop.permute.xlu0 %4787
  %4789 = vrot.lane.b32.xlu0 %v4723, 32
  %v4790 = vpop.permute.xlu0 %4789
  %4791 = vrot.lane.b32.xlu0 %v4725, 32
  %v4792 = vpop.permute.xlu0 %4791
  %4793 = vrot.lane.b32.xlu0 %v4727, 32
  %v4794 = vpop.permute.xlu0 %4793
  %4795 = vrot.lane.b32.xlu0 %v4729, 32
  %v4796 = vpop.permute.xlu0 %4795
  %4797 = vrot.lane.b32.xlu0 %v4731, 32
  %v4798 = vpop.permute.xlu0 %4797
  %4799 = vrot.lane.b32.xlu0 %v4733, 32
  %v4800 = vpop.permute.xlu0 %4799
  %4801 = vrot.lane.b32.xlu0 %v4735, 32
  %v4802 = vpop.permute.xlu0 %4801
  %4803 = vrot.lane.b32.xlu0 %v4737, 32
  %v4804 = vpop.permute.xlu0 %4803
  %4805 = vrot.lane.b32.xlu0 %v4739, 32
  %v4806 = vpop.permute.xlu0 %4805
  %4807 = vrot.lane.b32.xlu0 %v4741, 32
  %v4808 = vpop.permute.xlu0 %4807
  %4809 = vrot.lane.b32.xlu0 %v4743, 32
  %v4810 = vpop.permute.xlu0 %4809
  %4811 = vrot.lane.b32.xlu0 %v4745, 32
  %v4812 = vpop.permute.xlu0 %4811
  %4813 = vrot.lane.b32.xlu0 %v4747, 32
  %v4814 = vpop.permute.xlu0 %4813
  %4815 = vrot.lane.b32.xlu0 %v4749, 32
  %v4816 = vpop.permute.xlu0 %4815
  %4817 = vrot.lane.b32.xlu0 %v4751, 32
  %v4818 = vpop.permute.xlu0 %4817
  %4819 = vrot.lane.b32.xlu0 %v4752, 32
  %v4820 = vpop.permute.xlu0 %4819
  %4821 = vrot.lane.b32.xlu0 %v4754, 32
  %v4822 = vpop.permute.xlu0 %4821
  %4823 = vrot.lane.b32.xlu0 %v4756, 32
  %v4824 = vpop.permute.xlu0 %4823
  %4825 = vrot.lane.b32.xlu0 %v4758, 32
  %v4826 = vpop.permute.xlu0 %4825
  %4827 = vrot.lane.b32.xlu0 %v4760, 32
  %v4828 = vpop.permute.xlu0 %4827
  %4829 = vrot.lane.b32.xlu0 %v4762, 32
  %v4830 = vpop.permute.xlu0 %4829
  %4831 = vrot.lane.b32.xlu0 %v4764, 32
  %v4832 = vpop.permute.xlu0 %4831
  %4833 = vrot.lane.b32.xlu0 %v4766, 32
  %v4834 = vpop.permute.xlu0 %4833
  %4835 = vrot.lane.b32.xlu0 %v4768, 32
  %v4836 = vpop.permute.xlu0 %4835
  %4837 = vrot.lane.b32.xlu0 %v4770, 32
  %v4838 = vpop.permute.xlu0 %4837
  %4839 = vrot.lane.b32.xlu0 %v4772, 32
  %v4840 = vpop.permute.xlu0 %4839
  %4841 = vrot.lane.b32.xlu0 %v4774, 32
  %v4842 = vpop.permute.xlu0 %4841
  %4843 = vrot.lane.b32.xlu0 %v4776, 32
  %v4844 = vpop.permute.xlu0 %4843
  %4845 = vrot.lane.b32.xlu0 %v4778, 32
  %v4846 = vpop.permute.xlu0 %4845
  %4847 = vrot.lane.b32.xlu0 %v4780, 32
  %v4848 = vpop.permute.xlu0 %4847
  %4849 = vrot.lane.b32.xlu0 %v4782, 32
  %v4850 = vpop.permute.xlu0 %4849
  %4851 = vrot.lane.b32.xlu0 %v4784, 32
  %v4852 = vpop.permute.xlu0 %4851
  %v4887 = vadd.f32 %v4683, %v4786
  %v4888 = vadd.f32 %v4684, %v4788
  %v4889 = vadd.f32 %v4685, %v4790
  %v4890 = vadd.f32 %v4686, %v4792
  %v4891 = vadd.f32 %v4687, %v4794
  %v4892 = vadd.f32 %v4688, %v4796
  %v4893 = vadd.f32 %v4689, %v4798
  %v4894 = vadd.f32 %v4690, %v4800
  %v4895 = vadd.f32 %v4691, %v4802
  %v4896 = vadd.f32 %v4692, %v4804
  %v4897 = vadd.f32 %v4693, %v4806
  %v4898 = vadd.f32 %v4694, %v4808
  %v4899 = vadd.f32 %v4695, %v4810
  %v4900 = vadd.f32 %v4696, %v4812
  %v4901 = vadd.f32 %v4697, %v4814
  %v4902 = vadd.f32 %v4698, %v4816
  %v4903 = vadd.f32 %v4699, %v4818
  %v4904 = vadd.f32 %v4700, %v4820
  %v4905 = vadd.f32 %v4701, %v4822
  %v4906 = vadd.f32 %v4702, %v4824
  %v4907 = vadd.f32 %v4703, %v4826
  %v4908 = vadd.f32 %v4704, %v4828
  %v4909 = vadd.f32 %v4705, %v4830
  %v4910 = vadd.f32 %v4706, %v4832
  %v4911 = vadd.f32 %v4707, %v4834
  %v4912 = vadd.f32 %v4708, %v4836
  %v4913 = vadd.f32 %v4709, %v4838
  %v4914 = vadd.f32 %v4710, %v4840
  %v4915 = vadd.f32 %v4711, %v4842
  %v4916 = vadd.f32 %v4712, %v4844
  %v4917 = vadd.f32 %v4713, %v4846
  %v4918 = vadd.f32 %v4714, %v4848
  %v4919 = vadd.f32 %v4715, %v4850
  %v4920 = vadd.f32 %v4716, %v4852
  %v4955 = vrot.slane %v4070, 4
  %v4956 = vrot.slane %v4076, 4
  %v4957 = vsel %vm1175, %v4955, %v4956
  %v4958 = vrot.slane %v4080, 4
  %v4959 = vsel %vm1175, %v4956, %v4958
  %v4960 = vrot.slane %v4086, 4
  %v4961 = vsel %vm1175, %v4958, %v4960
  %v4962 = vrot.slane %v4090, 4
  %v4963 = vsel %vm1175, %v4960, %v4962
  %v4964 = vrot.slane %v4096, 4
  %v4965 = vsel %vm1175, %v4962, %v4964
  %v4966 = vrot.slane %v4100, 4
  %v4967 = vsel %vm1175, %v4964, %v4966
  %v4968 = vrot.slane %v4106, 4
  %v4969 = vsel %vm1175, %v4966, %v4968
  %v4970 = vrot.slane %v4110, 4
  %v4971 = vsel %vm1175, %v4968, %v4970
  %v4972 = vrot.slane %v4116, 4
  %v4973 = vsel %vm1175, %v4970, %v4972
  %v4974 = vrot.slane %v4120, 4
  %v4975 = vsel %vm1175, %v4972, %v4974
  %v4976 = vrot.slane %v4126, 4
  %v4977 = vsel %vm1175, %v4974, %v4976
  %v4978 = vrot.slane %v4130, 4
  %v4979 = vsel %vm1175, %v4976, %v4978
  %v4980 = vrot.slane %v4136, 4
  %v4981 = vsel %vm1175, %v4978, %v4980
  %v4982 = vrot.slane %v4140, 4
  %v4983 = vsel %vm1175, %v4980, %v4982
  %v4984 = vrot.slane %v4146, 4
  %v4985 = vsel %vm1175, %v4982, %v4984
  %v4986 = vrot.slane %v4150, 4
  %v4987 = vsel %vm1175, %v4984, %v4986
  %v4988 = vrot.slane %v4159, 4
  %v4989 = vrot.slane %v4165, 4
  %v4990 = vsel %vm1175, %v4988, %v4989
  %v4991 = vrot.slane %v4169, 4
  %v4992 = vsel %vm1175, %v4989, %v4991
  %v4993 = vrot.slane %v4175, 4
  %v4994 = vsel %vm1175, %v4991, %v4993
  %v4995 = vrot.slane %v4179, 4
  %v4996 = vsel %vm1175, %v4993, %v4995
  %v4997 = vrot.slane %v4185, 4
  %v4998 = vsel %vm1175, %v4995, %v4997
  %v4999 = vrot.slane %v4189, 4
  %v5000 = vsel %vm1175, %v4997, %v4999
  %v5001 = vrot.slane %v4195, 4
  %v5002 = vsel %vm1175, %v4999, %v5001
  %v5003 = vrot.slane %v4199, 4
  %v5004 = vsel %vm1175, %v5001, %v5003
  %v5005 = vrot.slane %v4205, 4
  %v5006 = vsel %vm1175, %v5003, %v5005
  %v5007 = vrot.slane %v4209, 4
  %v5008 = vsel %vm1175, %v5005, %v5007
  %v5009 = vrot.slane %v4215, 4
  %v5010 = vsel %vm1175, %v5007, %v5009
  %v5011 = vrot.slane %v4219, 4
  %v5012 = vsel %vm1175, %v5009, %v5011
  %v5013 = vrot.slane %v4225, 4
  %v5014 = vsel %vm1175, %v5011, %v5013
  %v5015 = vrot.slane %v4229, 4
  %v5016 = vsel %vm1175, %v5013, %v5015
  %v5017 = vrot.slane %v4235, 4
  %v5018 = vsel %vm1175, %v5015, %v5017
  %v5019 = vrot.slane %v4239, 4
  %v5020 = vsel %vm1175, %v5017, %v5019
  %v5055 = vadd.f32 %v4887, %v4955
  %v5056 = vadd.f32 %v4888, %v4957
  %v5057 = vadd.f32 %v4889, %v4959
  %v5058 = vadd.f32 %v4890, %v4961
  %v5059 = vadd.f32 %v4891, %v4963
  %v5060 = vadd.f32 %v4892, %v4965
  %v5061 = vadd.f32 %v4893, %v4967
  %v5062 = vadd.f32 %v4894, %v4969
  %v5063 = vadd.f32 %v4895, %v4971
  %v5064 = vadd.f32 %v4896, %v4973
  %v5065 = vadd.f32 %v4897, %v4975
  %v5066 = vadd.f32 %v4898, %v4977
  %v5067 = vadd.f32 %v4899, %v4979
  %v5068 = vadd.f32 %v4900, %v4981
  %v5069 = vadd.f32 %v4901, %v4983
  %v5070 = vadd.f32 %v4902, %v4985
  %v5071 = vadd.f32 %v4903, %v4987
  %v5072 = vadd.f32 %v4904, %v4988
  %v5073 = vadd.f32 %v4905, %v4990
  %v5074 = vadd.f32 %v4906, %v4992
  %v5075 = vadd.f32 %v4907, %v4994
  %v5076 = vadd.f32 %v4908, %v4996
  %v5077 = vadd.f32 %v4909, %v4998
  %v5078 = vadd.f32 %v4910, %v5000
  %v5079 = vadd.f32 %v4911, %v5002
  %v5080 = vadd.f32 %v4912, %v5004
  %v5081 = vadd.f32 %v4913, %v5006
  %v5082 = vadd.f32 %v4914, %v5008
  %v5083 = vadd.f32 %v4915, %v5010
  %v5084 = vadd.f32 %v4916, %v5012
  %v5085 = vadd.f32 %v4917, %v5014
  %v5086 = vadd.f32 %v4918, %v5016
  %v5087 = vadd.f32 %v4919, %v5018
  %v5088 = vadd.f32 %v4920, %v5020
  %v5089 = vmax.f32 %v5055, 0.0
  %v5090 = vmax.f32 %v5056, 0.0
  %v5091 = vmax.f32 %v5057, 0.0
  %v5092 = vmax.f32 %v5058, 0.0
  %v5093 = vmax.f32 %v5059, 0.0
  %v5094 = vmax.f32 %v5060, 0.0
  %v5095 = vmax.f32 %v5061, 0.0
  %v5096 = vmax.f32 %v5062, 0.0
  %v5097 = vmax.f32 %v5063, 0.0
  %v5098 = vmax.f32 %v5064, 0.0
  %v5099 = vmax.f32 %v5065, 0.0
  %v5100 = vmax.f32 %v5066, 0.0
  %v5101 = vmax.f32 %v5067, 0.0
  %v5102 = vmax.f32 %v5068, 0.0
  %v5103 = vmax.f32 %v5069, 0.0
  %v5104 = vmax.f32 %v5070, 0.0
  %v5105 = vmax.f32 %v5071, 0.0
  %v5106 = vmax.f32 %v5072, 0.0
  %v5107 = vmax.f32 %v5073, 0.0
  %v5108 = vmax.f32 %v5074, 0.0
  %v5109 = vmax.f32 %v5075, 0.0
  %v5110 = vmax.f32 %v5076, 0.0
  %v5111 = vmax.f32 %v5077, 0.0
  %v5112 = vmax.f32 %v5078, 0.0
  %v5113 = vmax.f32 %v5079, 0.0
  %v5114 = vmax.f32 %v5080, 0.0
  %v5115 = vmax.f32 %v5081, 0.0
  %v5116 = vmax.f32 %v5082, 0.0
  %v5117 = vmax.f32 %v5083, 0.0
  %v5118 = vmax.f32 %v5084, 0.0
  %v5119 = vmax.f32 %v5085, 0.0
  %v5120 = vmax.f32 %v5086, 0.0
  %v5121 = vmax.f32 %v5087, 0.0
  %v5122 = vmax.f32 %v5088, 0.0
  %v5123 = vld [vmem:[%s1] sm:$0xff]
  %v5124 = vld [vmem:[%s1 + $0x8] sm:$0xff]
  %v5125 = vld [vmem:[%s1 + $0x10] sm:$0xff]
  %v5126 = vld [vmem:[%s1 + $0x18] sm:$0xff]
  %v5127 = vld [vmem:[%s1 + $0x20] sm:$0xff]
  %v5128 = vld [vmem:[%s1 + $0x28] sm:$0xff]
  %v5129 = vld [vmem:[%s1 + $0x30] sm:$0xff]
  %v5130 = vld [vmem:[%s1 + $0x38] sm:$0xff]
  %v5131 = vld [vmem:[%s1 + $0x40] sm:$0xff]
  %v5132 = vld [vmem:[%s1 + $0x48] sm:$0xff]
  %v5133 = vld [vmem:[%s1 + $0x50] sm:$0xff]
  %v5134 = vld [vmem:[%s1 + $0x58] sm:$0xff]
  %v5135 = vld [vmem:[%s1 + $0x60] sm:$0xff]
  %v5136 = vld [vmem:[%s1 + $0x68] sm:$0xff]
  %v5137 = vld [vmem:[%s1 + $0x70] sm:$0xff]
  %v5138 = vld [vmem:[%s1 + $0x78] sm:$0xff]
  %v5139 = vld [vmem:[%s1 + $0x80] sm:$0xff]
  %v5140 = vld [vmem:[%s1 + $0x88] sm:$0xff]
  %v5141 = vld [vmem:[%s1 + $0x90] sm:$0xff]
  %v5142 = vld [vmem:[%s1 + $0x98] sm:$0xff]
  %v5143 = vld [vmem:[%s1 + $0xa0] sm:$0xff]
  %v5144 = vld [vmem:[%s1 + $0xa8] sm:$0xff]
  %v5145 = vld [vmem:[%s1 + $0xb0] sm:$0xff]
  %v5146 = vld [vmem:[%s1 + $0xb8] sm:$0xff]
  %v5147 = vld [vmem:[%s1 + $0xc0] sm:$0xff]
  %v5148 = vld [vmem:[%s1 + $0xc8] sm:$0xff]
  %v5149 = vld [vmem:[%s1 + $0xd0] sm:$0xff]
  %v5150 = vld [vmem:[%s1 + $0xd8] sm:$0xff]
  %v5151 = vld [vmem:[%s1 + $0xe0] sm:$0xff]
  %v5152 = vld [vmem:[%s1 + $0xe8] sm:$0xff]
  %v5153 = vld [vmem:[%s1 + $0xf0] sm:$0xff]
  %v5154 = vld [vmem:[%s1 + $0xf8] sm:$0xff]
  %v5155 = vld [vmem:[%s10] sm:$0x7]
  %v5156 = vld [vmem:[%s11] sm:$0x1]
  %v5158 = vlaneseq
  %v5159 = vshrl.u32 %v5158, 7
  %v5160 = vsub.s32 0, %v5159
  %v5161 = vrot.slane %v5156, %v5160
  %v5163 = vadd.f32 %v5161, 0.0
  %5165 = vset.pattern.permute.xlu0 0
  %5166 = vperm.xlu0 %5165, %v5123
  %v5167 = vpop.permute.xlu0 %5166
  %5170 = vset.pattern.permute.xlu0 0
  %5171 = vperm.xlu0 %5170, %v5124
  %v5172 = vpop.permute.xlu0 %5171
  %5175 = vset.pattern.permute.xlu0 0
  %5176 = vperm.xlu0 %5175, %v5125
  %v5177 = vpop.permute.xlu0 %5176
  %5180 = vset.pattern.permute.xlu0 0
  %5181 = vperm.xlu0 %5180, %v5126
  %v5182 = vpop.permute.xlu0 %5181
  %5185 = vset.pattern.permute.xlu0 0
  %5186 = vperm.xlu0 %5185, %v5127
  %v5187 = vpop.permute.xlu0 %5186
  %5190 = vset.pattern.permute.xlu0 0
  %5191 = vperm.xlu0 %5190, %v5128
  %v5192 = vpop.permute.xlu0 %5191
  %5195 = vset.pattern.permute.xlu0 0
  %5196 = vperm.xlu0 %5195, %v5129
  %v5197 = vpop.permute.xlu0 %5196
  %5200 = vset.pattern.permute.xlu0 0
  %5201 = vperm.xlu0 %5200, %v5130
  %v5202 = vpop.permute.xlu0 %5201
  %5205 = vset.pattern.permute.xlu0 0
  %5206 = vperm.xlu0 %5205, %v5131
  %v5207 = vpop.permute.xlu0 %5206
  %5210 = vset.pattern.permute.xlu0 0
  %5211 = vperm.xlu0 %5210, %v5132
  %v5212 = vpop.permute.xlu0 %5211
  %5215 = vset.pattern.permute.xlu0 0
  %5216 = vperm.xlu0 %5215, %v5133
  %v5217 = vpop.permute.xlu0 %5216
  %5220 = vset.pattern.permute.xlu0 0
  %5221 = vperm.xlu0 %5220, %v5134
  %v5222 = vpop.permute.xlu0 %5221
  %5225 = vset.pattern.permute.xlu0 0
  %5226 = vperm.xlu0 %5225, %v5135
  %v5227 = vpop.permute.xlu0 %5226
  %5230 = vset.pattern.permute.xlu0 0
  %5231 = vperm.xlu0 %5230, %v5136
  %v5232 = vpop.permute.xlu0 %5231
  %5235 = vset.pattern.permute.xlu0 0
  %5236 = vperm.xlu0 %5235, %v5137
  %v5237 = vpop.permute.xlu0 %5236
  %5240 = vset.pattern.permute.xlu0 0
  %5241 = vperm.xlu0 %5240, %v5138
  %v5242 = vpop.permute.xlu0 %5241
  %5245 = vset.pattern.permute.xlu0 0
  %5246 = vperm.xlu0 %5245, %v5139
  %v5247 = vpop.permute.xlu0 %5246
  %5250 = vset.pattern.permute.xlu0 0
  %5251 = vperm.xlu0 %5250, %v5140
  %v5252 = vpop.permute.xlu0 %5251
  %5255 = vset.pattern.permute.xlu0 0
  %5256 = vperm.xlu0 %5255, %v5141
  %v5257 = vpop.permute.xlu0 %5256
  %5260 = vset.pattern.permute.xlu0 0
  %5261 = vperm.xlu0 %5260, %v5142
  %v5262 = vpop.permute.xlu0 %5261
  %5265 = vset.pattern.permute.xlu0 0
  %5266 = vperm.xlu0 %5265, %v5143
  %v5267 = vpop.permute.xlu0 %5266
  %5270 = vset.pattern.permute.xlu0 0
  %5271 = vperm.xlu0 %5270, %v5144
  %v5272 = vpop.permute.xlu0 %5271
  %5275 = vset.pattern.permute.xlu0 0
  %5276 = vperm.xlu0 %5275, %v5145
  %v5277 = vpop.permute.xlu0 %5276
  %5280 = vset.pattern.permute.xlu0 0
  %5281 = vperm.xlu0 %5280, %v5146
  %v5282 = vpop.permute.xlu0 %5281
  %5285 = vset.pattern.permute.xlu0 0
  %5286 = vperm.xlu0 %5285, %v5147
  %v5287 = vpop.permute.xlu0 %5286
  %5290 = vset.pattern.permute.xlu0 0
  %5291 = vperm.xlu0 %5290, %v5148
  %v5292 = vpop.permute.xlu0 %5291
  %5295 = vset.pattern.permute.xlu0 0
  %5296 = vperm.xlu0 %5295, %v5149
  %v5297 = vpop.permute.xlu0 %5296
  %5300 = vset.pattern.permute.xlu0 0
  %5301 = vperm.xlu0 %5300, %v5150
  %v5302 = vpop.permute.xlu0 %5301
  %5305 = vset.pattern.permute.xlu0 0
  %5306 = vperm.xlu0 %5305, %v5151
  %v5307 = vpop.permute.xlu0 %5306
  %5310 = vset.pattern.permute.xlu0 0
  %5311 = vperm.xlu0 %5310, %v5152
  %v5312 = vpop.permute.xlu0 %5311
  %5315 = vset.pattern.permute.xlu0 0
  %5316 = vperm.xlu0 %5315, %v5153
  %v5317 = vpop.permute.xlu0 %5316
  %5320 = vset.pattern.permute.xlu0 0
  %5321 = vperm.xlu0 %5320, %v5154
  %v5322 = vpop.permute.xlu0 %5321
  %v5324 = vlaneseq
  %v5325 = vshrl.u32 %v5324, 7
  %v5326 = vsub.s32 0, %v5325
  %v5327 = vrot.slane %v5155, %v5326
  %v5328 = vmul.f32 %v5167, %v5327
  %v5329 = vmul.f32 %v5172, %v5327
  %v5330 = vmul.f32 %v5177, %v5327
  %v5331 = vmul.f32 %v5182, %v5327
  %v5332 = vmul.f32 %v5187, %v5327
  %v5333 = vmul.f32 %v5192, %v5327
  %v5334 = vmul.f32 %v5197, %v5327
  %v5335 = vmul.f32 %v5202, %v5327
  %v5336 = vmul.f32 %v5207, %v5327
  %v5337 = vmul.f32 %v5212, %v5327
  %v5338 = vmul.f32 %v5217, %v5327
  %v5339 = vmul.f32 %v5222, %v5327
  %v5340 = vmul.f32 %v5227, %v5327
  %v5341 = vmul.f32 %v5232, %v5327
  %v5342 = vmul.f32 %v5237, %v5327
  %v5343 = vmul.f32 %v5242, %v5327
  %v5344 = vmul.f32 %v5247, %v5327
  %v5345 = vmul.f32 %v5252, %v5327
  %v5346 = vmul.f32 %v5257, %v5327
  %v5347 = vmul.f32 %v5262, %v5327
  %v5348 = vmul.f32 %v5267, %v5327
  %v5349 = vmul.f32 %v5272, %v5327
  %v5350 = vmul.f32 %v5277, %v5327
  %v5351 = vmul.f32 %v5282, %v5327
  %v5352 = vmul.f32 %v5287, %v5327
  %v5353 = vmul.f32 %v5292, %v5327
  %v5354 = vmul.f32 %v5297, %v5327
  %v5355 = vmul.f32 %v5302, %v5327
  %v5356 = vmul.f32 %v5307, %v5327
  %v5357 = vmul.f32 %v5312, %v5327
  %v5358 = vmul.f32 %v5317, %v5327
  %v5359 = vmul.f32 %v5322, %v5327
  %v5360 = vadd.f32 %v5163, %v5328
  %v5361 = vadd.f32 %v5163, %v5329
  %v5362 = vadd.f32 %v5163, %v5330
  %v5363 = vadd.f32 %v5163, %v5331
  %v5364 = vadd.f32 %v5163, %v5332
  %v5365 = vadd.f32 %v5163, %v5333
  %v5366 = vadd.f32 %v5163, %v5334
  %v5367 = vadd.f32 %v5163, %v5335
  %v5368 = vadd.f32 %v5163, %v5336
  %v5369 = vadd.f32 %v5163, %v5337
  %v5370 = vadd.f32 %v5163, %v5338
  %v5371 = vadd.f32 %v5163, %v5339
  %v5372 = vadd.f32 %v5163, %v5340
  %v5373 = vadd.f32 %v5163, %v5341
  %v5374 = vadd.f32 %v5163, %v5342
  %v5375 = vadd.f32 %v5163, %v5343
  %v5376 = vadd.f32 %v5163, %v5344
  %v5377 = vadd.f32 %v5163, %v5345
  %v5378 = vadd.f32 %v5163, %v5346
  %v5379 = vadd.f32 %v5163, %v5347
  %v5380 = vadd.f32 %v5163, %v5348
  %v5381 = vadd.f32 %v5163, %v5349
  %v5382 = vadd.f32 %v5163, %v5350
  %v5383 = vadd.f32 %v5163, %v5351
  %v5384 = vadd.f32 %v5163, %v5352
  %v5385 = vadd.f32 %v5163, %v5353
  %v5386 = vadd.f32 %v5163, %v5354
  %v5387 = vadd.f32 %v5163, %v5355
  %v5388 = vadd.f32 %v5163, %v5356
  %v5389 = vadd.f32 %v5163, %v5357
  %v5390 = vadd.f32 %v5163, %v5358
  %v5391 = vadd.f32 %v5163, %v5359
  %5392 = vset.pattern.permute.xlu0 1
  %5393 = vperm.xlu0 %5392, %v5123
  %v5394 = vpop.permute.xlu0 %5393
  %5396 = vset.pattern.permute.xlu0 1
  %5397 = vperm.xlu0 %5396, %v5124
  %v5398 = vpop.permute.xlu0 %5397
  %5400 = vset.pattern.permute.xlu0 1
  %5401 = vperm.xlu0 %5400, %v5125
  %v5402 = vpop.permute.xlu0 %5401
  %5404 = vset.pattern.permute.xlu0 1
  %5405 = vperm.xlu0 %5404, %v5126
  %v5406 = vpop.permute.xlu0 %5405
  %5408 = vset.pattern.permute.xlu0 1
  %5409 = vperm.xlu0 %5408, %v5127
  %v5410 = vpop.permute.xlu0 %5409
  %5412 = vset.pattern.permute.xlu0 1
  %5413 = vperm.xlu0 %5412, %v5128
  %v5414 = vpop.permute.xlu0 %5413
  %5416 = vset.pattern.permute.xlu0 1
  %5417 = vperm.xlu0 %5416, %v5129
  %v5418 = vpop.permute.xlu0 %5417
  %5420 = vset.pattern.permute.xlu0 1
  %5421 = vperm.xlu0 %5420, %v5130
  %v5422 = vpop.permute.xlu0 %5421
  %5424 = vset.pattern.permute.xlu0 1
  %5425 = vperm.xlu0 %5424, %v5131
  %v5426 = vpop.permute.xlu0 %5425
  %5428 = vset.pattern.permute.xlu0 1
  %5429 = vperm.xlu0 %5428, %v5132
  %v5430 = vpop.permute.xlu0 %5429
  %5432 = vset.pattern.permute.xlu0 1
  %5433 = vperm.xlu0 %5432, %v5133
  %v5434 = vpop.permute.xlu0 %5433
  %5436 = vset.pattern.permute.xlu0 1
  %5437 = vperm.xlu0 %5436, %v5134
  %v5438 = vpop.permute.xlu0 %5437
  %5440 = vset.pattern.permute.xlu0 1
  %5441 = vperm.xlu0 %5440, %v5135
  %v5442 = vpop.permute.xlu0 %5441
  %5444 = vset.pattern.permute.xlu0 1
  %5445 = vperm.xlu0 %5444, %v5136
  %v5446 = vpop.permute.xlu0 %5445
  %5448 = vset.pattern.permute.xlu0 1
  %5449 = vperm.xlu0 %5448, %v5137
  %v5450 = vpop.permute.xlu0 %5449
  %5452 = vset.pattern.permute.xlu0 1
  %5453 = vperm.xlu0 %5452, %v5138
  %v5454 = vpop.permute.xlu0 %5453
  %5456 = vset.pattern.permute.xlu0 1
  %5457 = vperm.xlu0 %5456, %v5139
  %v5458 = vpop.permute.xlu0 %5457
  %5460 = vset.pattern.permute.xlu0 1
  %5461 = vperm.xlu0 %5460, %v5140
  %v5462 = vpop.permute.xlu0 %5461
  %5464 = vset.pattern.permute.xlu0 1
  %5465 = vperm.xlu0 %5464, %v5141
  %v5466 = vpop.permute.xlu0 %5465
  %5468 = vset.pattern.permute.xlu0 1
  %5469 = vperm.xlu0 %5468, %v5142
  %v5470 = vpop.permute.xlu0 %5469
  %5472 = vset.pattern.permute.xlu0 1
  %5473 = vperm.xlu0 %5472, %v5143
  %v5474 = vpop.permute.xlu0 %5473
  %5476 = vset.pattern.permute.xlu0 1
  %5477 = vperm.xlu0 %5476, %v5144
  %v5478 = vpop.permute.xlu0 %5477
  %5480 = vset.pattern.permute.xlu0 1
  %5481 = vperm.xlu0 %5480, %v5145
  %v5482 = vpop.permute.xlu0 %5481
  %5484 = vset.pattern.permute.xlu0 1
  %5485 = vperm.xlu0 %5484, %v5146
  %v5486 = vpop.permute.xlu0 %5485
  %5488 = vset.pattern.permute.xlu0 1
  %5489 = vperm.xlu0 %5488, %v5147
  %v5490 = vpop.permute.xlu0 %5489
  %5492 = vset.pattern.permute.xlu0 1
  %5493 = vperm.xlu0 %5492, %v5148
  %v5494 = vpop.permute.xlu0 %5493
  %5496 = vset.pattern.permute.xlu0 1
  %5497 = vperm.xlu0 %5496, %v5149
  %v5498 = vpop.permute.xlu0 %5497
  %5500 = vset.pattern.permute.xlu0 1
  %5501 = vperm.xlu0 %5500, %v5150
  %v5502 = vpop.permute.xlu0 %5501
  %5504 = vset.pattern.permute.xlu0 1
  %5505 = vperm.xlu0 %5504, %v5151
  %v5506 = vpop.permute.xlu0 %5505
  %5508 = vset.pattern.permute.xlu0 1
  %5509 = vperm.xlu0 %5508, %v5152
  %v5510 = vpop.permute.xlu0 %5509
  %5512 = vset.pattern.permute.xlu0 1
  %5513 = vperm.xlu0 %5512, %v5153
  %v5514 = vpop.permute.xlu0 %5513
  %5516 = vset.pattern.permute.xlu0 1
  %5517 = vperm.xlu0 %5516, %v5154
  %v5518 = vpop.permute.xlu0 %5517
  %v5520 = vlaneseq
  %v5521 = vshrl.u32 %v5520, 7
  %v5522 = vsub.s32 1, %v5521
  %v5523 = vrot.slane %v5155, %v5522
  %v5524 = vmul.f32 %v5394, %v5523
  %v5525 = vmul.f32 %v5398, %v5523
  %v5526 = vmul.f32 %v5402, %v5523
  %v5527 = vmul.f32 %v5406, %v5523
  %v5528 = vmul.f32 %v5410, %v5523
  %v5529 = vmul.f32 %v5414, %v5523
  %v5530 = vmul.f32 %v5418, %v5523
  %v5531 = vmul.f32 %v5422, %v5523
  %v5532 = vmul.f32 %v5426, %v5523
  %v5533 = vmul.f32 %v5430, %v5523
  %v5534 = vmul.f32 %v5434, %v5523
  %v5535 = vmul.f32 %v5438, %v5523
  %v5536 = vmul.f32 %v5442, %v5523
  %v5537 = vmul.f32 %v5446, %v5523
  %v5538 = vmul.f32 %v5450, %v5523
  %v5539 = vmul.f32 %v5454, %v5523
  %v5540 = vmul.f32 %v5458, %v5523
  %v5541 = vmul.f32 %v5462, %v5523
  %v5542 = vmul.f32 %v5466, %v5523
  %v5543 = vmul.f32 %v5470, %v5523
  %v5544 = vmul.f32 %v5474, %v5523
  %v5545 = vmul.f32 %v5478, %v5523
  %v5546 = vmul.f32 %v5482, %v5523
  %v5547 = vmul.f32 %v5486, %v5523
  %v5548 = vmul.f32 %v5490, %v5523
  %v5549 = vmul.f32 %v5494, %v5523
  %v5550 = vmul.f32 %v5498, %v5523
  %v5551 = vmul.f32 %v5502, %v5523
  %v5552 = vmul.f32 %v5506, %v5523
  %v5553 = vmul.f32 %v5510, %v5523
  %v5554 = vmul.f32 %v5514, %v5523
  %v5555 = vmul.f32 %v5518, %v5523
  %v5556 = vadd.f32 %v5360, %v5524
  %v5557 = vadd.f32 %v5361, %v5525
  %v5558 = vadd.f32 %v5362, %v5526
  %v5559 = vadd.f32 %v5363, %v5527
  %v5560 = vadd.f32 %v5364, %v5528
  %v5561 = vadd.f32 %v5365, %v5529
  %v5562 = vadd.f32 %v5366, %v5530
  %v5563 = vadd.f32 %v5367, %v5531
  %v5564 = vadd.f32 %v5368, %v5532
  %v5565 = vadd.f32 %v5369, %v5533
  %v5566 = vadd.f32 %v5370, %v5534
  %v5567 = vadd.f32 %v5371, %v5535
  %v5568 = vadd.f32 %v5372, %v5536
  %v5569 = vadd.f32 %v5373, %v5537
  %v5570 = vadd.f32 %v5374, %v5538
  %v5571 = vadd.f32 %v5375, %v5539
  %v5572 = vadd.f32 %v5376, %v5540
  %v5573 = vadd.f32 %v5377, %v5541
  %v5574 = vadd.f32 %v5378, %v5542
  %v5575 = vadd.f32 %v5379, %v5543
  %v5576 = vadd.f32 %v5380, %v5544
  %v5577 = vadd.f32 %v5381, %v5545
  %v5578 = vadd.f32 %v5382, %v5546
  %v5579 = vadd.f32 %v5383, %v5547
  %v5580 = vadd.f32 %v5384, %v5548
  %v5581 = vadd.f32 %v5385, %v5549
  %v5582 = vadd.f32 %v5386, %v5550
  %v5583 = vadd.f32 %v5387, %v5551
  %v5584 = vadd.f32 %v5388, %v5552
  %v5585 = vadd.f32 %v5389, %v5553
  %v5586 = vadd.f32 %v5390, %v5554
  %v5587 = vadd.f32 %v5391, %v5555
  %5588 = vset.pattern.permute.xlu0 2
  %5589 = vperm.xlu0 %5588, %v5123
  %v5590 = vpop.permute.xlu0 %5589
  %5592 = vset.pattern.permute.xlu0 2
  %5593 = vperm.xlu0 %5592, %v5124
  %v5594 = vpop.permute.xlu0 %5593
  %5596 = vset.pattern.permute.xlu0 2
  %5597 = vperm.xlu0 %5596, %v5125
  %v5598 = vpop.permute.xlu0 %5597
  %5600 = vset.pattern.permute.xlu0 2
  %5601 = vperm.xlu0 %5600, %v5126
  %v5602 = vpop.permute.xlu0 %5601
  %5604 = vset.pattern.permute.xlu0 2
  %5605 = vperm.xlu0 %5604, %v5127
  %v5606 = vpop.permute.xlu0 %5605
  %5608 = vset.pattern.permute.xlu0 2
  %5609 = vperm.xlu0 %5608, %v5128
  %v5610 = vpop.permute.xlu0 %5609
  %5612 = vset.pattern.permute.xlu0 2
  %5613 = vperm.xlu0 %5612, %v5129
  %v5614 = vpop.permute.xlu0 %5613
  %5616 = vset.pattern.permute.xlu0 2
  %5617 = vperm.xlu0 %5616, %v5130
  %v5618 = vpop.permute.xlu0 %5617
  %5620 = vset.pattern.permute.xlu0 2
  %5621 = vperm.xlu0 %5620, %v5131
  %v5622 = vpop.permute.xlu0 %5621
  %5624 = vset.pattern.permute.xlu0 2
  %5625 = vperm.xlu0 %5624, %v5132
  %v5626 = vpop.permute.xlu0 %5625
  %5628 = vset.pattern.permute.xlu0 2
  %5629 = vperm.xlu0 %5628, %v5133
  %v5630 = vpop.permute.xlu0 %5629
  %5632 = vset.pattern.permute.xlu0 2
  %5633 = vperm.xlu0 %5632, %v5134
  %v5634 = vpop.permute.xlu0 %5633
  %5636 = vset.pattern.permute.xlu0 2
  %5637 = vperm.xlu0 %5636, %v5135
  %v5638 = vpop.permute.xlu0 %5637
  %5640 = vset.pattern.permute.xlu0 2
  %5641 = vperm.xlu0 %5640, %v5136
  %v5642 = vpop.permute.xlu0 %5641
  %5644 = vset.pattern.permute.xlu0 2
  %5645 = vperm.xlu0 %5644, %v5137
  %v5646 = vpop.permute.xlu0 %5645
  %5648 = vset.pattern.permute.xlu0 2
  %5649 = vperm.xlu0 %5648, %v5138
  %v5650 = vpop.permute.xlu0 %5649
  %5652 = vset.pattern.permute.xlu0 2
  %5653 = vperm.xlu0 %5652, %v5139
  %v5654 = vpop.permute.xlu0 %5653
  %5656 = vset.pattern.permute.xlu0 2
  %5657 = vperm.xlu0 %5656, %v5140
  %v5658 = vpop.permute.xlu0 %5657
  %5660 = vset.pattern.permute.xlu0 2
  %5661 = vperm.xlu0 %5660, %v5141
  %v5662 = vpop.permute.xlu0 %5661
  %5664 = vset.pattern.permute.xlu0 2
  %5665 = vperm.xlu0 %5664, %v5142
  %v5666 = vpop.permute.xlu0 %5665
  %5668 = vset.pattern.permute.xlu0 2
  %5669 = vperm.xlu0 %5668, %v5143
  %v5670 = vpop.permute.xlu0 %5669
  %5672 = vset.pattern.permute.xlu0 2
  %5673 = vperm.xlu0 %5672, %v5144
  %v5674 = vpop.permute.xlu0 %5673
  %5676 = vset.pattern.permute.xlu0 2
  %5677 = vperm.xlu0 %5676, %v5145
  %v5678 = vpop.permute.xlu0 %5677
  %5680 = vset.pattern.permute.xlu0 2
  %5681 = vperm.xlu0 %5680, %v5146
  %v5682 = vpop.permute.xlu0 %5681
  %5684 = vset.pattern.permute.xlu0 2
  %5685 = vperm.xlu0 %5684, %v5147
  %v5686 = vpop.permute.xlu0 %5685
  %5688 = vset.pattern.permute.xlu0 2
  %5689 = vperm.xlu0 %5688, %v5148
  %v5690 = vpop.permute.xlu0 %5689
  %5692 = vset.pattern.permute.xlu0 2
  %5693 = vperm.xlu0 %5692, %v5149
  %v5694 = vpop.permute.xlu0 %5693
  %5696 = vset.pattern.permute.xlu0 2
  %5697 = vperm.xlu0 %5696, %v5150
  %v5698 = vpop.permute.xlu0 %5697
  %5700 = vset.pattern.permute.xlu0 2
  %5701 = vperm.xlu0 %5700, %v5151
  %v5702 = vpop.permute.xlu0 %5701
  %5704 = vset.pattern.permute.xlu0 2
  %5705 = vperm.xlu0 %5704, %v5152
  %v5706 = vpop.permute.xlu0 %5705
  %5708 = vset.pattern.permute.xlu0 2
  %5709 = vperm.xlu0 %5708, %v5153
  %v5710 = vpop.permute.xlu0 %5709
  %5712 = vset.pattern.permute.xlu0 2
  %5713 = vperm.xlu0 %5712, %v5154
  %v5714 = vpop.permute.xlu0 %5713
  %v5716 = vlaneseq
  %v5717 = vshrl.u32 %v5716, 7
  %v5718 = vsub.s32 2, %v5717
  %v5719 = vrot.slane %v5155, %v5718
  %v5720 = vmul.f32 %v5590, %v5719
  %v5721 = vmul.f32 %v5594, %v5719
  %v5722 = vmul.f32 %v5598, %v5719
  %v5723 = vmul.f32 %v5602, %v5719
  %v5724 = vmul.f32 %v5606, %v5719
  %v5725 = vmul.f32 %v5610, %v5719
  %v5726 = vmul.f32 %v5614, %v5719
  %v5727 = vmul.f32 %v5618, %v5719
  %v5728 = vmul.f32 %v5622, %v5719
  %v5729 = vmul.f32 %v5626, %v5719
  %v5730 = vmul.f32 %v5630, %v5719
  %v5731 = vmul.f32 %v5634, %v5719
  %v5732 = vmul.f32 %v5638, %v5719
  %v5733 = vmul.f32 %v5642, %v5719
  %v5734 = vmul.f32 %v5646, %v5719
  %v5735 = vmul.f32 %v5650, %v5719
  %v5736 = vmul.f32 %v5654, %v5719
  %v5737 = vmul.f32 %v5658, %v5719
  %v5738 = vmul.f32 %v5662, %v5719
  %v5739 = vmul.f32 %v5666, %v5719
  %v5740 = vmul.f32 %v5670, %v5719
  %v5741 = vmul.f32 %v5674, %v5719
  %v5742 = vmul.f32 %v5678, %v5719
  %v5743 = vmul.f32 %v5682, %v5719
  %v5744 = vmul.f32 %v5686, %v5719
  %v5745 = vmul.f32 %v5690, %v5719
  %v5746 = vmul.f32 %v5694, %v5719
  %v5747 = vmul.f32 %v5698, %v5719
  %v5748 = vmul.f32 %v5702, %v5719
  %v5749 = vmul.f32 %v5706, %v5719
  %v5750 = vmul.f32 %v5710, %v5719
  %v5751 = vmul.f32 %v5714, %v5719
  %v5752 = vadd.f32 %v5556, %v5720
  %v5753 = vadd.f32 %v5557, %v5721
  %v5754 = vadd.f32 %v5558, %v5722
  %v5755 = vadd.f32 %v5559, %v5723
  %v5756 = vadd.f32 %v5560, %v5724
  %v5757 = vadd.f32 %v5561, %v5725
  %v5758 = vadd.f32 %v5562, %v5726
  %v5759 = vadd.f32 %v5563, %v5727
  %v5760 = vadd.f32 %v5564, %v5728
  %v5761 = vadd.f32 %v5565, %v5729
  %v5762 = vadd.f32 %v5566, %v5730
  %v5763 = vadd.f32 %v5567, %v5731
  %v5764 = vadd.f32 %v5568, %v5732
  %v5765 = vadd.f32 %v5569, %v5733
  %v5766 = vadd.f32 %v5570, %v5734
  %v5767 = vadd.f32 %v5571, %v5735
  %v5768 = vadd.f32 %v5572, %v5736
  %v5769 = vadd.f32 %v5573, %v5737
  %v5770 = vadd.f32 %v5574, %v5738
  %v5771 = vadd.f32 %v5575, %v5739
  %v5772 = vadd.f32 %v5576, %v5740
  %v5773 = vadd.f32 %v5577, %v5741
  %v5774 = vadd.f32 %v5578, %v5742
  %v5775 = vadd.f32 %v5579, %v5743
  %v5776 = vadd.f32 %v5580, %v5744
  %v5777 = vadd.f32 %v5581, %v5745
  %v5778 = vadd.f32 %v5582, %v5746
  %v5779 = vadd.f32 %v5583, %v5747
  %v5780 = vadd.f32 %v5584, %v5748
  %v5781 = vadd.f32 %v5585, %v5749
  %v5782 = vadd.f32 %v5586, %v5750
  %v5783 = vadd.f32 %v5587, %v5751
  %v5784 = vmax.f32 %v5752, 0.0
  %v5785 = vmax.f32 %v5753, 0.0
  %v5786 = vmax.f32 %v5754, 0.0
  %v5787 = vmax.f32 %v5755, 0.0
  %v5788 = vmax.f32 %v5756, 0.0
  %v5789 = vmax.f32 %v5757, 0.0
  %v5790 = vmax.f32 %v5758, 0.0
  %v5791 = vmax.f32 %v5759, 0.0
  %v5792 = vmax.f32 %v5760, 0.0
  %v5793 = vmax.f32 %v5761, 0.0
  %v5794 = vmax.f32 %v5762, 0.0
  %v5795 = vmax.f32 %v5763, 0.0
  %v5796 = vmax.f32 %v5764, 0.0
  %v5797 = vmax.f32 %v5765, 0.0
  %v5798 = vmax.f32 %v5766, 0.0
  %v5799 = vmax.f32 %v5767, 0.0
  %v5800 = vmax.f32 %v5768, 0.0
  %v5801 = vmax.f32 %v5769, 0.0
  %v5802 = vmax.f32 %v5770, 0.0
  %v5803 = vmax.f32 %v5771, 0.0
  %v5804 = vmax.f32 %v5772, 0.0
  %v5805 = vmax.f32 %v5773, 0.0
  %v5806 = vmax.f32 %v5774, 0.0
  %v5807 = vmax.f32 %v5775, 0.0
  %v5808 = vmax.f32 %v5776, 0.0
  %v5809 = vmax.f32 %v5777, 0.0
  %v5810 = vmax.f32 %v5778, 0.0
  %v5811 = vmax.f32 %v5779, 0.0
  %v5812 = vmax.f32 %v5780, 0.0
  %v5813 = vmax.f32 %v5781, 0.0
  %v5814 = vmax.f32 %v5782, 0.0
  %v5815 = vmax.f32 %v5783, 0.0
  %v5816 = vpack.c.bf16 %v5785, %v5784
  %v5817 = vpack.c.bf16 %v5787, %v5786
  %v5818 = vpack.c.bf16 %v5789, %v5788
  %v5819 = vpack.c.bf16 %v5791, %v5790
  %v5820 = vpack.c.bf16 %v5793, %v5792
  %v5821 = vpack.c.bf16 %v5795, %v5794
  %v5822 = vpack.c.bf16 %v5797, %v5796
  %v5823 = vpack.c.bf16 %v5799, %v5798
  %v5824 = vpack.c.bf16 %v5801, %v5800
  %v5825 = vpack.c.bf16 %v5803, %v5802
  %v5826 = vpack.c.bf16 %v5805, %v5804
  %v5827 = vpack.c.bf16 %v5807, %v5806
  %v5828 = vpack.c.bf16 %v5809, %v5808
  %v5829 = vpack.c.bf16 %v5811, %v5810
  %v5830 = vpack.c.bf16 %v5813, %v5812
  %v5831 = vpack.c.bf16 %v5815, %v5814
  %v5832 = vld [vmem:[%s12] sm:$0xf]
  %v5833 = vld [vmem:[%s12 + $0x4] sm:$0xf]
  %v5834 = vld [vmem:[%s12 + $0x8] sm:$0xf]
  %v5835 = vld [vmem:[%s12 + $0xc] sm:$0xf]
  %v5840 = vunpack.c.l.b16 %v5832
  %v5841 = vunpack.c.l.b16 %v5833
  %v5842 = vunpack.c.l.b16 %v5834
  %v5843 = vunpack.c.l.b16 %v5835
  %v5844 = vpack.c.b16 %v5841, %v5840
  %v5845 = vpack.c.b16 %v5843, %v5842
  %v5849 = vsel %vm117, %v5816, 0
  %v5852 = vsel %vm117, %v5817, 0
  %v5855 = vsel %vm117, %v5818, 0
  %v5858 = vsel %vm117, %v5819, 0
  %v5861 = vsel %vm117, %v5820, 0
  %v5864 = vsel %vm117, %v5821, 0
  %v5867 = vsel %vm117, %v5822, 0
  %v5870 = vsel %vm117, %v5823, 0
  %v5873 = vsel %vm117, %v5824, 0
  %v5876 = vsel %vm117, %v5825, 0
  %v5879 = vsel %vm117, %v5826, 0
  %v5882 = vsel %vm117, %v5827, 0
  %v5885 = vsel %vm117, %v5828, 0
  %v5888 = vsel %vm117, %v5829, 0
  %v5891 = vsel %vm117, %v5830, 0
  %v5894 = vsel %vm117, %v5831, 0
  %5896 = vmatprep.subr.bf16.mxu0 0
  %5897 = vmatpush1.bf16.msra.mxu0 %v5844
  %5898 = vmatprep.subr.bf16.mxu0 0
  %5899 = vmatpush1.bf16.msra.mxu0 %v5845
  %5900 = vmatprep.subr.bf16.mxu0 0
  %5901 = vmatpush1.bf16.msra.mxu0 0
  %5902 = vmatprep.subr.bf16.mxu0 0
  %5903 = vmatpush1.bf16.msra.mxu0 0
  %5904 = vmatprep.subr.bf16.mxu0 0
  %5905 = vmatpush1.bf16.msra.mxu0 0
  %5906 = vmatprep.subr.bf16.mxu0 0
  %5907 = vmatpush1.bf16.msra.mxu0 0
  %5908 = vmatprep.subr.bf16.mxu0 0
  %5909 = vmatpush1.bf16.msra.mxu0 0
  %5910 = vmatprep.subr.bf16.mxu0 0
  %5911 = vmatpush1.bf16.msra.mxu0 0
  %5912 = vmatprep.subr.bf16.mxu0 0
  %5913 = vmatpush1.bf16.msra.mxu0 0
  %5914 = vmatprep.subr.bf16.mxu0 0
  %5915 = vmatpush1.bf16.msra.mxu0 0
  %5916 = vmatprep.subr.bf16.mxu0 0
  %5917 = vmatpush1.bf16.msra.mxu0 0
  %5918 = vmatprep.subr.bf16.mxu0 0
  %5919 = vmatpush1.bf16.msra.mxu0 0
  %5920 = vmatprep.subr.bf16.mxu0 0
  %5921 = vmatpush1.bf16.msra.mxu0 0
  %5922 = vmatprep.subr.bf16.mxu0 0
  %5923 = vmatpush1.bf16.msra.mxu0 0
  %5924 = vmatprep.subr.bf16.mxu0 0
  %5925 = vmatpush1.bf16.msra.mxu0 0
  %5926 = vmatprep.subr.bf16.mxu0 0
  %5927 = vmatpush1.bf16.msra.mxu0 0
  %5928 = vmatprep.mubr.bf16.mxu0 0
  %5929 = vmatmul.mubr.bf16.gmra.mrb[0].mxu0 %v5849
  %v5930 = vpop.f32.mrb[0].mxu0
  %v5931 = vadd.f32 0.0, %v5930
  %v5932 = vpop.f32.mrb[0].mxu0
  %v5933 = vpop.f32.mrb[0].mxu0
  %v5934 = vadd.f32 0.0, %v5933
  %v5935 = vpop.f32.mrb[0].mxu0
  %5936 = vmatprep.mubr.bf16.mxu0 0
  %5937 = vmatmul.mubr.bf16.gmra.mrb[0].mxu0 %v5852
  %v5938 = vpop.f32.mrb[0].mxu0
  %v5939 = vadd.f32 0.0, %v5938
  %v5940 = vpop.f32.mrb[0].mxu0
  %v5941 = vpop.f32.mrb[0].mxu0
  %v5942 = vadd.f32 0.0, %v5941
  %v5943 = vpop.f32.mrb[0].mxu0
  %5944 = vmatprep.mubr.bf16.mxu0 0
  %5945 = vmatmul.mubr.bf16.gmra.mrb[0].mxu0 %v5855
  %v5946 = vpop.f32.mrb[0].mxu0
  %v5947 = vadd.f32 0.0, %v5946
  %v5948 = vpop.f32.mrb[0].mxu0
  %v5949 = vpop.f32.mrb[0].mxu0
  %v5950 = vadd.f32 0.0, %v5949
  %v5951 = vpop.f32.mrb[0].mxu0
  %5952 = vmatprep.mubr.bf16.mxu0 0
  %5953 = vmatmul.mubr.bf16.gmra.mrb[0].mxu0 %v5858
  %v5954 = vpop.f32.mrb[0].mxu0
  %v5955 = vadd.f32 0.0, %v5954
  %v5956 = vpop.f32.mrb[0].mxu0
  %v5957 = vpop.f32.mrb[0].mxu0
  %v5958 = vadd.f32 0.0, %v5957
  %v5959 = vpop.f32.mrb[0].mxu0
  %5960 = vmatprep.mubr.bf16.mxu0 0
  %5961 = vmatmul.mubr.bf16.gmra.mrb[0].mxu0 %v5861
  %v5962 = vpop.f32.mrb[0].mxu0
  %v5963 = vadd.f32 0.0, %v5962
  %v5964 = vpop.f32.mrb[0].mxu0
  %v5965 = vpop.f32.mrb[0].mxu0
  %v5966 = vadd.f32 0.0, %v5965
  %v5967 = vpop.f32.mrb[0].mxu0
  %5968 = vmatprep.mubr.bf16.mxu0 0
  %5969 = vmatmul.mubr.bf16.gmra.mrb[0].mxu0 %v5864
  %v5970 = vpop.f32.mrb[0].mxu0
  %v5971 = vadd.f32 0.0, %v5970
  %v5972 = vpop.f32.mrb[0].mxu0
  %v5973 = vpop.f32.mrb[0].mxu0
  %v5974 = vadd.f32 0.0, %v5973
  %v5975 = vpop.f32.mrb[0].mxu0
  %5976 = vmatprep.mubr.bf16.mxu0 0
  %5977 = vmatmul.mubr.bf16.gmra.mrb[0].mxu0 %v5867
  %v5978 = vpop.f32.mrb[0].mxu0
  %v5979 = vadd.f32 0.0, %v5978
  %v5980 = vpop.f32.mrb[0].mxu0
  %v5981 = vpop.f32.mrb[0].mxu0
  %v5982 = vadd.f32 0.0, %v5981
  %v5983 = vpop.f32.mrb[0].mxu0
  %5984 = vmatprep.mubr.bf16.mxu0 0
  %5985 = vmatmul.mubr.bf16.gmra.mrb[0].mxu0 %v5870
  %v5986 = vpop.f32.mrb[0].mxu0
  %v5987 = vadd.f32 0.0, %v5986
  %v5988 = vpop.f32.mrb[0].mxu0
  %v5989 = vpop.f32.mrb[0].mxu0
  %v5990 = vadd.f32 0.0, %v5989
  %v5991 = vpop.f32.mrb[0].mxu0
  %5992 = vmatprep.mubr.bf16.mxu0 0
  %5993 = vmatmul.mubr.bf16.gmra.mrb[0].mxu0 %v5873
  %v5994 = vpop.f32.mrb[0].mxu0
  %v5995 = vadd.f32 0.0, %v5994
  %v5996 = vpop.f32.mrb[0].mxu0
  %v5997 = vpop.f32.mrb[0].mxu0
  %v5998 = vadd.f32 0.0, %v5997
  %v5999 = vpop.f32.mrb[0].mxu0
  %6000 = vmatprep.mubr.bf16.mxu0 0
  %6001 = vmatmul.mubr.bf16.gmra.mrb[0].mxu0 %v5876
  %v6002 = vpop.f32.mrb[0].mxu0
  %v6003 = vadd.f32 0.0, %v6002
  %v6004 = vpop.f32.mrb[0].mxu0
  %v6005 = vpop.f32.mrb[0].mxu0
  %v6006 = vadd.f32 0.0, %v6005
  %v6007 = vpop.f32.mrb[0].mxu0
  %6008 = vmatprep.mubr.bf16.mxu0 0
  %6009 = vmatmul.mubr.bf16.gmra.mrb[0].mxu0 %v5879
  %v6010 = vpop.f32.mrb[0].mxu0
  %v6011 = vadd.f32 0.0, %v6010
  %v6012 = vpop.f32.mrb[0].mxu0
  %v6013 = vpop.f32.mrb[0].mxu0
  %v6014 = vadd.f32 0.0, %v6013
  %v6015 = vpop.f32.mrb[0].mxu0
  %6016 = vmatprep.mubr.bf16.mxu0 0
  %6017 = vmatmul.mubr.bf16.gmra.mrb[0].mxu0 %v5882
  %v6018 = vpop.f32.mrb[0].mxu0
  %v6019 = vadd.f32 0.0, %v6018
  %v6020 = vpop.f32.mrb[0].mxu0
  %v6021 = vpop.f32.mrb[0].mxu0
  %v6022 = vadd.f32 0.0, %v6021
  %v6023 = vpop.f32.mrb[0].mxu0
  %6024 = vmatprep.mubr.bf16.mxu0 0
  %6025 = vmatmul.mubr.bf16.gmra.mrb[0].mxu0 %v5885
  %v6026 = vpop.f32.mrb[0].mxu0
  %v6027 = vadd.f32 0.0, %v6026
  %v6028 = vpop.f32.mrb[0].mxu0
  %v6029 = vpop.f32.mrb[0].mxu0
  %v6030 = vadd.f32 0.0, %v6029
  %v6031 = vpop.f32.mrb[0].mxu0
  %6032 = vmatprep.mubr.bf16.mxu0 0
  %6033 = vmatmul.mubr.bf16.gmra.mrb[0].mxu0 %v5888
  %v6034 = vpop.f32.mrb[0].mxu0
  %v6035 = vadd.f32 0.0, %v6034
  %v6036 = vpop.f32.mrb[0].mxu0
  %v6037 = vpop.f32.mrb[0].mxu0
  %v6038 = vadd.f32 0.0, %v6037
  %v6039 = vpop.f32.mrb[0].mxu0
  %6040 = vmatprep.mubr.bf16.mxu0 0
  %6041 = vmatmul.mubr.bf16.gmra.mrb[0].mxu0 %v5891
  %v6042 = vpop.f32.mrb[0].mxu0
  %v6043 = vadd.f32 0.0, %v6042
  %v6044 = vpop.f32.mrb[0].mxu0
  %v6045 = vpop.f32.mrb[0].mxu0
  %v6046 = vadd.f32 0.0, %v6045
  %v6047 = vpop.f32.mrb[0].mxu0
  %6048 = vmatprep.mubr.bf16.mxu0 0
  %6049 = vmatmul.mubr.bf16.gmra.mrb[0].mxu0 %v5894
  %v6050 = vpop.f32.mrb[0].mxu0
  %v6051 = vadd.f32 0.0, %v6050
  %v6052 = vpop.f32.mrb[0].mxu0
  %v6053 = vpop.f32.mrb[0].mxu0
  %v6054 = vadd.f32 0.0, %v6053
  %v6055 = vpop.f32.mrb[0].mxu0
  %6056 = vdwg.mxu0
  %v6057 = vld [vmem:[%s13] sm:$0x1]
  %v6059 = vlaneseq
  %v6060 = vshrl.u32 %v6059, 7
  %v6061 = vsub.s32 0, %v6060
  %v6062 = vrot.slane %v6057, %v6061
  %v6064 = vadd.f32 %v5931, %v6062
  %v6065 = vadd.f32 %v5934, %v6062
  %v6066 = vadd.f32 %v5939, %v6062
  %v6067 = vadd.f32 %v5942, %v6062
  %v6068 = vadd.f32 %v5947, %v6062
  %v6069 = vadd.f32 %v5950, %v6062
  %v6070 = vadd.f32 %v5955, %v6062
  %v6071 = vadd.f32 %v5958, %v6062
  %v6072 = vadd.f32 %v5963, %v6062
  %v6073 = vadd.f32 %v5966, %v6062
  %v6074 = vadd.f32 %v5971, %v6062
  %v6075 = vadd.f32 %v5974, %v6062
  %v6076 = vadd.f32 %v5979, %v6062
  %v6077 = vadd.f32 %v5982, %v6062
  %v6078 = vadd.f32 %v5987, %v6062
  %v6079 = vadd.f32 %v5990, %v6062
  %v6080 = vadd.f32 %v5995, %v6062
  %v6081 = vadd.f32 %v5998, %v6062
  %v6082 = vadd.f32 %v6003, %v6062
  %v6083 = vadd.f32 %v6006, %v6062
  %v6084 = vadd.f32 %v6011, %v6062
  %v6085 = vadd.f32 %v6014, %v6062
  %v6086 = vadd.f32 %v6019, %v6062
  %v6087 = vadd.f32 %v6022, %v6062
  %v6088 = vadd.f32 %v6027, %v6062
  %v6089 = vadd.f32 %v6030, %v6062
  %v6090 = vadd.f32 %v6035, %v6062
  %v6091 = vadd.f32 %v6038, %v6062
  %v6092 = vadd.f32 %v6043, %v6062
  %v6093 = vadd.f32 %v6046, %v6062
  %v6094 = vadd.f32 %v6051, %v6062
  %v6095 = vadd.f32 %v6054, %v6062
  %v6128 = vrot.slane %v6064, 2
  %v6129 = vrot.slane %v6065, 2
  %v6130 = vsel %vm737, %v6128, %v6129
  %v6131 = vrot.slane %v6066, 2
  %v6132 = vsel %vm737, %v6129, %v6131
  %v6133 = vrot.slane %v6067, 2
  %v6134 = vsel %vm737, %v6131, %v6133
  %v6135 = vrot.slane %v6068, 2
  %v6136 = vsel %vm737, %v6133, %v6135
  %v6137 = vrot.slane %v6069, 2
  %v6138 = vsel %vm737, %v6135, %v6137
  %v6139 = vrot.slane %v6070, 2
  %v6140 = vsel %vm737, %v6137, %v6139
  %v6141 = vrot.slane %v6071, 2
  %v6142 = vsel %vm737, %v6139, %v6141
  %v6143 = vrot.slane %v6072, 2
  %v6144 = vsel %vm737, %v6141, %v6143
  %v6145 = vrot.slane %v6073, 2
  %v6146 = vsel %vm737, %v6143, %v6145
  %v6147 = vrot.slane %v6074, 2
  %v6148 = vsel %vm737, %v6145, %v6147
  %v6149 = vrot.slane %v6075, 2
  %v6150 = vsel %vm737, %v6147, %v6149
  %v6151 = vrot.slane %v6076, 2
  %v6152 = vsel %vm737, %v6149, %v6151
  %v6153 = vrot.slane %v6077, 2
  %v6154 = vsel %vm737, %v6151, %v6153
  %v6155 = vrot.slane %v6078, 2
  %v6156 = vsel %vm737, %v6153, %v6155
  %v6157 = vrot.slane %v6079, 2
  %v6158 = vsel %vm737, %v6155, %v6157
  %v6159 = vrot.slane %v6080, 2
  %v6160 = vrot.slane %v6081, 2
  %v6161 = vsel %vm737, %v6159, %v6160
  %v6162 = vrot.slane %v6082, 2
  %v6163 = vsel %vm737, %v6160, %v6162
  %v6164 = vrot.slane %v6083, 2
  %v6165 = vsel %vm737, %v6162, %v6164
  %v6166 = vrot.slane %v6084, 2
  %v6167 = vsel %vm737, %v6164, %v6166
  %v6168 = vrot.slane %v6085, 2
  %v6169 = vsel %vm737, %v6166, %v6168
  %v6170 = vrot.slane %v6086, 2
  %v6171 = vsel %vm737, %v6168, %v6170
  %v6172 = vrot.slane %v6087, 2
  %v6173 = vsel %vm737, %v6170, %v6172
  %v6174 = vrot.slane %v6088, 2
  %v6175 = vsel %vm737, %v6172, %v6174
  %v6176 = vrot.slane %v6089, 2
  %v6177 = vsel %vm737, %v6174, %v6176
  %v6178 = vrot.slane %v6090, 2
  %v6179 = vsel %vm737, %v6176, %v6178
  %v6180 = vrot.slane %v6091, 2
  %v6181 = vsel %vm737, %v6178, %v6180
  %v6182 = vrot.slane %v6092, 2
  %v6183 = vsel %vm737, %v6180, %v6182
  %v6184 = vrot.slane %v6093, 2
  %v6185 = vsel %vm737, %v6182, %v6184
  %v6186 = vrot.slane %v6094, 2
  %v6187 = vsel %vm737, %v6184, %v6186
  %v6188 = vrot.slane %v6095, 2
  %v6189 = vsel %vm737, %v6186, %v6188
  %v6224 = vadd.f32 %v5089, %v6128
  %v6225 = vadd.f32 %v5090, %v6130
  %v6226 = vadd.f32 %v5091, %v6132
  %v6227 = vadd.f32 %v5092, %v6134
  %v6228 = vadd.f32 %v5093, %v6136
  %v6229 = vadd.f32 %v5094, %v6138
  %v6230 = vadd.f32 %v5095, %v6140
  %v6231 = vadd.f32 %v5096, %v6142
  %v6232 = vadd.f32 %v5097, %v6144
  %v6233 = vadd.f32 %v5098, %v6146
  %v6234 = vadd.f32 %v5099, %v6148
  %v6235 = vadd.f32 %v5100, %v6150
  %v6236 = vadd.f32 %v5101, %v6152
  %v6237 = vadd.f32 %v5102, %v6154
  %v6238 = vadd.f32 %v5103, %v6156
  %v6239 = vadd.f32 %v5104, %v6158
  %v6240 = vadd.f32 %v5105, %v6157
  %v6241 = vadd.f32 %v5106, %v6159
  %v6242 = vadd.f32 %v5107, %v6161
  %v6243 = vadd.f32 %v5108, %v6163
  %v6244 = vadd.f32 %v5109, %v6165
  %v6245 = vadd.f32 %v5110, %v6167
  %v6246 = vadd.f32 %v5111, %v6169
  %v6247 = vadd.f32 %v5112, %v6171
  %v6248 = vadd.f32 %v5113, %v6173
  %v6249 = vadd.f32 %v5114, %v6175
  %v6250 = vadd.f32 %v5115, %v6177
  %v6251 = vadd.f32 %v5116, %v6179
  %v6252 = vadd.f32 %v5117, %v6181
  %v6253 = vadd.f32 %v5118, %v6183
  %v6254 = vadd.f32 %v5119, %v6185
  %v6255 = vadd.f32 %v5120, %v6187
  %v6256 = vadd.f32 %v5121, %v6189
  %v6257 = vadd.f32 %v5122, %v6188
  %6258 = vst.msk [vmem:[%s14 - $0x6] sm:$0xc0] %vm1344, %v6224
  %6259 = vst.msk [vmem:[%s14 + $0x2] sm:$0xff] %vm117, %v6225
  %6260 = vst.msk [vmem:[%s14 + $0xa] sm:$0xff] %vm117, %v6226
  %6261 = vst.msk [vmem:[%s14 + $0x12] sm:$0xff] %vm117, %v6227
  %6262 = vst.msk [vmem:[%s14 + $0x1a] sm:$0xff] %vm117, %v6228
  %6263 = vst.msk [vmem:[%s14 + $0x22] sm:$0xff] %vm117, %v6229
  %6264 = vst.msk [vmem:[%s14 + $0x2a] sm:$0xff] %vm117, %v6230
  %6265 = vst.msk [vmem:[%s14 + $0x32] sm:$0xff] %vm117, %v6231
  %6266 = vst.msk [vmem:[%s14 + $0x3a] sm:$0xff] %vm117, %v6232
  %6267 = vst.msk [vmem:[%s14 + $0x42] sm:$0xff] %vm117, %v6233
  %6268 = vst.msk [vmem:[%s14 + $0x4a] sm:$0xff] %vm117, %v6234
  %6269 = vst.msk [vmem:[%s14 + $0x52] sm:$0xff] %vm117, %v6235
  %6270 = vst.msk [vmem:[%s14 + $0x5a] sm:$0xff] %vm117, %v6236
  %6271 = vst.msk [vmem:[%s14 + $0x62] sm:$0xff] %vm117, %v6237
  %6272 = vst.msk [vmem:[%s14 + $0x6a] sm:$0xff] %vm117, %v6238
  %6273 = vst.msk [vmem:[%s14 + $0x72] sm:$0xff] %vm117, %v6239
  %6274 = vst.msk [vmem:[%s14 + $0x7a] sm:$0x3f] %vm1361, %v6240
  %6275 = vst.msk [vmem:[%s14 + $0x7a] sm:$0xc0] %vm1344, %v6241
  %6276 = vst.msk [vmem:[%s14 + $0x82] sm:$0xff] %vm117, %v6242
  %6277 = vst.msk [vmem:[%s14 + $0x8a] sm:$0xff] %vm117, %v6243
  %6278 = vst.msk [vmem:[%s14 + $0x92] sm:$0xff] %vm117, %v6244
  %6279 = vst.msk [vmem:[%s14 + $0x9a] sm:$0xff] %vm117, %v6245
  %6280 = vst.msk [vmem:[%s14 + $0xa2] sm:$0xff] %vm117, %v6246
  %6281 = vst.msk [vmem:[%s14 + $0xaa] sm:$0xff] %vm117, %v6247
  %6282 = vst.msk [vmem:[%s14 + $0xb2] sm:$0xff] %vm117, %v6248
  %6283 = vst.msk [vmem:[%s14 + $0xba] sm:$0xff] %vm117, %v6249
  %6284 = vst.msk [vmem:[%s14 + $0xc2] sm:$0xff] %vm117, %v6250
  %6285 = vst.msk [vmem:[%s14 + $0xca] sm:$0xff] %vm117, %v6251
  %6286 = vst.msk [vmem:[%s14 + $0xd2] sm:$0xff] %vm117, %v6252
  %6287 = vst.msk [vmem:[%s14 + $0xda] sm:$0xff] %vm117, %v6253
  %6288 = vst.msk [vmem:[%s14 + $0xe2] sm:$0xff] %vm117, %v6254
  %6289 = vst.msk [vmem:[%s14 + $0xea] sm:$0xff] %vm117, %v6255
  %6290 = vst.msk [vmem:[%s14 + $0xf2] sm:$0xff] %vm117, %v6256
  %6291 = vst.msk [vmem:[%s14 + $0xfa] sm:$0x3f] %vm1361, %v6257
  // Predicated region
  $region58: #{tpu_custom_call.1} parent=0 // pred_check
    _
  $region59: #{tpu_custom_call.1} parent=0 // pred_check_branch
    %6293 = sbr.rel (0) target = $region61
  $region60: #{tpu_custom_call.1} parent=0 // pred_region
    _
  $region61: #{tpu_custom_call.1} parent=0 // pred_fallthru
    _
  // Predicated region
  $region62: #{tpu_custom_call.1} parent=0 // pred_check
    _
  $region63: #{tpu_custom_call.1} parent=0 // pred_check_branch
    %6295 = sbr.rel (0) target = $region65
  $region64: #{tpu_custom_call.1} parent=0 // pred_region
    _
  $region65: #{tpu_custom_call.1} parent=0 // pred_fallthru
    _

</llo_original>
